<compile_context>
chip_gen: v5e
topology: v5e:2x2
jax: 0.10.0
libtpu: 0.0.40
codegen_flags: <defaults>
</compile_context>

<pallas_src>
import numpy as np
import jax
import jax.numpy as jnp
from jax.experimental import pallas as pl
from jax.experimental.pallas import tpu as pltpu


# ---------------------------------------------------------------------------
# Fused LeNet5 kernel (one grid step == one image)
# ---------------------------------------------------------------------------
def _lenet5_kernel(x_ref, w1_ref, b1_ref, p1_ref, w2_ref, b2_ref, p2_ref,
                   w3_ref, b3_ref, wfc_ref, bfc_ref, wout_ref, bout_ref, o_ref):
    f32 = jnp.float32

    def shift_lanes(a, off):
        # shifted[:, pos] == a[:, pos + off] for pos < N - off.  The wrapped
        # tail only ever lands on spatially-invalid positions, which are never
        # read downstream (pool matrices / valid-tap selection mask them out).
        if off == 0:
            return a
        return jnp.concatenate([a[:, off:], a[:, :off]], axis=1)

    # ---- conv1 (1->6 ch, 5x5) + tanh: shift-and-accumulate over 25 taps ----
    x = x_ref[0]                                   # (1, 1024)  32x32 grid, 1 ch
    w1 = w1_ref[...]                               # (8, 25)    Cout padded 6->8
    acc1 = jnp.zeros((8, 1024), f32)
    for t in range(25):
        i, j = divmod(t, 5)
        acc1 = acc1 + w1[:, t:t + 1] * shift_lanes(x, i * 32 + j)
    y1 = jnp.tanh(acc1 + b1_ref[...])              # (8, 1024)  valid 28x28 region

    # ---- pool1: 2x2/2 avg pool as a matmul with a constant pooling matrix ----
    y1p = jnp.dot(y1, p1_ref[...], preferred_element_type=f32)   # (8, 256) 16x16 grid

    # ---- conv2 (6->16 ch, 5x5) + tanh: 25-tap stack + one MXU matmul ----
    x2 = jnp.concatenate(
        [shift_lanes(y1p, i * 16 + j) for i in range(5) for j in range(5)],
        axis=0)                                    # (200, 256)
    y2 = jnp.tanh(jnp.dot(w2_ref[...], x2, preferred_element_type=f32)
                  + b2_ref[...])                   # (16, 256)  valid 10x10 region

    # ---- pool2 ----
    y2p = jnp.dot(y2, p2_ref[...], preferred_element_type=f32)   # (16, 64)  8x8 grid

    # ---- conv3 (16->120 ch, 5x5) + tanh: single valid output position ----
    x3 = jnp.concatenate(
        [y2p[:, (i * 8 + j):(i * 8 + j) + 1] for i in range(5) for j in range(5)],
        axis=0)                                    # (400, 1)
    y3 = jnp.tanh(jnp.dot(w3_ref[...], x3, preferred_element_type=f32)
                  + b3_ref[...])                   # (120, 1)

    # ---- fc + out (fused classifier tail) ----
    y4 = jnp.tanh(jnp.dot(wfc_ref[...], y3, preferred_element_type=f32)
                  + bfc_ref[...])                  # (84, 1)
    logits = jnp.dot(wout_ref[...], y4, preferred_element_type=f32) + bout_ref[...]
    o_ref[0] = logits                              # (10, 1)


# ---------------------------------------------------------------------------
# Wrapper
# ---------------------------------------------------------------------------
def lenet5_pallas(kp, x_nchw):
    B = x_nchw.shape[0]
    x = x_nchw.astype(jnp.float32).reshape(B, 1, 32 * 32)      # (B, 1, 1024)

    weights = (kp["w1"], kp["b1"], kp["p1"], kp["w2"], kp["b2"], kp["p2"],
               kp["w3"], kp["b3"], kp["wfc"], kp["bfc"], kp["wout"], kp["bout"])

    in_specs = [pl.BlockSpec((1, 1, 32 * 32), lambda b: (b, 0, 0))]
    in_specs += [pl.BlockSpec(w.shape, lambda b: (0, 0)) for w in weights]

    out = pl.pallas_call(
        _lenet5_kernel,
        out_shape=jax.ShapeDtypeStruct((B, 10, 1), jnp.float32),
        grid=(B,),
        in_specs=in_specs,
        out_specs=pl.BlockSpec((1, 10, 1), lambda b: (b, 0, 0)),
        compiler_params=pltpu.CompilerParams(
            dimension_semantics=("parallel",)),      # batch across TCs on v7x
    )(x, *weights)
    return out.reshape(B, 10)


lenet5_forward = jax.jit(lenet5_pallas)


# ---------------------------------------------------------------------------
# Parameters (PyTorch-default-style uniform init) + kernel-layout conversion
# ---------------------------------------------------------------------------
def _uniform(key, shape, fan_in):
    bound = 1.0 / np.sqrt(float(fan_in))
    return jax.random.uniform(key, shape, jnp.float32, -bound, bound)


def _pool_matrix(g_in, g_out, n_out):
    """Right-multiplying a (C, g_in*g_in) activation by this matrix performs a
    2x2/stride-2 average pool over the valid n_out x n_out region and re-packs
    it onto a g_out x g_out grid (zeros elsewhere)."""
    p = np.zeros((g_in * g_in, g_out * g_out), np.float32)
    for a in range(n_out):
        for b in range(n_out):
            for da in range(2):
                for db in range(2):
                    p[(2 * a + da) * g_in + (2 * b + db), a * g_out + b] = 0.25
    return jnp.asarray(p)


def init_params(key):
    """Returns (kernel_params, raw_params). raw is PyTorch layout; kernel_params
    is the padded / re-flattened layout the fused Pallas kernel consumes."""
    ks = jax.random.split(key, 10)
    raw = {
        "w1": _uniform(ks[0], (6, 1, 5, 5), 25),   "b1": _uniform(ks[1], (6,), 25),
        "w2": _uniform(ks[2], (16, 6, 5, 5), 150), "b2": _uniform(ks[3], (16,), 150),
        "w3": _uniform(ks[4], (120, 16, 5, 5), 400), "b3": _uniform(ks[5], (120,), 400),
        "wfc": _uniform(ks[6], (84, 120), 120),    "bfc": _uniform(ks[7], (84,), 120),
        "wout": _uniform(ks[8], (10, 84), 84),     "bout": _uniform(ks[9], (10,), 84),
    }

    kp = {}
    # conv1: (6,1,5,5) -> (8, 25); Cout padded to 8 sublanes (zero rows).
    kp["w1"] = jnp.zeros((8, 25), jnp.float32).at[:6].set(raw["w1"].reshape(6, 25))
    kp["b1"] = jnp.zeros((8, 1), jnp.float32).at[:6, 0].set(raw["b1"])
    # conv2: (16,6,5,5) -> (16, 25*8); per-tap channel blocks padded 6->8.
    w2t = jnp.transpose(raw["w2"], (0, 2, 3, 1))                    # (16,5,5,6)
    kp["w2"] = jnp.pad(w2t, ((0, 0), (0, 0), (0, 0), (0, 2))).reshape(16, 200)
    kp["b2"] = raw["b2"].reshape(16, 1)
    # conv3: (120,16,5,5) -> (120, 25*16), tap-major / channel-minor.
    kp["w3"] = jnp.transpose(raw["w3"], (0, 2, 3, 1)).reshape(120, 400)
    kp["b3"] = raw["b3"].reshape(120, 1)
    kp["wfc"] = raw["wfc"]
    kp["bfc"] = raw["bfc"].reshape(84, 1)
    kp["wout"] = raw["wout"]
    kp["bout"] = raw["bout"].reshape(10, 1)
    # Constant pooling matrices (loaded into VMEM once; ~1 MB total).
    kp["p1"] = _pool_matrix(32, 16, 14)   # 28x28 valid -> 14x14 on a 16x16 grid
    kp["p2"] = _pool_matrix(16, 8, 5)     # 10x10 valid -> 5x5  on an 8x8  grid
    return kp, raw


# ---------------------------------------------------------------------------
# Pure-JAX reference (mirrors LeNet5.forward) for a numerical sanity check
# ---------------------------------------------------------------------------
def lenet5_reference(raw, x_nchw):
    hi = jax.lax.Precision.HIGHEST
    x = x_nchw.astype(jnp.float32)

    def conv(z, w, b):
        y = jax.lax.conv_general_dilated(
            z, w, window_strides=(1, 1), padding="VALID",
            dimension_numbers=("NCHW", "OIHW", "NCHW"), precision=hi)
        return jnp.tanh(y + b[None, :, None, None])

    def pool(z):
        return 0.25 * (z[:, :, 0::2, 0::2] + z[:, :, 1::2, 0::2]
                       + z[:, :, 0::2, 1::2] + z[:, :, 1::2, 1::2])

    y = pool(conv(x, raw["w1"], raw["b1"]))
    y = pool(conv(y, raw["w2"], raw["b2"]))
    y = conv(y, raw["w3"], raw["b3"]).reshape(-1, 120)
    y = jnp.tanh(jnp.dot(y, raw["wfc"].T, precision=hi) + raw["bfc"])
    return jnp.dot(y, raw["wout"].T, precision=hi) + raw["bout"]


if __name__ == "__main__":
    key = jax.random.PRNGKey(0)
    k_params, k_x = jax.random.split(key)
    kparams, raw = init_params(k_params)

    # LeNet-5 geometry requires 32x32 single-channel input; small batch of 2.
    x = jax.random.normal(k_x, (2, 1, 32, 32), dtype=jnp.float32)

    out = lenet5_forward(kparams, x)
    out = jax.block_until_ready(out)
    assert out.shape == (2, 10) and out.dtype == jnp.float32

    ref = jax.block_until_ready(lenet5_reference(raw, x))
    assert float(jnp.max(jnp.abs(out - ref))) < 5e-2, "kernel/reference mismatch"
    print("KERNEL_OK")
</pallas_src>

<mosaic_0001>
module attributes {stable_mosaic.version = 11 : i64} {
  func.func @_lenet5_kernel(%arg0: i32, %arg1: memref<1x1x1024xf32, #tpu.memory_space<vmem>>, %arg2: memref<8x25xf32, #tpu.memory_space<vmem>>, %arg3: memref<8x1xf32, #tpu.memory_space<vmem>>, %arg4: memref<1024x256xf32, #tpu.memory_space<vmem>>, %arg5: memref<16x200xf32, #tpu.memory_space<vmem>>, %arg6: memref<16x1xf32, #tpu.memory_space<vmem>>, %arg7: memref<256x64xf32, #tpu.memory_space<vmem>>, %arg8: memref<120x400xf32, #tpu.memory_space<vmem>>, %arg9: memref<120x1xf32, #tpu.memory_space<vmem>>, %arg10: memref<84x120xf32, #tpu.memory_space<vmem>>, %arg11: memref<84x1xf32, #tpu.memory_space<vmem>>, %arg12: memref<10x84xf32, #tpu.memory_space<vmem>>, %arg13: memref<10x1xf32, #tpu.memory_space<vmem>>, %arg14: memref<1x10x1xf32, #tpu.memory_space<vmem>>) attributes {dimension_semantics = [#tpu.dimension_semantics<parallel>], iteration_bounds = array<i64: 2>, scalar_prefetch = 0 : i64, scratch_operands = 0 : i64, tpu.core_type = #tpu.core_type<tc>, window_params = [{transform_indices = @transform_0, window_bounds = array<i64: 1, 1, 1024>}, {pipeline_mode = #tpu.pipeline_mode<synchronous>, transform_indices = @transform_1, window_bounds = array<i64: 8, 25>}, {pipeline_mode = #tpu.pipeline_mode<synchronous>, transform_indices = @transform_2, window_bounds = array<i64: 8, 1>}, {pipeline_mode = #tpu.pipeline_mode<synchronous>, transform_indices = @transform_3, window_bounds = array<i64: 1024, 256>}, {pipeline_mode = #tpu.pipeline_mode<synchronous>, transform_indices = @transform_4, window_bounds = array<i64: 16, 200>}, {pipeline_mode = #tpu.pipeline_mode<synchronous>, transform_indices = @transform_5, window_bounds = array<i64: 16, 1>}, {pipeline_mode = #tpu.pipeline_mode<synchronous>, transform_indices = @transform_6, window_bounds = array<i64: 256, 64>}, {pipeline_mode = #tpu.pipeline_mode<synchronous>, transform_indices = @transform_7, window_bounds = array<i64: 120, 400>}, {pipeline_mode = #tpu.pipeline_mode<synchronous>, transform_indices = @transform_8, window_bounds = array<i64: 120, 1>}, {pipeline_mode = #tpu.pipeline_mode<synchronous>, transform_indices = @transform_9, window_bounds = array<i64: 84, 120>}, {pipeline_mode = #tpu.pipeline_mode<synchronous>, transform_indices = @transform_10, window_bounds = array<i64: 84, 1>}, {pipeline_mode = #tpu.pipeline_mode<synchronous>, transform_indices = @transform_11, window_bounds = array<i64: 10, 84>}, {pipeline_mode = #tpu.pipeline_mode<synchronous>, transform_indices = @transform_12, window_bounds = array<i64: 10, 1>}, {transform_indices = @transform_13, window_bounds = array<i64: 1, 10, 1>}]} {
    %c0 = arith.constant 0 : index
    %c0_0 = arith.constant 0 : index
    %c0_1 = arith.constant 0 : index
    %0 = vector.load %arg1[%c0, %c0_0, %c0_1] : memref<1x1x1024xf32, #tpu.memory_space<vmem>>, vector<1x1x1024xf32>
    %1 = vector.shape_cast %0 : vector<1x1x1024xf32> to vector<1x1024xf32>
    %c0_2 = arith.constant 0 : index
    %c0_3 = arith.constant 0 : index
    %2 = vector.load %arg2[%c0_2, %c0_3] : memref<8x25xf32, #tpu.memory_space<vmem>>, vector<8x25xf32>
    %cst = arith.constant 0.000000e+00 : f32
    %3 = vector.broadcast %cst : f32 to vector<8x1024xf32>
    %4 = vector.extract_strided_slice %2 {offsets = [0, 0], sizes = [8, 1], strides = [1, 1]} : vector<8x25xf32> to vector<8x1xf32>
    %5 = vector.broadcast %4 : vector<8x1xf32> to vector<8x1024xf32>
    %6 = vector.broadcast %1 : vector<1x1024xf32> to vector<8x1024xf32>
    %7 = arith.mulf %5, %6 : vector<8x1024xf32>
    %8 = arith.addf %3, %7 : vector<8x1024xf32>
    %9 = vector.extract_strided_slice %2 {offsets = [0, 1], sizes = [8, 1], strides = [1, 1]} : vector<8x25xf32> to vector<8x1xf32>
    %10 = vector.extract_strided_slice %1 {offsets = [0, 1], sizes = [1, 1023], strides = [1, 1]} : vector<1x1024xf32> to vector<1x1023xf32>
    %11 = vector.extract_strided_slice %1 {offsets = [0, 0], sizes = [1, 1], strides = [1, 1]} : vector<1x1024xf32> to vector<1x1xf32>
    %12 = tpu.concatenate %10, %11 in 1 : vector<1x1023xf32>, vector<1x1xf32> -> vector<1x1024xf32>
    %13 = vector.broadcast %9 : vector<8x1xf32> to vector<8x1024xf32>
    %14 = vector.broadcast %12 : vector<1x1024xf32> to vector<8x1024xf32>
    %15 = arith.mulf %13, %14 : vector<8x1024xf32>
    %16 = arith.addf %8, %15 : vector<8x1024xf32>
    %17 = vector.extract_strided_slice %2 {offsets = [0, 2], sizes = [8, 1], strides = [1, 1]} : vector<8x25xf32> to vector<8x1xf32>
    %18 = vector.extract_strided_slice %1 {offsets = [0, 2], sizes = [1, 1022], strides = [1, 1]} : vector<1x1024xf32> to vector<1x1022xf32>
    %19 = vector.extract_strided_slice %1 {offsets = [0, 0], sizes = [1, 2], strides = [1, 1]} : vector<1x1024xf32> to vector<1x2xf32>
    %20 = tpu.concatenate %18, %19 in 1 : vector<1x1022xf32>, vector<1x2xf32> -> vector<1x1024xf32>
    %21 = vector.broadcast %17 : vector<8x1xf32> to vector<8x1024xf32>
    %22 = vector.broadcast %20 : vector<1x1024xf32> to vector<8x1024xf32>
    %23 = arith.mulf %21, %22 : vector<8x1024xf32>
    %24 = arith.addf %16, %23 : vector<8x1024xf32>
    %25 = vector.extract_strided_slice %2 {offsets = [0, 3], sizes = [8, 1], strides = [1, 1]} : vector<8x25xf32> to vector<8x1xf32>
    %26 = vector.extract_strided_slice %1 {offsets = [0, 3], sizes = [1, 1021], strides = [1, 1]} : vector<1x1024xf32> to vector<1x1021xf32>
    %27 = vector.extract_strided_slice %1 {offsets = [0, 0], sizes = [1, 3], strides = [1, 1]} : vector<1x1024xf32> to vector<1x3xf32>
    %28 = tpu.concatenate %26, %27 in 1 : vector<1x1021xf32>, vector<1x3xf32> -> vector<1x1024xf32>
    %29 = vector.broadcast %25 : vector<8x1xf32> to vector<8x1024xf32>
    %30 = vector.broadcast %28 : vector<1x1024xf32> to vector<8x1024xf32>
    %31 = arith.mulf %29, %30 : vector<8x1024xf32>
    %32 = arith.addf %24, %31 : vector<8x1024xf32>
    %33 = vector.extract_strided_slice %2 {offsets = [0, 4], sizes = [8, 1], strides = [1, 1]} : vector<8x25xf32> to vector<8x1xf32>
    %34 = vector.extract_strided_slice %1 {offsets = [0, 4], sizes = [1, 1020], strides = [1, 1]} : vector<1x1024xf32> to vector<1x1020xf32>
    %35 = vector.extract_strided_slice %1 {offsets = [0, 0], sizes = [1, 4], strides = [1, 1]} : vector<1x1024xf32> to vector<1x4xf32>
    %36 = tpu.concatenate %34, %35 in 1 : vector<1x1020xf32>, vector<1x4xf32> -> vector<1x1024xf32>
    %37 = vector.broadcast %33 : vector<8x1xf32> to vector<8x1024xf32>
    %38 = vector.broadcast %36 : vector<1x1024xf32> to vector<8x1024xf32>
    %39 = arith.mulf %37, %38 : vector<8x1024xf32>
    %40 = arith.addf %32, %39 : vector<8x1024xf32>
    %41 = vector.extract_strided_slice %2 {offsets = [0, 5], sizes = [8, 1], strides = [1, 1]} : vector<8x25xf32> to vector<8x1xf32>
    %42 = vector.extract_strided_slice %1 {offsets = [0, 32], sizes = [1, 992], strides = [1, 1]} : vector<1x1024xf32> to vector<1x992xf32>
    %43 = vector.extract_strided_slice %1 {offsets = [0, 0], sizes = [1, 32], strides = [1, 1]} : vector<1x1024xf32> to vector<1x32xf32>
    %44 = tpu.concatenate %42, %43 in 1 : vector<1x992xf32>, vector<1x32xf32> -> vector<1x1024xf32>
    %45 = vector.broadcast %41 : vector<8x1xf32> to vector<8x1024xf32>
    %46 = vector.broadcast %44 : vector<1x1024xf32> to vector<8x1024xf32>
    %47 = arith.mulf %45, %46 : vector<8x1024xf32>
    %48 = arith.addf %40, %47 : vector<8x1024xf32>
    %49 = vector.extract_strided_slice %2 {offsets = [0, 6], sizes = [8, 1], strides = [1, 1]} : vector<8x25xf32> to vector<8x1xf32>
    %50 = vector.extract_strided_slice %1 {offsets = [0, 33], sizes = [1, 991], strides = [1, 1]} : vector<1x1024xf32> to vector<1x991xf32>
    %51 = vector.extract_strided_slice %1 {offsets = [0, 0], sizes = [1, 33], strides = [1, 1]} : vector<1x1024xf32> to vector<1x33xf32>
    %52 = tpu.concatenate %50, %51 in 1 : vector<1x991xf32>, vector<1x33xf32> -> vector<1x1024xf32>
    %53 = vector.broadcast %49 : vector<8x1xf32> to vector<8x1024xf32>
    %54 = vector.broadcast %52 : vector<1x1024xf32> to vector<8x1024xf32>
    %55 = arith.mulf %53, %54 : vector<8x1024xf32>
    %56 = arith.addf %48, %55 : vector<8x1024xf32>
    %57 = vector.extract_strided_slice %2 {offsets = [0, 7], sizes = [8, 1], strides = [1, 1]} : vector<8x25xf32> to vector<8x1xf32>
    %58 = vector.extract_strided_slice %1 {offsets = [0, 34], sizes = [1, 990], strides = [1, 1]} : vector<1x1024xf32> to vector<1x990xf32>
    %59 = vector.extract_strided_slice %1 {offsets = [0, 0], sizes = [1, 34], strides = [1, 1]} : vector<1x1024xf32> to vector<1x34xf32>
    %60 = tpu.concatenate %58, %59 in 1 : vector<1x990xf32>, vector<1x34xf32> -> vector<1x1024xf32>
    %61 = vector.broadcast %57 : vector<8x1xf32> to vector<8x1024xf32>
    %62 = vector.broadcast %60 : vector<1x1024xf32> to vector<8x1024xf32>
    %63 = arith.mulf %61, %62 : vector<8x1024xf32>
    %64 = arith.addf %56, %63 : vector<8x1024xf32>
    %65 = vector.extract_strided_slice %2 {offsets = [0, 8], sizes = [8, 1], strides = [1, 1]} : vector<8x25xf32> to vector<8x1xf32>
    %66 = vector.extract_strided_slice %1 {offsets = [0, 35], sizes = [1, 989], strides = [1, 1]} : vector<1x1024xf32> to vector<1x989xf32>
    %67 = vector.extract_strided_slice %1 {offsets = [0, 0], sizes = [1, 35], strides = [1, 1]} : vector<1x1024xf32> to vector<1x35xf32>
    %68 = tpu.concatenate %66, %67 in 1 : vector<1x989xf32>, vector<1x35xf32> -> vector<1x1024xf32>
    %69 = vector.broadcast %65 : vector<8x1xf32> to vector<8x1024xf32>
    %70 = vector.broadcast %68 : vector<1x1024xf32> to vector<8x1024xf32>
    %71 = arith.mulf %69, %70 : vector<8x1024xf32>
    %72 = arith.addf %64, %71 : vector<8x1024xf32>
    %73 = vector.extract_strided_slice %2 {offsets = [0, 9], sizes = [8, 1], strides = [1, 1]} : vector<8x25xf32> to vector<8x1xf32>
    %74 = vector.extract_strided_slice %1 {offsets = [0, 36], sizes = [1, 988], strides = [1, 1]} : vector<1x1024xf32> to vector<1x988xf32>
    %75 = vector.extract_strided_slice %1 {offsets = [0, 0], sizes = [1, 36], strides = [1, 1]} : vector<1x1024xf32> to vector<1x36xf32>
    %76 = tpu.concatenate %74, %75 in 1 : vector<1x988xf32>, vector<1x36xf32> -> vector<1x1024xf32>
    %77 = vector.broadcast %73 : vector<8x1xf32> to vector<8x1024xf32>
    %78 = vector.broadcast %76 : vector<1x1024xf32> to vector<8x1024xf32>
    %79 = arith.mulf %77, %78 : vector<8x1024xf32>
    %80 = arith.addf %72, %79 : vector<8x1024xf32>
    %81 = vector.extract_strided_slice %2 {offsets = [0, 10], sizes = [8, 1], strides = [1, 1]} : vector<8x25xf32> to vector<8x1xf32>
    %82 = vector.extract_strided_slice %1 {offsets = [0, 64], sizes = [1, 960], strides = [1, 1]} : vector<1x1024xf32> to vector<1x960xf32>
    %83 = vector.extract_strided_slice %1 {offsets = [0, 0], sizes = [1, 64], strides = [1, 1]} : vector<1x1024xf32> to vector<1x64xf32>
    %84 = tpu.concatenate %82, %83 in 1 : vector<1x960xf32>, vector<1x64xf32> -> vector<1x1024xf32>
    %85 = vector.broadcast %81 : vector<8x1xf32> to vector<8x1024xf32>
    %86 = vector.broadcast %84 : vector<1x1024xf32> to vector<8x1024xf32>
    %87 = arith.mulf %85, %86 : vector<8x1024xf32>
    %88 = arith.addf %80, %87 : vector<8x1024xf32>
    %89 = vector.extract_strided_slice %2 {offsets = [0, 11], sizes = [8, 1], strides = [1, 1]} : vector<8x25xf32> to vector<8x1xf32>
    %90 = vector.extract_strided_slice %1 {offsets = [0, 65], sizes = [1, 959], strides = [1, 1]} : vector<1x1024xf32> to vector<1x959xf32>
    %91 = vector.extract_strided_slice %1 {offsets = [0, 0], sizes = [1, 65], strides = [1, 1]} : vector<1x1024xf32> to vector<1x65xf32>
    %92 = tpu.concatenate %90, %91 in 1 : vector<1x959xf32>, vector<1x65xf32> -> vector<1x1024xf32>
    %93 = vector.broadcast %89 : vector<8x1xf32> to vector<8x1024xf32>
    %94 = vector.broadcast %92 : vector<1x1024xf32> to vector<8x1024xf32>
    %95 = arith.mulf %93, %94 : vector<8x1024xf32>
    %96 = arith.addf %88, %95 : vector<8x1024xf32>
    %97 = vector.extract_strided_slice %2 {offsets = [0, 12], sizes = [8, 1], strides = [1, 1]} : vector<8x25xf32> to vector<8x1xf32>
    %98 = vector.extract_strided_slice %1 {offsets = [0, 66], sizes = [1, 958], strides = [1, 1]} : vector<1x1024xf32> to vector<1x958xf32>
    %99 = vector.extract_strided_slice %1 {offsets = [0, 0], sizes = [1, 66], strides = [1, 1]} : vector<1x1024xf32> to vector<1x66xf32>
    %100 = tpu.concatenate %98, %99 in 1 : vector<1x958xf32>, vector<1x66xf32> -> vector<1x1024xf32>
    %101 = vector.broadcast %97 : vector<8x1xf32> to vector<8x1024xf32>
    %102 = vector.broadcast %100 : vector<1x1024xf32> to vector<8x1024xf32>
    %103 = arith.mulf %101, %102 : vector<8x1024xf32>
    %104 = arith.addf %96, %103 : vector<8x1024xf32>
    %105 = vector.extract_strided_slice %2 {offsets = [0, 13], sizes = [8, 1], strides = [1, 1]} : vector<8x25xf32> to vector<8x1xf32>
    %106 = vector.extract_strided_slice %1 {offsets = [0, 67], sizes = [1, 957], strides = [1, 1]} : vector<1x1024xf32> to vector<1x957xf32>
    %107 = vector.extract_strided_slice %1 {offsets = [0, 0], sizes = [1, 67], strides = [1, 1]} : vector<1x1024xf32> to vector<1x67xf32>
    %108 = tpu.concatenate %106, %107 in 1 : vector<1x957xf32>, vector<1x67xf32> -> vector<1x1024xf32>
    %109 = vector.broadcast %105 : vector<8x1xf32> to vector<8x1024xf32>
    %110 = vector.broadcast %108 : vector<1x1024xf32> to vector<8x1024xf32>
    %111 = arith.mulf %109, %110 : vector<8x1024xf32>
    %112 = arith.addf %104, %111 : vector<8x1024xf32>
    %113 = vector.extract_strided_slice %2 {offsets = [0, 14], sizes = [8, 1], strides = [1, 1]} : vector<8x25xf32> to vector<8x1xf32>
    %114 = vector.extract_strided_slice %1 {offsets = [0, 68], sizes = [1, 956], strides = [1, 1]} : vector<1x1024xf32> to vector<1x956xf32>
    %115 = vector.extract_strided_slice %1 {offsets = [0, 0], sizes = [1, 68], strides = [1, 1]} : vector<1x1024xf32> to vector<1x68xf32>
    %116 = tpu.concatenate %114, %115 in 1 : vector<1x956xf32>, vector<1x68xf32> -> vector<1x1024xf32>
    %117 = vector.broadcast %113 : vector<8x1xf32> to vector<8x1024xf32>
    %118 = vector.broadcast %116 : vector<1x1024xf32> to vector<8x1024xf32>
    %119 = arith.mulf %117, %118 : vector<8x1024xf32>
    %120 = arith.addf %112, %119 : vector<8x1024xf32>
    %121 = vector.extract_strided_slice %2 {offsets = [0, 15], sizes = [8, 1], strides = [1, 1]} : vector<8x25xf32> to vector<8x1xf32>
    %122 = vector.extract_strided_slice %1 {offsets = [0, 96], sizes = [1, 928], strides = [1, 1]} : vector<1x1024xf32> to vector<1x928xf32>
    %123 = vector.extract_strided_slice %1 {offsets = [0, 0], sizes = [1, 96], strides = [1, 1]} : vector<1x1024xf32> to vector<1x96xf32>
    %124 = tpu.concatenate %122, %123 in 1 : vector<1x928xf32>, vector<1x96xf32> -> vector<1x1024xf32>
    %125 = vector.broadcast %121 : vector<8x1xf32> to vector<8x1024xf32>
    %126 = vector.broadcast %124 : vector<1x1024xf32> to vector<8x1024xf32>
    %127 = arith.mulf %125, %126 : vector<8x1024xf32>
    %128 = arith.addf %120, %127 : vector<8x1024xf32>
    %129 = vector.extract_strided_slice %2 {offsets = [0, 16], sizes = [8, 1], strides = [1, 1]} : vector<8x25xf32> to vector<8x1xf32>
    %130 = vector.extract_strided_slice %1 {offsets = [0, 97], sizes = [1, 927], strides = [1, 1]} : vector<1x1024xf32> to vector<1x927xf32>
    %131 = vector.extract_strided_slice %1 {offsets = [0, 0], sizes = [1, 97], strides = [1, 1]} : vector<1x1024xf32> to vector<1x97xf32>
    %132 = tpu.concatenate %130, %131 in 1 : vector<1x927xf32>, vector<1x97xf32> -> vector<1x1024xf32>
    %133 = vector.broadcast %129 : vector<8x1xf32> to vector<8x1024xf32>
    %134 = vector.broadcast %132 : vector<1x1024xf32> to vector<8x1024xf32>
    %135 = arith.mulf %133, %134 : vector<8x1024xf32>
    %136 = arith.addf %128, %135 : vector<8x1024xf32>
    %137 = vector.extract_strided_slice %2 {offsets = [0, 17], sizes = [8, 1], strides = [1, 1]} : vector<8x25xf32> to vector<8x1xf32>
    %138 = vector.extract_strided_slice %1 {offsets = [0, 98], sizes = [1, 926], strides = [1, 1]} : vector<1x1024xf32> to vector<1x926xf32>
    %139 = vector.extract_strided_slice %1 {offsets = [0, 0], sizes = [1, 98], strides = [1, 1]} : vector<1x1024xf32> to vector<1x98xf32>
    %140 = tpu.concatenate %138, %139 in 1 : vector<1x926xf32>, vector<1x98xf32> -> vector<1x1024xf32>
    %141 = vector.broadcast %137 : vector<8x1xf32> to vector<8x1024xf32>
    %142 = vector.broadcast %140 : vector<1x1024xf32> to vector<8x1024xf32>
    %143 = arith.mulf %141, %142 : vector<8x1024xf32>
    %144 = arith.addf %136, %143 : vector<8x1024xf32>
    %145 = vector.extract_strided_slice %2 {offsets = [0, 18], sizes = [8, 1], strides = [1, 1]} : vector<8x25xf32> to vector<8x1xf32>
    %146 = vector.extract_strided_slice %1 {offsets = [0, 99], sizes = [1, 925], strides = [1, 1]} : vector<1x1024xf32> to vector<1x925xf32>
    %147 = vector.extract_strided_slice %1 {offsets = [0, 0], sizes = [1, 99], strides = [1, 1]} : vector<1x1024xf32> to vector<1x99xf32>
    %148 = tpu.concatenate %146, %147 in 1 : vector<1x925xf32>, vector<1x99xf32> -> vector<1x1024xf32>
    %149 = vector.broadcast %145 : vector<8x1xf32> to vector<8x1024xf32>
    %150 = vector.broadcast %148 : vector<1x1024xf32> to vector<8x1024xf32>
    %151 = arith.mulf %149, %150 : vector<8x1024xf32>
    %152 = arith.addf %144, %151 : vector<8x1024xf32>
    %153 = vector.extract_strided_slice %2 {offsets = [0, 19], sizes = [8, 1], strides = [1, 1]} : vector<8x25xf32> to vector<8x1xf32>
    %154 = vector.extract_strided_slice %1 {offsets = [0, 100], sizes = [1, 924], strides = [1, 1]} : vector<1x1024xf32> to vector<1x924xf32>
    %155 = vector.extract_strided_slice %1 {offsets = [0, 0], sizes = [1, 100], strides = [1, 1]} : vector<1x1024xf32> to vector<1x100xf32>
    %156 = tpu.concatenate %154, %155 in 1 : vector<1x924xf32>, vector<1x100xf32> -> vector<1x1024xf32>
    %157 = vector.broadcast %153 : vector<8x1xf32> to vector<8x1024xf32>
    %158 = vector.broadcast %156 : vector<1x1024xf32> to vector<8x1024xf32>
    %159 = arith.mulf %157, %158 : vector<8x1024xf32>
    %160 = arith.addf %152, %159 : vector<8x1024xf32>
    %161 = vector.extract_strided_slice %2 {offsets = [0, 20], sizes = [8, 1], strides = [1, 1]} : vector<8x25xf32> to vector<8x1xf32>
    %162 = vector.extract_strided_slice %1 {offsets = [0, 128], sizes = [1, 896], strides = [1, 1]} : vector<1x1024xf32> to vector<1x896xf32>
    %163 = vector.extract_strided_slice %1 {offsets = [0, 0], sizes = [1, 128], strides = [1, 1]} : vector<1x1024xf32> to vector<1x128xf32>
    %164 = tpu.concatenate %162, %163 in 1 : vector<1x896xf32>, vector<1x128xf32> -> vector<1x1024xf32>
    %165 = vector.broadcast %161 : vector<8x1xf32> to vector<8x1024xf32>
    %166 = vector.broadcast %164 : vector<1x1024xf32> to vector<8x1024xf32>
    %167 = arith.mulf %165, %166 : vector<8x1024xf32>
    %168 = arith.addf %160, %167 : vector<8x1024xf32>
    %169 = vector.extract_strided_slice %2 {offsets = [0, 21], sizes = [8, 1], strides = [1, 1]} : vector<8x25xf32> to vector<8x1xf32>
    %170 = vector.extract_strided_slice %1 {offsets = [0, 129], sizes = [1, 895], strides = [1, 1]} : vector<1x1024xf32> to vector<1x895xf32>
    %171 = vector.extract_strided_slice %1 {offsets = [0, 0], sizes = [1, 129], strides = [1, 1]} : vector<1x1024xf32> to vector<1x129xf32>
    %172 = tpu.concatenate %170, %171 in 1 : vector<1x895xf32>, vector<1x129xf32> -> vector<1x1024xf32>
    %173 = vector.broadcast %169 : vector<8x1xf32> to vector<8x1024xf32>
    %174 = vector.broadcast %172 : vector<1x1024xf32> to vector<8x1024xf32>
    %175 = arith.mulf %173, %174 : vector<8x1024xf32>
    %176 = arith.addf %168, %175 : vector<8x1024xf32>
    %177 = vector.extract_strided_slice %2 {offsets = [0, 22], sizes = [8, 1], strides = [1, 1]} : vector<8x25xf32> to vector<8x1xf32>
    %178 = vector.extract_strided_slice %1 {offsets = [0, 130], sizes = [1, 894], strides = [1, 1]} : vector<1x1024xf32> to vector<1x894xf32>
    %179 = vector.extract_strided_slice %1 {offsets = [0, 0], sizes = [1, 130], strides = [1, 1]} : vector<1x1024xf32> to vector<1x130xf32>
    %180 = tpu.concatenate %178, %179 in 1 : vector<1x894xf32>, vector<1x130xf32> -> vector<1x1024xf32>
    %181 = vector.broadcast %177 : vector<8x1xf32> to vector<8x1024xf32>
    %182 = vector.broadcast %180 : vector<1x1024xf32> to vector<8x1024xf32>
    %183 = arith.mulf %181, %182 : vector<8x1024xf32>
    %184 = arith.addf %176, %183 : vector<8x1024xf32>
    %185 = vector.extract_strided_slice %2 {offsets = [0, 23], sizes = [8, 1], strides = [1, 1]} : vector<8x25xf32> to vector<8x1xf32>
    %186 = vector.extract_strided_slice %1 {offsets = [0, 131], sizes = [1, 893], strides = [1, 1]} : vector<1x1024xf32> to vector<1x893xf32>
    %187 = vector.extract_strided_slice %1 {offsets = [0, 0], sizes = [1, 131], strides = [1, 1]} : vector<1x1024xf32> to vector<1x131xf32>
    %188 = tpu.concatenate %186, %187 in 1 : vector<1x893xf32>, vector<1x131xf32> -> vector<1x1024xf32>
    %189 = vector.broadcast %185 : vector<8x1xf32> to vector<8x1024xf32>
    %190 = vector.broadcast %188 : vector<1x1024xf32> to vector<8x1024xf32>
    %191 = arith.mulf %189, %190 : vector<8x1024xf32>
    %192 = arith.addf %184, %191 : vector<8x1024xf32>
    %193 = vector.extract_strided_slice %2 {offsets = [0, 24], sizes = [8, 1], strides = [1, 1]} : vector<8x25xf32> to vector<8x1xf32>
    %194 = vector.extract_strided_slice %1 {offsets = [0, 132], sizes = [1, 892], strides = [1, 1]} : vector<1x1024xf32> to vector<1x892xf32>
    %195 = vector.extract_strided_slice %1 {offsets = [0, 0], sizes = [1, 132], strides = [1, 1]} : vector<1x1024xf32> to vector<1x132xf32>
    %196 = tpu.concatenate %194, %195 in 1 : vector<1x892xf32>, vector<1x132xf32> -> vector<1x1024xf32>
    %197 = vector.broadcast %193 : vector<8x1xf32> to vector<8x1024xf32>
    %198 = vector.broadcast %196 : vector<1x1024xf32> to vector<8x1024xf32>
    %199 = arith.mulf %197, %198 : vector<8x1024xf32>
    %200 = arith.addf %192, %199 : vector<8x1024xf32>
    %c0_4 = arith.constant 0 : index
    %c0_5 = arith.constant 0 : index
    %201 = vector.load %arg3[%c0_4, %c0_5] : memref<8x1xf32, #tpu.memory_space<vmem>>, vector<8x1xf32>
    %202 = vector.broadcast %201 : vector<8x1xf32> to vector<8x1024xf32>
    %203 = arith.addf %200, %202 : vector<8x1024xf32>
    %204 = math.tanh %203 : vector<8x1024xf32>
    %c0_6 = arith.constant 0 : index
    %c0_7 = arith.constant 0 : index
    %205 = vector.load %arg4[%c0_6, %c0_7] : memref<1024x256xf32, #tpu.memory_space<vmem>>, vector<1024x256xf32>
    %cst_8 = arith.constant dense<0.000000e+00> : vector<8x256xf32>
    %206 = tpu.matmul %204, %205, %cst_8 {dimension_numbers = #tpu.dot_dimension_numbers<[1], [0], [0], [1], [0, 0, 1, 1], [], []>} : vector<8x1024xf32>, vector<1024x256xf32>, vector<8x256xf32> -> vector<8x256xf32>
    %207 = vector.extract_strided_slice %206 {offsets = [0, 1], sizes = [8, 255], strides = [1, 1]} : vector<8x256xf32> to vector<8x255xf32>
    %208 = vector.extract_strided_slice %206 {offsets = [0, 0], sizes = [8, 1], strides = [1, 1]} : vector<8x256xf32> to vector<8x1xf32>
    %209 = tpu.concatenate %207, %208 in 1 : vector<8x255xf32>, vector<8x1xf32> -> vector<8x256xf32>
    %210 = vector.extract_strided_slice %206 {offsets = [0, 2], sizes = [8, 254], strides = [1, 1]} : vector<8x256xf32> to vector<8x254xf32>
    %211 = vector.extract_strided_slice %206 {offsets = [0, 0], sizes = [8, 2], strides = [1, 1]} : vector<8x256xf32> to vector<8x2xf32>
    %212 = tpu.concatenate %210, %211 in 1 : vector<8x254xf32>, vector<8x2xf32> -> vector<8x256xf32>
    %213 = vector.extract_strided_slice %206 {offsets = [0, 3], sizes = [8, 253], strides = [1, 1]} : vector<8x256xf32> to vector<8x253xf32>
    %214 = vector.extract_strided_slice %206 {offsets = [0, 0], sizes = [8, 3], strides = [1, 1]} : vector<8x256xf32> to vector<8x3xf32>
    %215 = tpu.concatenate %213, %214 in 1 : vector<8x253xf32>, vector<8x3xf32> -> vector<8x256xf32>
    %216 = vector.extract_strided_slice %206 {offsets = [0, 4], sizes = [8, 252], strides = [1, 1]} : vector<8x256xf32> to vector<8x252xf32>
    %217 = vector.extract_strided_slice %206 {offsets = [0, 0], sizes = [8, 4], strides = [1, 1]} : vector<8x256xf32> to vector<8x4xf32>
    %218 = tpu.concatenate %216, %217 in 1 : vector<8x252xf32>, vector<8x4xf32> -> vector<8x256xf32>
    %219 = vector.extract_strided_slice %206 {offsets = [0, 16], sizes = [8, 240], strides = [1, 1]} : vector<8x256xf32> to vector<8x240xf32>
    %220 = vector.extract_strided_slice %206 {offsets = [0, 0], sizes = [8, 16], strides = [1, 1]} : vector<8x256xf32> to vector<8x16xf32>
    %221 = tpu.concatenate %219, %220 in 1 : vector<8x240xf32>, vector<8x16xf32> -> vector<8x256xf32>
    %222 = vector.extract_strided_slice %206 {offsets = [0, 17], sizes = [8, 239], strides = [1, 1]} : vector<8x256xf32> to vector<8x239xf32>
    %223 = vector.extract_strided_slice %206 {offsets = [0, 0], sizes = [8, 17], strides = [1, 1]} : vector<8x256xf32> to vector<8x17xf32>
    %224 = tpu.concatenate %222, %223 in 1 : vector<8x239xf32>, vector<8x17xf32> -> vector<8x256xf32>
    %225 = vector.extract_strided_slice %206 {offsets = [0, 18], sizes = [8, 238], strides = [1, 1]} : vector<8x256xf32> to vector<8x238xf32>
    %226 = vector.extract_strided_slice %206 {offsets = [0, 0], sizes = [8, 18], strides = [1, 1]} : vector<8x256xf32> to vector<8x18xf32>
    %227 = tpu.concatenate %225, %226 in 1 : vector<8x238xf32>, vector<8x18xf32> -> vector<8x256xf32>
    %228 = vector.extract_strided_slice %206 {offsets = [0, 19], sizes = [8, 237], strides = [1, 1]} : vector<8x256xf32> to vector<8x237xf32>
    %229 = vector.extract_strided_slice %206 {offsets = [0, 0], sizes = [8, 19], strides = [1, 1]} : vector<8x256xf32> to vector<8x19xf32>
    %230 = tpu.concatenate %228, %229 in 1 : vector<8x237xf32>, vector<8x19xf32> -> vector<8x256xf32>
    %231 = vector.extract_strided_slice %206 {offsets = [0, 20], sizes = [8, 236], strides = [1, 1]} : vector<8x256xf32> to vector<8x236xf32>
    %232 = vector.extract_strided_slice %206 {offsets = [0, 0], sizes = [8, 20], strides = [1, 1]} : vector<8x256xf32> to vector<8x20xf32>
    %233 = tpu.concatenate %231, %232 in 1 : vector<8x236xf32>, vector<8x20xf32> -> vector<8x256xf32>
    %234 = vector.extract_strided_slice %206 {offsets = [0, 32], sizes = [8, 224], strides = [1, 1]} : vector<8x256xf32> to vector<8x224xf32>
    %235 = vector.extract_strided_slice %206 {offsets = [0, 0], sizes = [8, 32], strides = [1, 1]} : vector<8x256xf32> to vector<8x32xf32>
    %236 = tpu.concatenate %234, %235 in 1 : vector<8x224xf32>, vector<8x32xf32> -> vector<8x256xf32>
    %237 = vector.extract_strided_slice %206 {offsets = [0, 33], sizes = [8, 223], strides = [1, 1]} : vector<8x256xf32> to vector<8x223xf32>
    %238 = vector.extract_strided_slice %206 {offsets = [0, 0], sizes = [8, 33], strides = [1, 1]} : vector<8x256xf32> to vector<8x33xf32>
    %239 = tpu.concatenate %237, %238 in 1 : vector<8x223xf32>, vector<8x33xf32> -> vector<8x256xf32>
    %240 = vector.extract_strided_slice %206 {offsets = [0, 34], sizes = [8, 222], strides = [1, 1]} : vector<8x256xf32> to vector<8x222xf32>
    %241 = vector.extract_strided_slice %206 {offsets = [0, 0], sizes = [8, 34], strides = [1, 1]} : vector<8x256xf32> to vector<8x34xf32>
    %242 = tpu.concatenate %240, %241 in 1 : vector<8x222xf32>, vector<8x34xf32> -> vector<8x256xf32>
    %243 = vector.extract_strided_slice %206 {offsets = [0, 35], sizes = [8, 221], strides = [1, 1]} : vector<8x256xf32> to vector<8x221xf32>
    %244 = vector.extract_strided_slice %206 {offsets = [0, 0], sizes = [8, 35], strides = [1, 1]} : vector<8x256xf32> to vector<8x35xf32>
    %245 = tpu.concatenate %243, %244 in 1 : vector<8x221xf32>, vector<8x35xf32> -> vector<8x256xf32>
    %246 = vector.extract_strided_slice %206 {offsets = [0, 36], sizes = [8, 220], strides = [1, 1]} : vector<8x256xf32> to vector<8x220xf32>
    %247 = vector.extract_strided_slice %206 {offsets = [0, 0], sizes = [8, 36], strides = [1, 1]} : vector<8x256xf32> to vector<8x36xf32>
    %248 = tpu.concatenate %246, %247 in 1 : vector<8x220xf32>, vector<8x36xf32> -> vector<8x256xf32>
    %249 = vector.extract_strided_slice %206 {offsets = [0, 48], sizes = [8, 208], strides = [1, 1]} : vector<8x256xf32> to vector<8x208xf32>
    %250 = vector.extract_strided_slice %206 {offsets = [0, 0], sizes = [8, 48], strides = [1, 1]} : vector<8x256xf32> to vector<8x48xf32>
    %251 = tpu.concatenate %249, %250 in 1 : vector<8x208xf32>, vector<8x48xf32> -> vector<8x256xf32>
    %252 = vector.extract_strided_slice %206 {offsets = [0, 49], sizes = [8, 207], strides = [1, 1]} : vector<8x256xf32> to vector<8x207xf32>
    %253 = vector.extract_strided_slice %206 {offsets = [0, 0], sizes = [8, 49], strides = [1, 1]} : vector<8x256xf32> to vector<8x49xf32>
    %254 = tpu.concatenate %252, %253 in 1 : vector<8x207xf32>, vector<8x49xf32> -> vector<8x256xf32>
    %255 = vector.extract_strided_slice %206 {offsets = [0, 50], sizes = [8, 206], strides = [1, 1]} : vector<8x256xf32> to vector<8x206xf32>
    %256 = vector.extract_strided_slice %206 {offsets = [0, 0], sizes = [8, 50], strides = [1, 1]} : vector<8x256xf32> to vector<8x50xf32>
    %257 = tpu.concatenate %255, %256 in 1 : vector<8x206xf32>, vector<8x50xf32> -> vector<8x256xf32>
    %258 = vector.extract_strided_slice %206 {offsets = [0, 51], sizes = [8, 205], strides = [1, 1]} : vector<8x256xf32> to vector<8x205xf32>
    %259 = vector.extract_strided_slice %206 {offsets = [0, 0], sizes = [8, 51], strides = [1, 1]} : vector<8x256xf32> to vector<8x51xf32>
    %260 = tpu.concatenate %258, %259 in 1 : vector<8x205xf32>, vector<8x51xf32> -> vector<8x256xf32>
    %261 = vector.extract_strided_slice %206 {offsets = [0, 52], sizes = [8, 204], strides = [1, 1]} : vector<8x256xf32> to vector<8x204xf32>
    %262 = vector.extract_strided_slice %206 {offsets = [0, 0], sizes = [8, 52], strides = [1, 1]} : vector<8x256xf32> to vector<8x52xf32>
    %263 = tpu.concatenate %261, %262 in 1 : vector<8x204xf32>, vector<8x52xf32> -> vector<8x256xf32>
    %264 = vector.extract_strided_slice %206 {offsets = [0, 64], sizes = [8, 192], strides = [1, 1]} : vector<8x256xf32> to vector<8x192xf32>
    %265 = vector.extract_strided_slice %206 {offsets = [0, 0], sizes = [8, 64], strides = [1, 1]} : vector<8x256xf32> to vector<8x64xf32>
    %266 = tpu.concatenate %264, %265 in 1 : vector<8x192xf32>, vector<8x64xf32> -> vector<8x256xf32>
    %267 = vector.extract_strided_slice %206 {offsets = [0, 65], sizes = [8, 191], strides = [1, 1]} : vector<8x256xf32> to vector<8x191xf32>
    %268 = vector.extract_strided_slice %206 {offsets = [0, 0], sizes = [8, 65], strides = [1, 1]} : vector<8x256xf32> to vector<8x65xf32>
    %269 = tpu.concatenate %267, %268 in 1 : vector<8x191xf32>, vector<8x65xf32> -> vector<8x256xf32>
    %270 = vector.extract_strided_slice %206 {offsets = [0, 66], sizes = [8, 190], strides = [1, 1]} : vector<8x256xf32> to vector<8x190xf32>
    %271 = vector.extract_strided_slice %206 {offsets = [0, 0], sizes = [8, 66], strides = [1, 1]} : vector<8x256xf32> to vector<8x66xf32>
    %272 = tpu.concatenate %270, %271 in 1 : vector<8x190xf32>, vector<8x66xf32> -> vector<8x256xf32>
    %273 = vector.extract_strided_slice %206 {offsets = [0, 67], sizes = [8, 189], strides = [1, 1]} : vector<8x256xf32> to vector<8x189xf32>
    %274 = vector.extract_strided_slice %206 {offsets = [0, 0], sizes = [8, 67], strides = [1, 1]} : vector<8x256xf32> to vector<8x67xf32>
    %275 = tpu.concatenate %273, %274 in 1 : vector<8x189xf32>, vector<8x67xf32> -> vector<8x256xf32>
    %276 = vector.extract_strided_slice %206 {offsets = [0, 68], sizes = [8, 188], strides = [1, 1]} : vector<8x256xf32> to vector<8x188xf32>
    %277 = vector.extract_strided_slice %206 {offsets = [0, 0], sizes = [8, 68], strides = [1, 1]} : vector<8x256xf32> to vector<8x68xf32>
    %278 = tpu.concatenate %276, %277 in 1 : vector<8x188xf32>, vector<8x68xf32> -> vector<8x256xf32>
    %279 = tpu.concatenate %206, %209, %212, %215, %218, %221, %224, %227, %230, %233, %236, %239, %242, %245, %248, %251 in 0 : vector<8x256xf32>, vector<8x256xf32>, vector<8x256xf32>, vector<8x256xf32>, vector<8x256xf32>, vector<8x256xf32>, vector<8x256xf32>, vector<8x256xf32>, vector<8x256xf32>, vector<8x256xf32>, vector<8x256xf32>, vector<8x256xf32>, vector<8x256xf32>, vector<8x256xf32>, vector<8x256xf32>, vector<8x256xf32> -> vector<128x256xf32>
    %280 = tpu.concatenate %254, %257, %260, %263, %266, %269, %272, %275, %278 in 0 : vector<8x256xf32>, vector<8x256xf32>, vector<8x256xf32>, vector<8x256xf32>, vector<8x256xf32>, vector<8x256xf32>, vector<8x256xf32>, vector<8x256xf32>, vector<8x256xf32> -> vector<72x256xf32>
    %281 = tpu.concatenate %279, %280 in 0 : vector<128x256xf32>, vector<72x256xf32> -> vector<200x256xf32>
    %c0_9 = arith.constant 0 : index
    %c0_10 = arith.constant 0 : index
    %282 = vector.load %arg5[%c0_9, %c0_10] : memref<16x200xf32, #tpu.memory_space<vmem>>, vector<16x200xf32>
    %cst_11 = arith.constant dense<0.000000e+00> : vector<16x256xf32>
    %283 = tpu.matmul %282, %281, %cst_11 {dimension_numbers = #tpu.dot_dimension_numbers<[1], [0], [0], [1], [0, 0, 1, 1], [], []>} : vector<16x200xf32>, vector<200x256xf32>, vector<16x256xf32> -> vector<16x256xf32>
    %c0_12 = arith.constant 0 : index
    %c0_13 = arith.constant 0 : index
    %284 = vector.load %arg6[%c0_12, %c0_13] : memref<16x1xf32, #tpu.memory_space<vmem>>, vector<16x1xf32>
    %285 = vector.broadcast %284 : vector<16x1xf32> to vector<16x256xf32>
    %286 = arith.addf %283, %285 : vector<16x256xf32>
    %287 = math.tanh %286 : vector<16x256xf32>
    %c0_14 = arith.constant 0 : index
    %c0_15 = arith.constant 0 : index
    %288 = vector.load %arg7[%c0_14, %c0_15] : memref<256x64xf32, #tpu.memory_space<vmem>>, vector<256x64xf32>
    %cst_16 = arith.constant dense<0.000000e+00> : vector<16x64xf32>
    %289 = tpu.matmul %287, %288, %cst_16 {dimension_numbers = #tpu.dot_dimension_numbers<[1], [0], [0], [1], [0, 0, 1, 1], [], []>} : vector<16x256xf32>, vector<256x64xf32>, vector<16x64xf32> -> vector<16x64xf32>
    %290 = vector.extract_strided_slice %289 {offsets = [0, 0], sizes = [16, 1], strides = [1, 1]} : vector<16x64xf32> to vector<16x1xf32>
    %291 = vector.extract_strided_slice %289 {offsets = [0, 1], sizes = [16, 1], strides = [1, 1]} : vector<16x64xf32> to vector<16x1xf32>
    %292 = vector.extract_strided_slice %289 {offsets = [0, 2], sizes = [16, 1], strides = [1, 1]} : vector<16x64xf32> to vector<16x1xf32>
    %293 = vector.extract_strided_slice %289 {offsets = [0, 3], sizes = [16, 1], strides = [1, 1]} : vector<16x64xf32> to vector<16x1xf32>
    %294 = vector.extract_strided_slice %289 {offsets = [0, 4], sizes = [16, 1], strides = [1, 1]} : vector<16x64xf32> to vector<16x1xf32>
    %295 = vector.extract_strided_slice %289 {offsets = [0, 8], sizes = [16, 1], strides = [1, 1]} : vector<16x64xf32> to vector<16x1xf32>
    %296 = vector.extract_strided_slice %289 {offsets = [0, 9], sizes = [16, 1], strides = [1, 1]} : vector<16x64xf32> to vector<16x1xf32>
    %297 = vector.extract_strided_slice %289 {offsets = [0, 10], sizes = [16, 1], strides = [1, 1]} : vector<16x64xf32> to vector<16x1xf32>
    %298 = vector.extract_strided_slice %289 {offsets = [0, 11], sizes = [16, 1], strides = [1, 1]} : vector<16x64xf32> to vector<16x1xf32>
    %299 = vector.extract_strided_slice %289 {offsets = [0, 12], sizes = [16, 1], strides = [1, 1]} : vector<16x64xf32> to vector<16x1xf32>
    %300 = vector.extract_strided_slice %289 {offsets = [0, 16], sizes = [16, 1], strides = [1, 1]} : vector<16x64xf32> to vector<16x1xf32>
    %301 = vector.extract_strided_slice %289 {offsets = [0, 17], sizes = [16, 1], strides = [1, 1]} : vector<16x64xf32> to vector<16x1xf32>
    %302 = vector.extract_strided_slice %289 {offsets = [0, 18], sizes = [16, 1], strides = [1, 1]} : vector<16x64xf32> to vector<16x1xf32>
    %303 = vector.extract_strided_slice %289 {offsets = [0, 19], sizes = [16, 1], strides = [1, 1]} : vector<16x64xf32> to vector<16x1xf32>
    %304 = vector.extract_strided_slice %289 {offsets = [0, 20], sizes = [16, 1], strides = [1, 1]} : vector<16x64xf32> to vector<16x1xf32>
    %305 = vector.extract_strided_slice %289 {offsets = [0, 24], sizes = [16, 1], strides = [1, 1]} : vector<16x64xf32> to vector<16x1xf32>
    %306 = vector.extract_strided_slice %289 {offsets = [0, 25], sizes = [16, 1], strides = [1, 1]} : vector<16x64xf32> to vector<16x1xf32>
    %307 = vector.extract_strided_slice %289 {offsets = [0, 26], sizes = [16, 1], strides = [1, 1]} : vector<16x64xf32> to vector<16x1xf32>
    %308 = vector.extract_strided_slice %289 {offsets = [0, 27], sizes = [16, 1], strides = [1, 1]} : vector<16x64xf32> to vector<16x1xf32>
    %309 = vector.extract_strided_slice %289 {offsets = [0, 28], sizes = [16, 1], strides = [1, 1]} : vector<16x64xf32> to vector<16x1xf32>
    %310 = vector.extract_strided_slice %289 {offsets = [0, 32], sizes = [16, 1], strides = [1, 1]} : vector<16x64xf32> to vector<16x1xf32>
    %311 = vector.extract_strided_slice %289 {offsets = [0, 33], sizes = [16, 1], strides = [1, 1]} : vector<16x64xf32> to vector<16x1xf32>
    %312 = vector.extract_strided_slice %289 {offsets = [0, 34], sizes = [16, 1], strides = [1, 1]} : vector<16x64xf32> to vector<16x1xf32>
    %313 = vector.extract_strided_slice %289 {offsets = [0, 35], sizes = [16, 1], strides = [1, 1]} : vector<16x64xf32> to vector<16x1xf32>
    %314 = vector.extract_strided_slice %289 {offsets = [0, 36], sizes = [16, 1], strides = [1, 1]} : vector<16x64xf32> to vector<16x1xf32>
    %315 = tpu.concatenate %290, %291, %292, %293, %294, %295, %296, %297, %298, %299, %300, %301, %302, %303, %304, %305 in 0 : vector<16x1xf32>, vector<16x1xf32>, vector<16x1xf32>, vector<16x1xf32>, vector<16x1xf32>, vector<16x1xf32>, vector<16x1xf32>, vector<16x1xf32>, vector<16x1xf32>, vector<16x1xf32>, vector<16x1xf32>, vector<16x1xf32>, vector<16x1xf32>, vector<16x1xf32>, vector<16x1xf32>, vector<16x1xf32> -> vector<256x1xf32>
    %316 = tpu.concatenate %306, %307, %308, %309, %310, %311, %312, %313, %314 in 0 : vector<16x1xf32>, vector<16x1xf32>, vector<16x1xf32>, vector<16x1xf32>, vector<16x1xf32>, vector<16x1xf32>, vector<16x1xf32>, vector<16x1xf32>, vector<16x1xf32> -> vector<144x1xf32>
    %317 = tpu.concatenate %315, %316 in 0 : vector<256x1xf32>, vector<144x1xf32> -> vector<400x1xf32>
    %c0_17 = arith.constant 0 : index
    %c0_18 = arith.constant 0 : index
    %318 = vector.load %arg8[%c0_17, %c0_18] : memref<120x400xf32, #tpu.memory_space<vmem>>, vector<120x400xf32>
    %cst_19 = arith.constant dense<0.000000e+00> : vector<120x1xf32>
    %319 = tpu.matmul %318, %317, %cst_19 {dimension_numbers = #tpu.dot_dimension_numbers<[1], [0], [0], [1], [0, 0, 1, 1], [], []>} : vector<120x400xf32>, vector<400x1xf32>, vector<120x1xf32> -> vector<120x1xf32>
    %c0_20 = arith.constant 0 : index
    %c0_21 = arith.constant 0 : index
    %320 = vector.load %arg9[%c0_20, %c0_21] : memref<120x1xf32, #tpu.memory_space<vmem>>, vector<120x1xf32>
    %321 = arith.addf %319, %320 : vector<120x1xf32>
    %322 = math.tanh %321 : vector<120x1xf32>
    %c0_22 = arith.constant 0 : index
    %c0_23 = arith.constant 0 : index
    %323 = vector.load %arg10[%c0_22, %c0_23] : memref<84x120xf32, #tpu.memory_space<vmem>>, vector<84x120xf32>
    %cst_24 = arith.constant dense<0.000000e+00> : vector<84x1xf32>
    %324 = tpu.matmul %323, %322, %cst_24 {dimension_numbers = #tpu.dot_dimension_numbers<[1], [0], [0], [1], [0, 0, 1, 1], [], []>} : vector<84x120xf32>, vector<120x1xf32>, vector<84x1xf32> -> vector<84x1xf32>
    %c0_25 = arith.constant 0 : index
    %c0_26 = arith.constant 0 : index
    %325 = vector.load %arg11[%c0_25, %c0_26] : memref<84x1xf32, #tpu.memory_space<vmem>>, vector<84x1xf32>
    %326 = arith.addf %324, %325 : vector<84x1xf32>
    %327 = math.tanh %326 : vector<84x1xf32>
    %c0_27 = arith.constant 0 : index
    %c0_28 = arith.constant 0 : index
    %328 = vector.load %arg12[%c0_27, %c0_28] : memref<10x84xf32, #tpu.memory_space<vmem>>, vector<10x84xf32>
    %cst_29 = arith.constant dense<0.000000e+00> : vector<10x1xf32>
    %329 = tpu.matmul %328, %327, %cst_29 {dimension_numbers = #tpu.dot_dimension_numbers<[1], [0], [0], [1], [0, 0, 1, 1], [], []>} : vector<10x84xf32>, vector<84x1xf32>, vector<10x1xf32> -> vector<10x1xf32>
    %c0_30 = arith.constant 0 : index
    %c0_31 = arith.constant 0 : index
    %330 = vector.load %arg13[%c0_30, %c0_31] : memref<10x1xf32, #tpu.memory_space<vmem>>, vector<10x1xf32>
    %331 = arith.addf %329, %330 : vector<10x1xf32>
    %c0_32 = arith.constant 0 : index
    %c0_33 = arith.constant 0 : index
    %c0_34 = arith.constant 0 : index
    %332 = vector.load %arg14[%c0_32, %c0_33, %c0_34] : memref<1x10x1xf32, #tpu.memory_space<vmem>>, vector<1x10x1xf32>
    %333 = vector.shape_cast %332 : vector<1x10x1xf32> to vector<10x1xf32>
    %334 = vector.shape_cast %331 : vector<10x1xf32> to vector<1x10x1xf32>
    tpu.vector_store %arg14[%c0_32, %c0_33, %c0_34], %334 {strides = array<i32>} : memref<1x10x1xf32, #tpu.memory_space<vmem>>, vector<1x10x1xf32>,
    return
  }
  func.func @transform_0(%arg0: i32) -> (i32, i32, i32) {
    %c0_i32 = arith.constant 0 : i32
    %c0_i32_0 = arith.constant 0 : i32
    %c0_i32_1 = arith.constant 0 : i32
    return %arg0, %c0_i32, %c0_i32_0 : i32, i32, i32
  }
  func.func @transform_1(%arg0: i32) -> (i32, i32) {
    %c0_i32 = arith.constant 0 : i32
    %c0_i32_0 = arith.constant 0 : i32
    %c0_i32_1 = arith.constant 0 : i32
    return %c0_i32, %c0_i32_0 : i32, i32
  }
  func.func @transform_2(%arg0: i32) -> (i32, i32) {
    %c0_i32 = arith.constant 0 : i32
    %c0_i32_0 = arith.constant 0 : i32
    %c0_i32_1 = arith.constant 0 : i32
    return %c0_i32, %c0_i32_0 : i32, i32
  }
  func.func @transform_3(%arg0: i32) -> (i32, i32) {
    %c0_i32 = arith.constant 0 : i32
    %c0_i32_0 = arith.constant 0 : i32
    %c0_i32_1 = arith.constant 0 : i32
    return %c0_i32, %c0_i32_0 : i32, i32
  }
  func.func @transform_4(%arg0: i32) -> (i32, i32) {
    %c0_i32 = arith.constant 0 : i32
    %c0_i32_0 = arith.constant 0 : i32
    %c0_i32_1 = arith.constant 0 : i32
    return %c0_i32, %c0_i32_0 : i32, i32
  }
  func.func @transform_5(%arg0: i32) -> (i32, i32) {
    %c0_i32 = arith.constant 0 : i32
    %c0_i32_0 = arith.constant 0 : i32
    %c0_i32_1 = arith.constant 0 : i32
    return %c0_i32, %c0_i32_0 : i32, i32
  }
  func.func @transform_6(%arg0: i32) -> (i32, i32) {
    %c0_i32 = arith.constant 0 : i32
    %c0_i32_0 = arith.constant 0 : i32
    %c0_i32_1 = arith.constant 0 : i32
    return %c0_i32, %c0_i32_0 : i32, i32
  }
  func.func @transform_7(%arg0: i32) -> (i32, i32) {
    %c0_i32 = arith.constant 0 : i32
    %c0_i32_0 = arith.constant 0 : i32
    %c0_i32_1 = arith.constant 0 : i32
    return %c0_i32, %c0_i32_0 : i32, i32
  }
  func.func @transform_8(%arg0: i32) -> (i32, i32) {
    %c0_i32 = arith.constant 0 : i32
    %c0_i32_0 = arith.constant 0 : i32
    %c0_i32_1 = arith.constant 0 : i32
    return %c0_i32, %c0_i32_0 : i32, i32
  }
  func.func @transform_9(%arg0: i32) -> (i32, i32) {
    %c0_i32 = arith.constant 0 : i32
    %c0_i32_0 = arith.constant 0 : i32
    %c0_i32_1 = arith.constant 0 : i32
    return %c0_i32, %c0_i32_0 : i32, i32
  }
  func.func @transform_10(%arg0: i32) -> (i32, i32) {
    %c0_i32 = arith.constant 0 : i32
    %c0_i32_0 = arith.constant 0 : i32
    %c0_i32_1 = arith.constant 0 : i32
    return %c0_i32, %c0_i32_0 : i32, i32
  }
  func.func @transform_11(%arg0: i32) -> (i32, i32) {
    %c0_i32 = arith.constant 0 : i32
    %c0_i32_0 = arith.constant 0 : i32
    %c0_i32_1 = arith.constant 0 : i32
    return %c0_i32, %c0_i32_0 : i32, i32
  }
  func.func @transform_12(%arg0: i32) -> (i32, i32) {
    %c0_i32 = arith.constant 0 : i32
    %c0_i32_0 = arith.constant 0 : i32
    %c0_i32_1 = arith.constant 0 : i32
    return %c0_i32, %c0_i32_0 : i32, i32
  }
  func.func @transform_13(%arg0: i32) -> (i32, i32, i32) {
    %c0_i32 = arith.constant 0 : i32
    %c0_i32_0 = arith.constant 0 : i32
    %c0_i32_1 = arith.constant 0 : i32
    return %arg0, %c0_i32, %c0_i32_0 : i32, i32, i32
  }
}

</mosaic_0001>

<llo_original>
// kernel: lenet5_pallas.1
$region0: #{lenet5_pallas.1}
  #allocation0 [shape = 'u32[]', space=smem, size = 0x4, offset = 0x4, fixed_abs, tag = 'smem constant byte address 0x4 - core index']
  #allocation1 [shape = 'u32[72,128]{1,0:T(1,128)}', space=vmem, size = 0x9000, scoped, tag = 'internal scratch']
  %s0 = inlined_call_operand.vmem [shape: f32[2,1,1024], index: 0, kind: input, shape index: {}]
  %s1 = inlined_call_operand.vmem [shape: f32[8,25], index: 1, kind: input, shape index: {}]
  %s2 = inlined_call_operand.vmem [shape: f32[8,1], index: 2, kind: input, shape index: {}]
  %s3 = inlined_call_operand.hbm [shape: f32[1024,256], index: 3, kind: input, shape index: {}]
  %s4 = inlined_call_operand.vmem [shape: f32[16,200], index: 4, kind: input, shape index: {}]
  %s5 = inlined_call_operand.vmem [shape: f32[16,1], index: 5, kind: input, shape index: {}]
  %s6 = inlined_call_operand.vmem [shape: f32[256,64], index: 6, kind: input, shape index: {}]
  %s7 = inlined_call_operand.vmem [shape: f32[120,400], index: 7, kind: input, shape index: {}]
  %s8 = inlined_call_operand.vmem [shape: f32[120,1], index: 8, kind: input, shape index: {}]
  %s9 = inlined_call_operand.vmem [shape: f32[84,120], index: 9, kind: input, shape index: {}]
  %s10 = inlined_call_operand.vmem [shape: f32[84,1], index: 10, kind: input, shape index: {}]
  %s11 = inlined_call_operand.vmem [shape: f32[10,84], index: 11, kind: input, shape index: {}]
  %s12 = inlined_call_operand.vmem [shape: f32[10,1], index: 12, kind: input, shape index: {}]
  %s13 = inlined_call_operand.vmem [shape: f32[2,10,1], index: 13, kind: output, shape index: {}]
  %s14 = sld [smem:[#allocation0]]
  $region89: #{lenet5_pallas.1} parent=0
    _
  %s16 = ssub.s32 1, %s14
  %s17 = scalar_select 0, %s16, %s14
  $region1: #{lenet5_pallas.1} parent=0
    #allocation2 [shape = 'u8[1048576]{0}', space=vmem, size = 0x100000, scoped, tag = 'input window, operand 3, single buffered']
    #allocation3 [shape = 's32[2]{0}', space=sflag, size = 0x8, scoped, tag = 'scoped memory for lenet5_pallas.1']
    %18 = vsyncpa [#allocation3], 0
    loop: start=0, step=1, limit=4
    $region2: #{lenet5_pallas.1} parent=1 // loop_pre_header
      _
    $region3: #{lenet5_pallas.1} parent=1 // loop_header
      %s20 = sphi 0, %s24
      %p21 = scmp.ge.s32.totalorder %s20, 4
      %s30 = sphi 0, %s32
      %s33 = sphi 0, %s30
      %s34 = sphi 0, %s33
      %s50 = sphi 0, %s34
      %s54 = sphi 0, %s54
      %s56 = sphi 0, %s54
      %s57 = sphi 0, %s56
      %s71 = sphi 0, %s57
      %s75 = sphi 0, %s75
      %s77 = sphi 0, %s75
      %s78 = sphi 0, %s77
      %s92 = sphi 0, %s78
      %s96 = sphi 0, %s96
      %s98 = sphi 0, %s96
      %s99 = sphi 0, %s98
      %s113 = sphi 0, %s99
      %s117 = sphi 0, %s117
      %s119 = sphi 0, %s117
      %s120 = sphi 0, %s119
      %s134 = sphi 0, %s120
      %s138 = sphi 0, %s138
      %s140 = sphi 0, %s138
      %s141 = sphi 0, %s140
      %s155 = sphi 0, %s141
      %s159 = sphi 0, %s159
      %s161 = sphi 0, %s159
      %s162 = sphi 0, %s161
      %s176 = sphi 0, %s162
      %s180 = sphi 0, %s180
      %s182 = sphi 0, %s180
      %s183 = sphi 0, %s182
      %s197 = sphi 0, %s183
      %s201 = sphi 0, %s201
      %s203 = sphi 0, %s201
      %s204 = sphi 0, %s203
      %s218 = sphi 0, %s204
      %s222 = sphi 0, %s222
      %s224 = sphi 0, %s222
      %s225 = sphi 0, %s224
      %s239 = sphi 0, %s225
      %s243 = sphi 0, %s243
      %s245 = sphi 0, %s243
      %s246 = sphi 0, %s245
      %s260 = sphi 0, %s246
      %s264 = sphi 0, %s264
      %s266 = sphi 0, %s264
      %s267 = sphi 0, %s266
      %s281 = sphi 0, %s267
      %s285 = sphi 0, %s285
      %s287 = sphi 0, %s285
      %s288 = sphi 0, %s287
      %s302 = sphi 0, %s288
      %s308 = sphi 0, %s310
      %s311 = sphi 0, %s308
      %s312 = sphi 0, %s311
      %s328 = sphi 0, %s312
    $region4: #{lenet5_pallas.1} parent=1 // loop_header_branch
      %23 = sbr.rel (%p21) target = $region8
    $region5: #{lenet5_pallas.1} parent=1 // loop_body
      %s25 = ssub.s32 %s20, 1
      %s26 = ssub.s32 %s20, 2
      %s27 = sadd.s32 %s20, 1
      %s28 = ssub.s32 %s20, %s27
      %p29 = scmp.eq.s32.totalorder %s28, 0
      %s31 = sadd.s32 %s30, 1
      %s32 = scalar_select %p29, %s30, %s31
      %p35 = pneg %p29
      %p36 = scmp.eq.s32.totalorder %s20, 1
      %p37 = por %p35, %p36
      %p38 = scmp.ne.s32.totalorder %s30, %s33
      %p39 = scmp.eq.s32.totalorder %s20, 0
      %p40 = por %p38, %p39
      %p41 = scmp.ne.s32.totalorder %s30, %s33
      %p42 = scmp.eq.s32.totalorder %s25, 1
      %p43 = por %p41, %p42
      %p44 = scmp.ne.s32.totalorder %s33, %s34
      %p45 = scmp.eq.s32.totalorder %s25, 0
      %p46 = por %p44, %p45
      %p47 = scmp.ne.s32.totalorder %s33, %s34
      %p48 = scmp.eq.s32.totalorder %s26, 1
      %p49 = por %p47, %p48
      %p51 = scmp.ne.s32.totalorder %s34, %s50
      %p52 = scmp.eq.s32.totalorder %s26, 0
      %p53 = por %p51, %p52
      %s55 = sadd.s32 %s54, 1
      %p58 = scmp.eq.s32.totalorder %s20, 1
      %p59 = scmp.ne.s32.totalorder %s54, %s56
      %p60 = scmp.eq.s32.totalorder %s20, 0
      %p61 = por %p59, %p60
      %p62 = scmp.ne.s32.totalorder %s54, %s56
      %p63 = scmp.eq.s32.totalorder %s25, 1
      %p64 = por %p62, %p63
      %p65 = scmp.ne.s32.totalorder %s56, %s57
      %p66 = scmp.eq.s32.totalorder %s25, 0
      %p67 = por %p65, %p66
      %p68 = scmp.ne.s32.totalorder %s56, %s57
      %p69 = scmp.eq.s32.totalorder %s26, 1
      %p70 = por %p68, %p69
      %p72 = scmp.ne.s32.totalorder %s57, %s71
      %p73 = scmp.eq.s32.totalorder %s26, 0
      %p74 = por %p72, %p73
      %s76 = sadd.s32 %s75, 1
      %p79 = scmp.eq.s32.totalorder %s20, 1
      %p80 = scmp.ne.s32.totalorder %s75, %s77
      %p81 = scmp.eq.s32.totalorder %s20, 0
      %p82 = por %p80, %p81
      %p83 = scmp.ne.s32.totalorder %s75, %s77
      %p84 = scmp.eq.s32.totalorder %s25, 1
      %p85 = por %p83, %p84
      %p86 = scmp.ne.s32.totalorder %s77, %s78
      %p87 = scmp.eq.s32.totalorder %s25, 0
      %p88 = por %p86, %p87
      %p89 = scmp.ne.s32.totalorder %s77, %s78
      %p90 = scmp.eq.s32.totalorder %s26, 1
      %p91 = por %p89, %p90
      %p93 = scmp.ne.s32.totalorder %s78, %s92
      %p94 = scmp.eq.s32.totalorder %s26, 0
      %p95 = por %p93, %p94
      %s97 = sadd.s32 %s96, 1
      %p100 = scmp.eq.s32.totalorder %s20, 1
      %p101 = scmp.ne.s32.totalorder %s96, %s98
      %p102 = scmp.eq.s32.totalorder %s20, 0
      %p103 = por %p101, %p102
      %p104 = scmp.ne.s32.totalorder %s96, %s98
      %p105 = scmp.eq.s32.totalorder %s25, 1
      %p106 = por %p104, %p105
      %p107 = scmp.ne.s32.totalorder %s98, %s99
      %p108 = scmp.eq.s32.totalorder %s25, 0
      %p109 = por %p107, %p108
      %p110 = scmp.ne.s32.totalorder %s98, %s99
      %p111 = scmp.eq.s32.totalorder %s26, 1
      %p112 = por %p110, %p111
      %p114 = scmp.ne.s32.totalorder %s99, %s113
      %p115 = scmp.eq.s32.totalorder %s26, 0
      %p116 = por %p114, %p115
      %s118 = sadd.s32 %s117, 1
      %p121 = scmp.eq.s32.totalorder %s20, 1
      %p122 = scmp.ne.s32.totalorder %s117, %s119
      %p123 = scmp.eq.s32.totalorder %s20, 0
      %p124 = por %p122, %p123
      %p125 = scmp.ne.s32.totalorder %s117, %s119
      %p126 = scmp.eq.s32.totalorder %s25, 1
      %p127 = por %p125, %p126
      %p128 = scmp.ne.s32.totalorder %s119, %s120
      %p129 = scmp.eq.s32.totalorder %s25, 0
      %p130 = por %p128, %p129
      %p131 = scmp.ne.s32.totalorder %s119, %s120
      %p132 = scmp.eq.s32.totalorder %s26, 1
      %p133 = por %p131, %p132
      %p135 = scmp.ne.s32.totalorder %s120, %s134
      %p136 = scmp.eq.s32.totalorder %s26, 0
      %p137 = por %p135, %p136
      %s139 = sadd.s32 %s138, 1
      %p142 = scmp.eq.s32.totalorder %s20, 1
      %p143 = scmp.ne.s32.totalorder %s138, %s140
      %p144 = scmp.eq.s32.totalorder %s20, 0
      %p145 = por %p143, %p144
      %p146 = scmp.ne.s32.totalorder %s138, %s140
      %p147 = scmp.eq.s32.totalorder %s25, 1
      %p148 = por %p146, %p147
      %p149 = scmp.ne.s32.totalorder %s140, %s141
      %p150 = scmp.eq.s32.totalorder %s25, 0
      %p151 = por %p149, %p150
      %p152 = scmp.ne.s32.totalorder %s140, %s141
      %p153 = scmp.eq.s32.totalorder %s26, 1
      %p154 = por %p152, %p153
      %p156 = scmp.ne.s32.totalorder %s141, %s155
      %p157 = scmp.eq.s32.totalorder %s26, 0
      %p158 = por %p156, %p157
      %s160 = sadd.s32 %s159, 1
      %p163 = scmp.eq.s32.totalorder %s20, 1
      %p164 = scmp.ne.s32.totalorder %s159, %s161
      %p165 = scmp.eq.s32.totalorder %s20, 0
      %p166 = por %p164, %p165
      %p167 = scmp.ne.s32.totalorder %s159, %s161
      %p168 = scmp.eq.s32.totalorder %s25, 1
      %p169 = por %p167, %p168
      %p170 = scmp.ne.s32.totalorder %s161, %s162
      %p171 = scmp.eq.s32.totalorder %s25, 0
      %p172 = por %p170, %p171
      %p173 = scmp.ne.s32.totalorder %s161, %s162
      %p174 = scmp.eq.s32.totalorder %s26, 1
      %p175 = por %p173, %p174
      %p177 = scmp.ne.s32.totalorder %s162, %s176
      %p178 = scmp.eq.s32.totalorder %s26, 0
      %p179 = por %p177, %p178
      %s181 = sadd.s32 %s180, 1
      %p184 = scmp.eq.s32.totalorder %s20, 1
      %p185 = scmp.ne.s32.totalorder %s180, %s182
      %p186 = scmp.eq.s32.totalorder %s20, 0
      %p187 = por %p185, %p186
      %p188 = scmp.ne.s32.totalorder %s180, %s182
      %p189 = scmp.eq.s32.totalorder %s25, 1
      %p190 = por %p188, %p189
      %p191 = scmp.ne.s32.totalorder %s182, %s183
      %p192 = scmp.eq.s32.totalorder %s25, 0
      %p193 = por %p191, %p192
      %p194 = scmp.ne.s32.totalorder %s182, %s183
      %p195 = scmp.eq.s32.totalorder %s26, 1
      %p196 = por %p194, %p195
      %p198 = scmp.ne.s32.totalorder %s183, %s197
      %p199 = scmp.eq.s32.totalorder %s26, 0
      %p200 = por %p198, %p199
      %s202 = sadd.s32 %s201, 1
      %p205 = scmp.eq.s32.totalorder %s20, 1
      %p206 = scmp.ne.s32.totalorder %s201, %s203
      %p207 = scmp.eq.s32.totalorder %s20, 0
      %p208 = por %p206, %p207
      %p209 = scmp.ne.s32.totalorder %s201, %s203
      %p210 = scmp.eq.s32.totalorder %s25, 1
      %p211 = por %p209, %p210
      %p212 = scmp.ne.s32.totalorder %s203, %s204
      %p213 = scmp.eq.s32.totalorder %s25, 0
      %p214 = por %p212, %p213
      %p215 = scmp.ne.s32.totalorder %s203, %s204
      %p216 = scmp.eq.s32.totalorder %s26, 1
      %p217 = por %p215, %p216
      %p219 = scmp.ne.s32.totalorder %s204, %s218
      %p220 = scmp.eq.s32.totalorder %s26, 0
      %p221 = por %p219, %p220
      %s223 = sadd.s32 %s222, 1
      %p226 = scmp.eq.s32.totalorder %s20, 1
      %p227 = scmp.ne.s32.totalorder %s222, %s224
      %p228 = scmp.eq.s32.totalorder %s20, 0
      %p229 = por %p227, %p228
      %p230 = scmp.ne.s32.totalorder %s222, %s224
      %p231 = scmp.eq.s32.totalorder %s25, 1
      %p232 = por %p230, %p231
      %p233 = scmp.ne.s32.totalorder %s224, %s225
      %p234 = scmp.eq.s32.totalorder %s25, 0
      %p235 = por %p233, %p234
      %p236 = scmp.ne.s32.totalorder %s224, %s225
      %p237 = scmp.eq.s32.totalorder %s26, 1
      %p238 = por %p236, %p237
      %p240 = scmp.ne.s32.totalorder %s225, %s239
      %p241 = scmp.eq.s32.totalorder %s26, 0
      %p242 = por %p240, %p241
      %s244 = sadd.s32 %s243, 1
      %p247 = scmp.eq.s32.totalorder %s20, 1
      %p248 = scmp.ne.s32.totalorder %s243, %s245
      %p249 = scmp.eq.s32.totalorder %s20, 0
      %p250 = por %p248, %p249
      %p251 = scmp.ne.s32.totalorder %s243, %s245
      %p252 = scmp.eq.s32.totalorder %s25, 1
      %p253 = por %p251, %p252
      %p254 = scmp.ne.s32.totalorder %s245, %s246
      %p255 = scmp.eq.s32.totalorder %s25, 0
      %p256 = por %p254, %p255
      %p257 = scmp.ne.s32.totalorder %s245, %s246
      %p258 = scmp.eq.s32.totalorder %s26, 1
      %p259 = por %p257, %p258
      %p261 = scmp.ne.s32.totalorder %s246, %s260
      %p262 = scmp.eq.s32.totalorder %s26, 0
      %p263 = por %p261, %p262
      %s265 = sadd.s32 %s264, 1
      %p268 = scmp.eq.s32.totalorder %s20, 1
      %p269 = scmp.ne.s32.totalorder %s264, %s266
      %p270 = scmp.eq.s32.totalorder %s20, 0
      %p271 = por %p269, %p270
      %p272 = scmp.ne.s32.totalorder %s264, %s266
      %p273 = scmp.eq.s32.totalorder %s25, 1
      %p274 = por %p272, %p273
      %p275 = scmp.ne.s32.totalorder %s266, %s267
      %p276 = scmp.eq.s32.totalorder %s25, 0
      %p277 = por %p275, %p276
      %p278 = scmp.ne.s32.totalorder %s266, %s267
      %p279 = scmp.eq.s32.totalorder %s26, 1
      %p280 = por %p278, %p279
      %p282 = scmp.ne.s32.totalorder %s267, %s281
      %p283 = scmp.eq.s32.totalorder %s26, 0
      %p284 = por %p282, %p283
      %s286 = sadd.s32 %s285, 1
      %p289 = scmp.eq.s32.totalorder %s20, 1
      %p290 = scmp.ne.s32.totalorder %s285, %s287
      %p291 = scmp.eq.s32.totalorder %s20, 0
      %p292 = por %p290, %p291
      %p293 = scmp.ne.s32.totalorder %s285, %s287
      %p294 = scmp.eq.s32.totalorder %s25, 1
      %p295 = por %p293, %p294
      %p296 = scmp.ne.s32.totalorder %s287, %s288
      %p297 = scmp.eq.s32.totalorder %s25, 0
      %p298 = por %p296, %p297
      %p299 = scmp.ne.s32.totalorder %s287, %s288
      %p300 = scmp.eq.s32.totalorder %s26, 1
      %p301 = por %p299, %p300
      %p303 = scmp.ne.s32.totalorder %s288, %s302
      %p304 = scmp.eq.s32.totalorder %s26, 0
      %p305 = por %p303, %p304
      %s306 = ssub.s32 %s20, %s27
      %p307 = scmp.eq.s32.totalorder %s306, 0
      %s309 = sadd.s32 %s308, 1
      %s310 = scalar_select %p307, %s308, %s309
      %p313 = pneg %p307
      %p314 = scmp.eq.s32.totalorder %s20, 1
      %p315 = por %p313, %p314
      %p316 = scmp.ne.s32.totalorder %s308, %s311
      %p317 = scmp.eq.s32.totalorder %s20, 0
      %p318 = por %p316, %p317
      %p319 = scmp.ne.s32.totalorder %s308, %s311
      %p320 = scmp.eq.s32.totalorder %s25, 1
      %p321 = por %p319, %p320
      %p322 = scmp.ne.s32.totalorder %s311, %s312
      %p323 = scmp.eq.s32.totalorder %s25, 0
      %p324 = por %p322, %p323
      %p325 = scmp.ne.s32.totalorder %s311, %s312
      %p326 = scmp.eq.s32.totalorder %s26, 1
      %p327 = por %p325, %p326
      %p329 = scmp.ne.s32.totalorder %s312, %s328
      %p330 = scmp.eq.s32.totalorder %s26, 0
      %p331 = por %p329, %p330
      %p332 = scmp.le.s32.totalorder 1, %s20
      %p333 = scmp.lt.s32.totalorder %s20, 3
      %p334 = pnand %p332, %p333
      %p335 = pneg %p334
      // Predicated region
      $region9: #{lenet5_pallas.1} parent=5 // pred_check
        _
      $region10: #{lenet5_pallas.1} parent=5 // pred_check_branch
        %337 = sbr.rel (%p334) target = $region12
      $region11: #{lenet5_pallas.1} parent=5 // pred_region
        %s338 = ssub.s32 %s20, 1
        // Predicated region
        $region13: #{lenet5_pallas.1} parent=11 // pred_check
          %p339 = pneg %p67
        $region14: #{lenet5_pallas.1} parent=11 // pred_check_branch
          %341 = sbr.rel (%p339) target = $region16
        $region15: #{lenet5_pallas.1} parent=11 // pred_region
          _
        $region16: #{lenet5_pallas.1} parent=11 // pred_fallthru
          _
        // Predicated region
        $region17: #{lenet5_pallas.1} parent=11 // pred_check
          %p342 = pneg %p88
        $region18: #{lenet5_pallas.1} parent=11 // pred_check_branch
          %344 = sbr.rel (%p342) target = $region20
        $region19: #{lenet5_pallas.1} parent=11 // pred_region
          _
        $region20: #{lenet5_pallas.1} parent=11 // pred_fallthru
          _
        // Predicated region
        $region21: #{lenet5_pallas.1} parent=11 // pred_check
          %p345 = pneg %p109
        $region22: #{lenet5_pallas.1} parent=11 // pred_check_branch
          %347 = sbr.rel (%p345) target = $region24
        $region23: #{lenet5_pallas.1} parent=11 // pred_region
          %349 = vsyncadd [#allocation3], 0
          %s350 = sshll.u32 %s3, 4
          %s351 = int_to_ptr.hbm [resolvable:$true] %s350
          %s352 = sshll.u32 [#allocation2], 4
          %s353 = int_to_ptr.vmem [resolvable:$true] %s352
          %358 = dma.hbm_to_vmem [thread:$0]  %s351, 32768, %s353, [#allocation3], 256, 256, 16
        $region24: #{lenet5_pallas.1} parent=11 // pred_fallthru
          _
        // Predicated region
        $region25: #{lenet5_pallas.1} parent=11 // pred_check
          %p359 = pneg %p130
        $region26: #{lenet5_pallas.1} parent=11 // pred_check_branch
          %361 = sbr.rel (%p359) target = $region28
        $region27: #{lenet5_pallas.1} parent=11 // pred_region
          _
        $region28: #{lenet5_pallas.1} parent=11 // pred_fallthru
          _
        // Predicated region
        $region29: #{lenet5_pallas.1} parent=11 // pred_check
          %p362 = pneg %p151
        $region30: #{lenet5_pallas.1} parent=11 // pred_check_branch
          %364 = sbr.rel (%p362) target = $region32
        $region31: #{lenet5_pallas.1} parent=11 // pred_region
          _
        $region32: #{lenet5_pallas.1} parent=11 // pred_fallthru
          _
        // Predicated region
        $region33: #{lenet5_pallas.1} parent=11 // pred_check
          %p365 = pneg %p172
        $region34: #{lenet5_pallas.1} parent=11 // pred_check_branch
          %367 = sbr.rel (%p365) target = $region36
        $region35: #{lenet5_pallas.1} parent=11 // pred_region
          _
        $region36: #{lenet5_pallas.1} parent=11 // pred_fallthru
          _
        // Predicated region
        $region37: #{lenet5_pallas.1} parent=11 // pred_check
          %p368 = pneg %p193
        $region38: #{lenet5_pallas.1} parent=11 // pred_check_branch
          %370 = sbr.rel (%p368) target = $region40
        $region39: #{lenet5_pallas.1} parent=11 // pred_region
          _
        $region40: #{lenet5_pallas.1} parent=11 // pred_fallthru
          _
        // Predicated region
        $region41: #{lenet5_pallas.1} parent=11 // pred_check
          %p371 = pneg %p214
        $region42: #{lenet5_pallas.1} parent=11 // pred_check_branch
          %373 = sbr.rel (%p371) target = $region44
        $region43: #{lenet5_pallas.1} parent=11 // pred_region
          _
        $region44: #{lenet5_pallas.1} parent=11 // pred_fallthru
          _
        // Predicated region
        $region45: #{lenet5_pallas.1} parent=11 // pred_check
          %p374 = pneg %p235
        $region46: #{lenet5_pallas.1} parent=11 // pred_check_branch
          %376 = sbr.rel (%p374) target = $region48
        $region47: #{lenet5_pallas.1} parent=11 // pred_region
          _
        $region48: #{lenet5_pallas.1} parent=11 // pred_fallthru
          _
        // Predicated region
        $region49: #{lenet5_pallas.1} parent=11 // pred_check
          %p377 = pneg %p256
        $region50: #{lenet5_pallas.1} parent=11 // pred_check_branch
          %379 = sbr.rel (%p377) target = $region52
        $region51: #{lenet5_pallas.1} parent=11 // pred_region
          _
        $region52: #{lenet5_pallas.1} parent=11 // pred_fallthru
          _
        // Predicated region
        $region53: #{lenet5_pallas.1} parent=11 // pred_check
          %p380 = pneg %p277
        $region54: #{lenet5_pallas.1} parent=11 // pred_check_branch
          %382 = sbr.rel (%p380) target = $region56
        $region55: #{lenet5_pallas.1} parent=11 // pred_region
          _
        $region56: #{lenet5_pallas.1} parent=11 // pred_fallthru
          _
        // Predicated region
        $region57: #{lenet5_pallas.1} parent=11 // pred_check
          %p383 = pneg %p298
        $region58: #{lenet5_pallas.1} parent=11 // pred_check_branch
          %385 = sbr.rel (%p383) target = $region60
        $region59: #{lenet5_pallas.1} parent=11 // pred_region
          _
        $region60: #{lenet5_pallas.1} parent=11 // pred_fallthru
          _
      $region12: #{lenet5_pallas.1} parent=5 // pred_fallthru
        _
      %p386 = scmp.lt.s32.totalorder %s20, 2
      // Predicated region
      $region61: #{lenet5_pallas.1} parent=5 // pred_check
        %p387 = pneg %p386
      $region62: #{lenet5_pallas.1} parent=5 // pred_check_branch
        %389 = sbr.rel (%p387) target = $region64
      $region63: #{lenet5_pallas.1} parent=5 // pred_region
        // Predicated region
        $region65: #{lenet5_pallas.1} parent=63 // pred_check
          %p390 = pneg %p40
        $region66: #{lenet5_pallas.1} parent=63 // pred_check_branch
          %392 = sbr.rel (%p390) target = $region68
        $region67: #{lenet5_pallas.1} parent=63 // pred_region
          %p393 = scmp.lt.s32.totalorder %s20, 1
          %s394 = scalar_select %p393, %s20, 1
          %s395 = smul.addr %s394, 8
          %s396 = scalar_lea.vmem %s0, %s395
        $region68: #{lenet5_pallas.1} parent=63 // pred_fallthru
          _
      $region64: #{lenet5_pallas.1} parent=5 // pred_fallthru
        _
      %p397 = scmp.le.s32.totalorder 1, %s20
      %p398 = scmp.lt.s32.totalorder %s20, 3
      %p399 = pnand %p397, %p398
      %p400 = pneg %p399
      // Predicated region
      $region69: #{lenet5_pallas.1} parent=5 // pred_check
        _
      $region70: #{lenet5_pallas.1} parent=5 // pred_check_branch
        %402 = sbr.rel (%p399) target = $region72
      $region71: #{lenet5_pallas.1} parent=5 // pred_region
        %s403 = ssub.s32 %s20, 1
        // Predicated region
        $region73: #{lenet5_pallas.1} parent=71 // pred_check
          %p404 = pneg %p109
        $region74: #{lenet5_pallas.1} parent=71 // pred_check_branch
          %406 = sbr.rel (%p404) target = $region76
        $region75: #{lenet5_pallas.1} parent=71 // pred_region
          %408 = dma.done [#allocation3], 32768
        $region76: #{lenet5_pallas.1} parent=71 // pred_fallthru
          _
        %p409 = scmp.lt.s32.totalorder %s25, 1
        %s410 = scalar_select %p409, %s25, 1
        %s411 = smul.addr %s410, 8
        %s412 = scalar_lea.vmem %s0, %s411
        %p413 = pneg %p46
        %p414 = pneg %p43
        %p415 = pneg %p67
        %p416 = pneg %p64
        %p417 = pneg %p88
        %p418 = pneg %p85
        %p419 = pneg %p109
        %p420 = pneg %p106
        %p421 = pneg %p130
        %p422 = pneg %p127
        %p423 = pneg %p151
        %p424 = pneg %p148
        %p425 = pneg %p172
        %p426 = pneg %p169
        %p427 = pneg %p193
        %p428 = pneg %p190
        %p429 = pneg %p214
        %p430 = pneg %p211
        %p431 = pneg %p235
        %p432 = pneg %p232
        %p433 = pneg %p256
        %p434 = pneg %p253
        %p435 = pneg %p277
        %p436 = pneg %p274
        %p437 = pneg %p298
        %p438 = pneg %p295
        %p439 = pneg %p324
        %p440 = pneg %p321
        %p441 = scmp.lt.s32.totalorder %s25, 1
        %s442 = scalar_select %p441, %s25, 1
        %s443 = smul.addr %s442, 2
        %s444 = smul.addr %s443, 8
        %s445 = scalar_lea.vmem %s13, %s444
        %p446 = scmp.lt.s32.totalorder %s25, 1
        %s447 = scalar_select %p446, %s25, 1
        %s448 = smul.addr %s447, 8
        %s449 = scalar_lea.vmem %s0, %s448
        %p450 = scmp.lt.s32.totalorder %s25, 1
        %s451 = scalar_select %p450, %s25, 1
        %s452 = smul.addr %s451, 2
        %s453 = smul.addr %s452, 8
        %s454 = scalar_lea.vmem %s13, %s453
        %v455 = vld [vmem:[%s449] sm:$0xff]
        %v456 = vld [vmem:[%s1] sm:$0xff]
        %458 = vset.pattern.permute.xlu0 0
        %459 = vperm.xlu0 %458, %v456
        %v460 = vpop.permute.xlu0 %459
        %v463 = vperm.slane %v455, 0
        %v464 = vperm.slane %v455, 1
        %v465 = vperm.slane %v455, 2
        %v466 = vperm.slane %v455, 3
        %v467 = vperm.slane %v455, 4
        %v468 = vperm.slane %v455, 5
        %v469 = vperm.slane %v455, 6
        %v470 = vperm.slane %v455, 7
        %v479 = vmul.f32 %v460, %v463
        %v480 = vmul.f32 %v460, %v464
        %v481 = vmul.f32 %v460, %v465
        %v482 = vmul.f32 %v460, %v466
        %v483 = vmul.f32 %v460, %v467
        %v484 = vmul.f32 %v460, %v468
        %v485 = vmul.f32 %v460, %v469
        %v486 = vmul.f32 %v460, %v470
        %v487 = vadd.f32 %v479, 0.0
        %v488 = vadd.f32 %v480, 0.0
        %v489 = vadd.f32 %v481, 0.0
        %v490 = vadd.f32 %v482, 0.0
        %v491 = vadd.f32 %v483, 0.0
        %v492 = vadd.f32 %v484, 0.0
        %v493 = vadd.f32 %v485, 0.0
        %v494 = vadd.f32 %v486, 0.0
        %495 = vrot.lane.b32.xlu0 %v463, 127
        %v496 = vpop.permute.xlu0 %495
        %497 = vrot.lane.b32.xlu0 %v464, 127
        %v498 = vpop.permute.xlu0 %497
        %499 = vrot.lane.b32.xlu0 %v465, 127
        %v500 = vpop.permute.xlu0 %499
        %501 = vrot.lane.b32.xlu0 %v466, 127
        %v502 = vpop.permute.xlu0 %501
        %503 = vrot.lane.b32.xlu0 %v467, 127
        %v504 = vpop.permute.xlu0 %503
        %505 = vrot.lane.b32.xlu0 %v468, 127
        %v506 = vpop.permute.xlu0 %505
        %507 = vrot.lane.b32.xlu0 %v469, 127
        %v508 = vpop.permute.xlu0 %507
        %509 = vrot.lane.b32.xlu0 %v470, 127
        %v510 = vpop.permute.xlu0 %509
        %vm511 = vcmask 1039360
        %v512 = vsel %vm511, %v496, %v498
        %v513 = vsel %vm511, %v498, %v500
        %v514 = vsel %vm511, %v500, %v502
        %v515 = vsel %vm511, %v502, %v504
        %v516 = vsel %vm511, %v504, %v506
        %v517 = vsel %vm511, %v506, %v508
        %v518 = vsel %vm511, %v508, %v510
        %v528 = vsel %vm511, %v510, %v496
        %529 = vset.pattern.permute.xlu0 1
        %530 = vperm.xlu0 %529, %v456
        %v531 = vpop.permute.xlu0 %530
        %v533 = vperm.slane %v512, 0
        %v534 = vperm.slane %v513, 0
        %v535 = vperm.slane %v514, 0
        %v536 = vperm.slane %v515, 0
        %v537 = vperm.slane %v516, 0
        %v538 = vperm.slane %v517, 0
        %v539 = vperm.slane %v518, 0
        %v540 = vperm.slane %v528, 0
        %v541 = vmul.f32 %v531, %v533
        %v542 = vmul.f32 %v531, %v534
        %v543 = vmul.f32 %v531, %v535
        %v544 = vmul.f32 %v531, %v536
        %v545 = vmul.f32 %v531, %v537
        %v546 = vmul.f32 %v531, %v538
        %v547 = vmul.f32 %v531, %v539
        %v548 = vmul.f32 %v531, %v540
        %v549 = vadd.f32 %v487, %v541
        %v550 = vadd.f32 %v488, %v542
        %v551 = vadd.f32 %v489, %v543
        %v552 = vadd.f32 %v490, %v544
        %v553 = vadd.f32 %v491, %v545
        %v554 = vadd.f32 %v492, %v546
        %v555 = vadd.f32 %v493, %v547
        %v556 = vadd.f32 %v494, %v548
        %557 = vrot.lane.b32.xlu0 %v463, 126
        %v558 = vpop.permute.xlu0 %557
        %559 = vrot.lane.b32.xlu0 %v464, 126
        %v560 = vpop.permute.xlu0 %559
        %561 = vrot.lane.b32.xlu0 %v465, 126
        %v562 = vpop.permute.xlu0 %561
        %563 = vrot.lane.b32.xlu0 %v466, 126
        %v564 = vpop.permute.xlu0 %563
        %565 = vrot.lane.b32.xlu0 %v467, 126
        %v566 = vpop.permute.xlu0 %565
        %567 = vrot.lane.b32.xlu0 %v468, 126
        %v568 = vpop.permute.xlu0 %567
        %569 = vrot.lane.b32.xlu0 %v469, 126
        %v570 = vpop.permute.xlu0 %569
        %571 = vrot.lane.b32.xlu0 %v470, 126
        %v572 = vpop.permute.xlu0 %571
        %vm573 = vcmask 1031168
        %v574 = vsel %vm573, %v558, %v560
        %v575 = vsel %vm573, %v560, %v562
        %v576 = vsel %vm573, %v562, %v564
        %v577 = vsel %vm573, %v564, %v566
        %v578 = vsel %vm573, %v566, %v568
        %v579 = vsel %vm573, %v568, %v570
        %v580 = vsel %vm573, %v570, %v572
        %v590 = vsel %vm573, %v572, %v558
        %591 = vset.pattern.permute.xlu0 2
        %592 = vperm.xlu0 %591, %v456
        %v593 = vpop.permute.xlu0 %592
        %v595 = vperm.slane %v574, 0
        %v596 = vperm.slane %v575, 0
        %v597 = vperm.slane %v576, 0
        %v598 = vperm.slane %v577, 0
        %v599 = vperm.slane %v578, 0
        %v600 = vperm.slane %v579, 0
        %v601 = vperm.slane %v580, 0
        %v602 = vperm.slane %v590, 0
        %v603 = vmul.f32 %v593, %v595
        %v604 = vmul.f32 %v593, %v596
        %v605 = vmul.f32 %v593, %v597
        %v606 = vmul.f32 %v593, %v598
        %v607 = vmul.f32 %v593, %v599
        %v608 = vmul.f32 %v593, %v600
        %v609 = vmul.f32 %v593, %v601
        %v610 = vmul.f32 %v593, %v602
        %v611 = vadd.f32 %v549, %v603
        %v612 = vadd.f32 %v550, %v604
        %v613 = vadd.f32 %v551, %v605
        %v614 = vadd.f32 %v552, %v606
        %v615 = vadd.f32 %v553, %v607
        %v616 = vadd.f32 %v554, %v608
        %v617 = vadd.f32 %v555, %v609
        %v618 = vadd.f32 %v556, %v610
        %619 = vrot.lane.b32.xlu0 %v463, 125
        %v620 = vpop.permute.xlu0 %619
        %621 = vrot.lane.b32.xlu0 %v464, 125
        %v622 = vpop.permute.xlu0 %621
        %623 = vrot.lane.b32.xlu0 %v465, 125
        %v624 = vpop.permute.xlu0 %623
        %625 = vrot.lane.b32.xlu0 %v466, 125
        %v626 = vpop.permute.xlu0 %625
        %627 = vrot.lane.b32.xlu0 %v467, 125
        %v628 = vpop.permute.xlu0 %627
        %629 = vrot.lane.b32.xlu0 %v468, 125
        %v630 = vpop.permute.xlu0 %629
        %631 = vrot.lane.b32.xlu0 %v469, 125
        %v632 = vpop.permute.xlu0 %631
        %633 = vrot.lane.b32.xlu0 %v470, 125
        %v634 = vpop.permute.xlu0 %633
        %vm635 = vcmask 1022976
        %v636 = vsel %vm635, %v620, %v622
        %v637 = vsel %vm635, %v622, %v624
        %v638 = vsel %vm635, %v624, %v626
        %v639 = vsel %vm635, %v626, %v628
        %v640 = vsel %vm635, %v628, %v630
        %v641 = vsel %vm635, %v630, %v632
        %v642 = vsel %vm635, %v632, %v634
        %v652 = vsel %vm635, %v634, %v620
        %653 = vset.pattern.permute.xlu0 3
        %654 = vperm.xlu0 %653, %v456
        %v655 = vpop.permute.xlu0 %654
        %v657 = vperm.slane %v636, 0
        %v658 = vperm.slane %v637, 0
        %v659 = vperm.slane %v638, 0
        %v660 = vperm.slane %v639, 0
        %v661 = vperm.slane %v640, 0
        %v662 = vperm.slane %v641, 0
        %v663 = vperm.slane %v642, 0
        %v664 = vperm.slane %v652, 0
        %v665 = vmul.f32 %v655, %v657
        %v666 = vmul.f32 %v655, %v658
        %v667 = vmul.f32 %v655, %v659
        %v668 = vmul.f32 %v655, %v660
        %v669 = vmul.f32 %v655, %v661
        %v670 = vmul.f32 %v655, %v662
        %v671 = vmul.f32 %v655, %v663
        %v672 = vmul.f32 %v655, %v664
        %v673 = vadd.f32 %v611, %v665
        %v674 = vadd.f32 %v612, %v666
        %v675 = vadd.f32 %v613, %v667
        %v676 = vadd.f32 %v614, %v668
        %v677 = vadd.f32 %v615, %v669
        %v678 = vadd.f32 %v616, %v670
        %v679 = vadd.f32 %v617, %v671
        %v680 = vadd.f32 %v618, %v672
        %681 = vrot.lane.b32.xlu0 %v463, 124
        %v682 = vpop.permute.xlu0 %681
        %683 = vrot.lane.b32.xlu0 %v464, 124
        %v684 = vpop.permute.xlu0 %683
        %685 = vrot.lane.b32.xlu0 %v465, 124
        %v686 = vpop.permute.xlu0 %685
        %687 = vrot.lane.b32.xlu0 %v466, 124
        %v688 = vpop.permute.xlu0 %687
        %689 = vrot.lane.b32.xlu0 %v467, 124
        %v690 = vpop.permute.xlu0 %689
        %691 = vrot.lane.b32.xlu0 %v468, 124
        %v692 = vpop.permute.xlu0 %691
        %693 = vrot.lane.b32.xlu0 %v469, 124
        %v694 = vpop.permute.xlu0 %693
        %695 = vrot.lane.b32.xlu0 %v470, 124
        %v696 = vpop.permute.xlu0 %695
        %vm697 = vcmask 1014784
        %v698 = vsel %vm697, %v682, %v684
        %v699 = vsel %vm697, %v684, %v686
        %v700 = vsel %vm697, %v686, %v688
        %v701 = vsel %vm697, %v688, %v690
        %v702 = vsel %vm697, %v690, %v692
        %v703 = vsel %vm697, %v692, %v694
        %v704 = vsel %vm697, %v694, %v696
        %v714 = vsel %vm697, %v696, %v682
        %715 = vset.pattern.permute.xlu0 4
        %716 = vperm.xlu0 %715, %v456
        %v717 = vpop.permute.xlu0 %716
        %v719 = vperm.slane %v698, 0
        %v720 = vperm.slane %v699, 0
        %v721 = vperm.slane %v700, 0
        %v722 = vperm.slane %v701, 0
        %v723 = vperm.slane %v702, 0
        %v724 = vperm.slane %v703, 0
        %v725 = vperm.slane %v704, 0
        %v726 = vperm.slane %v714, 0
        %v727 = vmul.f32 %v717, %v719
        %v728 = vmul.f32 %v717, %v720
        %v729 = vmul.f32 %v717, %v721
        %v730 = vmul.f32 %v717, %v722
        %v731 = vmul.f32 %v717, %v723
        %v732 = vmul.f32 %v717, %v724
        %v733 = vmul.f32 %v717, %v725
        %v734 = vmul.f32 %v717, %v726
        %v735 = vadd.f32 %v673, %v727
        %v736 = vadd.f32 %v674, %v728
        %v737 = vadd.f32 %v675, %v729
        %v738 = vadd.f32 %v676, %v730
        %v739 = vadd.f32 %v677, %v731
        %v740 = vadd.f32 %v678, %v732
        %v741 = vadd.f32 %v679, %v733
        %v742 = vadd.f32 %v680, %v734
        %743 = vrot.lane.b32.xlu0 %v463, 96
        %v744 = vpop.permute.xlu0 %743
        %745 = vrot.lane.b32.xlu0 %v464, 96
        %v746 = vpop.permute.xlu0 %745
        %747 = vrot.lane.b32.xlu0 %v465, 96
        %v748 = vpop.permute.xlu0 %747
        %749 = vrot.lane.b32.xlu0 %v466, 96
        %v750 = vpop.permute.xlu0 %749
        %751 = vrot.lane.b32.xlu0 %v467, 96
        %v752 = vpop.permute.xlu0 %751
        %753 = vrot.lane.b32.xlu0 %v468, 96
        %v754 = vpop.permute.xlu0 %753
        %755 = vrot.lane.b32.xlu0 %v469, 96
        %v756 = vpop.permute.xlu0 %755
        %757 = vrot.lane.b32.xlu0 %v470, 96
        %v758 = vpop.permute.xlu0 %757
        %vm759 = vcmask 785408
        %v760 = vsel %vm759, %v744, %v746
        %v761 = vsel %vm759, %v746, %v748
        %v762 = vsel %vm759, %v748, %v750
        %v763 = vsel %vm759, %v750, %v752
        %v764 = vsel %vm759, %v752, %v754
        %v765 = vsel %vm759, %v754, %v756
        %v766 = vsel %vm759, %v756, %v758
        %v776 = vsel %vm759, %v758, %v744
        %777 = vset.pattern.permute.xlu0 5
        %778 = vperm.xlu0 %777, %v456
        %v779 = vpop.permute.xlu0 %778
        %v781 = vperm.slane %v760, 0
        %v782 = vperm.slane %v761, 0
        %v783 = vperm.slane %v762, 0
        %v784 = vperm.slane %v763, 0
        %v785 = vperm.slane %v764, 0
        %v786 = vperm.slane %v765, 0
        %v787 = vperm.slane %v766, 0
        %v788 = vperm.slane %v776, 0
        %v789 = vmul.f32 %v779, %v781
        %v790 = vmul.f32 %v779, %v782
        %v791 = vmul.f32 %v779, %v783
        %v792 = vmul.f32 %v779, %v784
        %v793 = vmul.f32 %v779, %v785
        %v794 = vmul.f32 %v779, %v786
        %v795 = vmul.f32 %v779, %v787
        %v796 = vmul.f32 %v779, %v788
        %v797 = vadd.f32 %v735, %v789
        %v798 = vadd.f32 %v736, %v790
        %v799 = vadd.f32 %v737, %v791
        %v800 = vadd.f32 %v738, %v792
        %v801 = vadd.f32 %v739, %v793
        %v802 = vadd.f32 %v740, %v794
        %v803 = vadd.f32 %v741, %v795
        %v804 = vadd.f32 %v742, %v796
        %805 = vrot.lane.b32.xlu0 %v463, 95
        %v806 = vpop.permute.xlu0 %805
        %807 = vrot.lane.b32.xlu0 %v464, 95
        %v808 = vpop.permute.xlu0 %807
        %809 = vrot.lane.b32.xlu0 %v465, 95
        %v810 = vpop.permute.xlu0 %809
        %811 = vrot.lane.b32.xlu0 %v466, 95
        %v812 = vpop.permute.xlu0 %811
        %813 = vrot.lane.b32.xlu0 %v467, 95
        %v814 = vpop.permute.xlu0 %813
        %815 = vrot.lane.b32.xlu0 %v468, 95
        %v816 = vpop.permute.xlu0 %815
        %817 = vrot.lane.b32.xlu0 %v469, 95
        %v818 = vpop.permute.xlu0 %817
        %819 = vrot.lane.b32.xlu0 %v470, 95
        %v820 = vpop.permute.xlu0 %819
        %vm821 = vcmask 777216
        %v822 = vsel %vm821, %v806, %v808
        %v823 = vsel %vm821, %v808, %v810
        %v824 = vsel %vm821, %v810, %v812
        %v825 = vsel %vm821, %v812, %v814
        %v826 = vsel %vm821, %v814, %v816
        %v827 = vsel %vm821, %v816, %v818
        %v828 = vsel %vm821, %v818, %v820
        %v838 = vsel %vm821, %v820, %v806
        %839 = vset.pattern.permute.xlu0 6
        %840 = vperm.xlu0 %839, %v456
        %v841 = vpop.permute.xlu0 %840
        %v843 = vperm.slane %v822, 0
        %v844 = vperm.slane %v823, 0
        %v845 = vperm.slane %v824, 0
        %v846 = vperm.slane %v825, 0
        %v847 = vperm.slane %v826, 0
        %v848 = vperm.slane %v827, 0
        %v849 = vperm.slane %v828, 0
        %v850 = vperm.slane %v838, 0
        %v851 = vmul.f32 %v841, %v843
        %v852 = vmul.f32 %v841, %v844
        %v853 = vmul.f32 %v841, %v845
        %v854 = vmul.f32 %v841, %v846
        %v855 = vmul.f32 %v841, %v847
        %v856 = vmul.f32 %v841, %v848
        %v857 = vmul.f32 %v841, %v849
        %v858 = vmul.f32 %v841, %v850
        %v859 = vadd.f32 %v797, %v851
        %v860 = vadd.f32 %v798, %v852
        %v861 = vadd.f32 %v799, %v853
        %v862 = vadd.f32 %v800, %v854
        %v863 = vadd.f32 %v801, %v855
        %v864 = vadd.f32 %v802, %v856
        %v865 = vadd.f32 %v803, %v857
        %v866 = vadd.f32 %v804, %v858
        %867 = vrot.lane.b32.xlu0 %v463, 94
        %v868 = vpop.permute.xlu0 %867
        %869 = vrot.lane.b32.xlu0 %v464, 94
        %v870 = vpop.permute.xlu0 %869
        %871 = vrot.lane.b32.xlu0 %v465, 94
        %v872 = vpop.permute.xlu0 %871
        %873 = vrot.lane.b32.xlu0 %v466, 94
        %v874 = vpop.permute.xlu0 %873
        %875 = vrot.lane.b32.xlu0 %v467, 94
        %v876 = vpop.permute.xlu0 %875
        %877 = vrot.lane.b32.xlu0 %v468, 94
        %v878 = vpop.permute.xlu0 %877
        %879 = vrot.lane.b32.xlu0 %v469, 94
        %v880 = vpop.permute.xlu0 %879
        %881 = vrot.lane.b32.xlu0 %v470, 94
        %v882 = vpop.permute.xlu0 %881
        %vm883 = vcmask 769024
        %v884 = vsel %vm883, %v868, %v870
        %v885 = vsel %vm883, %v870, %v872
        %v886 = vsel %vm883, %v872, %v874
        %v887 = vsel %vm883, %v874, %v876
        %v888 = vsel %vm883, %v876, %v878
        %v889 = vsel %vm883, %v878, %v880
        %v890 = vsel %vm883, %v880, %v882
        %v900 = vsel %vm883, %v882, %v868
        %901 = vset.pattern.permute.xlu0 7
        %902 = vperm.xlu0 %901, %v456
        %v903 = vpop.permute.xlu0 %902
        %v905 = vperm.slane %v884, 0
        %v906 = vperm.slane %v885, 0
        %v907 = vperm.slane %v886, 0
        %v908 = vperm.slane %v887, 0
        %v909 = vperm.slane %v888, 0
        %v910 = vperm.slane %v889, 0
        %v911 = vperm.slane %v890, 0
        %v912 = vperm.slane %v900, 0
        %v913 = vmul.f32 %v903, %v905
        %v914 = vmul.f32 %v903, %v906
        %v915 = vmul.f32 %v903, %v907
        %v916 = vmul.f32 %v903, %v908
        %v917 = vmul.f32 %v903, %v909
        %v918 = vmul.f32 %v903, %v910
        %v919 = vmul.f32 %v903, %v911
        %v920 = vmul.f32 %v903, %v912
        %v921 = vadd.f32 %v859, %v913
        %v922 = vadd.f32 %v860, %v914
        %v923 = vadd.f32 %v861, %v915
        %v924 = vadd.f32 %v862, %v916
        %v925 = vadd.f32 %v863, %v917
        %v926 = vadd.f32 %v864, %v918
        %v927 = vadd.f32 %v865, %v919
        %v928 = vadd.f32 %v866, %v920
        %929 = vrot.lane.b32.xlu0 %v463, 93
        %v930 = vpop.permute.xlu0 %929
        %931 = vrot.lane.b32.xlu0 %v464, 93
        %v932 = vpop.permute.xlu0 %931
        %933 = vrot.lane.b32.xlu0 %v465, 93
        %v934 = vpop.permute.xlu0 %933
        %935 = vrot.lane.b32.xlu0 %v466, 93
        %v936 = vpop.permute.xlu0 %935
        %937 = vrot.lane.b32.xlu0 %v467, 93
        %v938 = vpop.permute.xlu0 %937
        %939 = vrot.lane.b32.xlu0 %v468, 93
        %v940 = vpop.permute.xlu0 %939
        %941 = vrot.lane.b32.xlu0 %v469, 93
        %v942 = vpop.permute.xlu0 %941
        %943 = vrot.lane.b32.xlu0 %v470, 93
        %v944 = vpop.permute.xlu0 %943
        %vm945 = vcmask 760832
        %v946 = vsel %vm945, %v930, %v932
        %v947 = vsel %vm945, %v932, %v934
        %v948 = vsel %vm945, %v934, %v936
        %v949 = vsel %vm945, %v936, %v938
        %v950 = vsel %vm945, %v938, %v940
        %v951 = vsel %vm945, %v940, %v942
        %v952 = vsel %vm945, %v942, %v944
        %v962 = vsel %vm945, %v944, %v930
        %963 = vset.pattern.permute.xlu0 8
        %964 = vperm.xlu0 %963, %v456
        %v965 = vpop.permute.xlu0 %964
        %v967 = vperm.slane %v946, 0
        %v968 = vperm.slane %v947, 0
        %v969 = vperm.slane %v948, 0
        %v970 = vperm.slane %v949, 0
        %v971 = vperm.slane %v950, 0
        %v972 = vperm.slane %v951, 0
        %v973 = vperm.slane %v952, 0
        %v974 = vperm.slane %v962, 0
        %v975 = vmul.f32 %v965, %v967
        %v976 = vmul.f32 %v965, %v968
        %v977 = vmul.f32 %v965, %v969
        %v978 = vmul.f32 %v965, %v970
        %v979 = vmul.f32 %v965, %v971
        %v980 = vmul.f32 %v965, %v972
        %v981 = vmul.f32 %v965, %v973
        %v982 = vmul.f32 %v965, %v974
        %v983 = vadd.f32 %v921, %v975
        %v984 = vadd.f32 %v922, %v976
        %v985 = vadd.f32 %v923, %v977
        %v986 = vadd.f32 %v924, %v978
        %v987 = vadd.f32 %v925, %v979
        %v988 = vadd.f32 %v926, %v980
        %v989 = vadd.f32 %v927, %v981
        %v990 = vadd.f32 %v928, %v982
        %991 = vrot.lane.b32.xlu0 %v463, 92
        %v992 = vpop.permute.xlu0 %991
        %993 = vrot.lane.b32.xlu0 %v464, 92
        %v994 = vpop.permute.xlu0 %993
        %995 = vrot.lane.b32.xlu0 %v465, 92
        %v996 = vpop.permute.xlu0 %995
        %997 = vrot.lane.b32.xlu0 %v466, 92
        %v998 = vpop.permute.xlu0 %997
        %999 = vrot.lane.b32.xlu0 %v467, 92
        %v1000 = vpop.permute.xlu0 %999
        %1001 = vrot.lane.b32.xlu0 %v468, 92
        %v1002 = vpop.permute.xlu0 %1001
        %1003 = vrot.lane.b32.xlu0 %v469, 92
        %v1004 = vpop.permute.xlu0 %1003
        %1005 = vrot.lane.b32.xlu0 %v470, 92
        %v1006 = vpop.permute.xlu0 %1005
        %vm1007 = vcmask 752640
        %v1008 = vsel %vm1007, %v992, %v994
        %v1009 = vsel %vm1007, %v994, %v996
        %v1010 = vsel %vm1007, %v996, %v998
        %v1011 = vsel %vm1007, %v998, %v1000
        %v1012 = vsel %vm1007, %v1000, %v1002
        %v1013 = vsel %vm1007, %v1002, %v1004
        %v1014 = vsel %vm1007, %v1004, %v1006
        %v1024 = vsel %vm1007, %v1006, %v992
        %1025 = vset.pattern.permute.xlu0 9
        %1026 = vperm.xlu0 %1025, %v456
        %v1027 = vpop.permute.xlu0 %1026
        %v1029 = vperm.slane %v1008, 0
        %v1030 = vperm.slane %v1009, 0
        %v1031 = vperm.slane %v1010, 0
        %v1032 = vperm.slane %v1011, 0
        %v1033 = vperm.slane %v1012, 0
        %v1034 = vperm.slane %v1013, 0
        %v1035 = vperm.slane %v1014, 0
        %v1036 = vperm.slane %v1024, 0
        %v1037 = vmul.f32 %v1027, %v1029
        %v1038 = vmul.f32 %v1027, %v1030
        %v1039 = vmul.f32 %v1027, %v1031
        %v1040 = vmul.f32 %v1027, %v1032
        %v1041 = vmul.f32 %v1027, %v1033
        %v1042 = vmul.f32 %v1027, %v1034
        %v1043 = vmul.f32 %v1027, %v1035
        %v1044 = vmul.f32 %v1027, %v1036
        %v1045 = vadd.f32 %v983, %v1037
        %v1046 = vadd.f32 %v984, %v1038
        %v1047 = vadd.f32 %v985, %v1039
        %v1048 = vadd.f32 %v986, %v1040
        %v1049 = vadd.f32 %v987, %v1041
        %v1050 = vadd.f32 %v988, %v1042
        %v1051 = vadd.f32 %v989, %v1043
        %v1052 = vadd.f32 %v990, %v1044
        %1053 = vrot.lane.b32.xlu0 %v463, 64
        %v1054 = vpop.permute.xlu0 %1053
        %1055 = vrot.lane.b32.xlu0 %v464, 64
        %v1056 = vpop.permute.xlu0 %1055
        %1057 = vrot.lane.b32.xlu0 %v465, 64
        %v1058 = vpop.permute.xlu0 %1057
        %1059 = vrot.lane.b32.xlu0 %v466, 64
        %v1060 = vpop.permute.xlu0 %1059
        %1061 = vrot.lane.b32.xlu0 %v467, 64
        %v1062 = vpop.permute.xlu0 %1061
        %1063 = vrot.lane.b32.xlu0 %v468, 64
        %v1064 = vpop.permute.xlu0 %1063
        %1065 = vrot.lane.b32.xlu0 %v469, 64
        %v1066 = vpop.permute.xlu0 %1065
        %1067 = vrot.lane.b32.xlu0 %v470, 64
        %v1068 = vpop.permute.xlu0 %1067
        %vm1069 = vcmask 523264
        %v1070 = vsel %vm1069, %v1054, %v1056
        %v1071 = vsel %vm1069, %v1056, %v1058
        %v1072 = vsel %vm1069, %v1058, %v1060
        %v1073 = vsel %vm1069, %v1060, %v1062
        %v1074 = vsel %vm1069, %v1062, %v1064
        %v1075 = vsel %vm1069, %v1064, %v1066
        %v1076 = vsel %vm1069, %v1066, %v1068
        %v1086 = vsel %vm1069, %v1068, %v1054
        %1087 = vset.pattern.permute.xlu0 10
        %1088 = vperm.xlu0 %1087, %v456
        %v1089 = vpop.permute.xlu0 %1088
        %v1091 = vperm.slane %v1070, 0
        %v1092 = vperm.slane %v1071, 0
        %v1093 = vperm.slane %v1072, 0
        %v1094 = vperm.slane %v1073, 0
        %v1095 = vperm.slane %v1074, 0
        %v1096 = vperm.slane %v1075, 0
        %v1097 = vperm.slane %v1076, 0
        %v1098 = vperm.slane %v1086, 0
        %v1099 = vmul.f32 %v1089, %v1091
        %v1100 = vmul.f32 %v1089, %v1092
        %v1101 = vmul.f32 %v1089, %v1093
        %v1102 = vmul.f32 %v1089, %v1094
        %v1103 = vmul.f32 %v1089, %v1095
        %v1104 = vmul.f32 %v1089, %v1096
        %v1105 = vmul.f32 %v1089, %v1097
        %v1106 = vmul.f32 %v1089, %v1098
        %v1107 = vadd.f32 %v1045, %v1099
        %v1108 = vadd.f32 %v1046, %v1100
        %v1109 = vadd.f32 %v1047, %v1101
        %v1110 = vadd.f32 %v1048, %v1102
        %v1111 = vadd.f32 %v1049, %v1103
        %v1112 = vadd.f32 %v1050, %v1104
        %v1113 = vadd.f32 %v1051, %v1105
        %v1114 = vadd.f32 %v1052, %v1106
        %1115 = vrot.lane.b32.xlu0 %v463, 63
        %v1116 = vpop.permute.xlu0 %1115
        %1117 = vrot.lane.b32.xlu0 %v464, 63
        %v1118 = vpop.permute.xlu0 %1117
        %1119 = vrot.lane.b32.xlu0 %v465, 63
        %v1120 = vpop.permute.xlu0 %1119
        %1121 = vrot.lane.b32.xlu0 %v466, 63
        %v1122 = vpop.permute.xlu0 %1121
        %1123 = vrot.lane.b32.xlu0 %v467, 63
        %v1124 = vpop.permute.xlu0 %1123
        %1125 = vrot.lane.b32.xlu0 %v468, 63
        %v1126 = vpop.permute.xlu0 %1125
        %1127 = vrot.lane.b32.xlu0 %v469, 63
        %v1128 = vpop.permute.xlu0 %1127
        %1129 = vrot.lane.b32.xlu0 %v470, 63
        %v1130 = vpop.permute.xlu0 %1129
        %vm1131 = vcmask 515072
        %v1132 = vsel %vm1131, %v1116, %v1118
        %v1133 = vsel %vm1131, %v1118, %v1120
        %v1134 = vsel %vm1131, %v1120, %v1122
        %v1135 = vsel %vm1131, %v1122, %v1124
        %v1136 = vsel %vm1131, %v1124, %v1126
        %v1137 = vsel %vm1131, %v1126, %v1128
        %v1138 = vsel %vm1131, %v1128, %v1130
        %v1148 = vsel %vm1131, %v1130, %v1116
        %1149 = vset.pattern.permute.xlu0 11
        %1150 = vperm.xlu0 %1149, %v456
        %v1151 = vpop.permute.xlu0 %1150
        %v1153 = vperm.slane %v1132, 0
        %v1154 = vperm.slane %v1133, 0
        %v1155 = vperm.slane %v1134, 0
        %v1156 = vperm.slane %v1135, 0
        %v1157 = vperm.slane %v1136, 0
        %v1158 = vperm.slane %v1137, 0
        %v1159 = vperm.slane %v1138, 0
        %v1160 = vperm.slane %v1148, 0
        %v1161 = vmul.f32 %v1151, %v1153
        %v1162 = vmul.f32 %v1151, %v1154
        %v1163 = vmul.f32 %v1151, %v1155
        %v1164 = vmul.f32 %v1151, %v1156
        %v1165 = vmul.f32 %v1151, %v1157
        %v1166 = vmul.f32 %v1151, %v1158
        %v1167 = vmul.f32 %v1151, %v1159
        %v1168 = vmul.f32 %v1151, %v1160
        %v1169 = vadd.f32 %v1107, %v1161
        %v1170 = vadd.f32 %v1108, %v1162
        %v1171 = vadd.f32 %v1109, %v1163
        %v1172 = vadd.f32 %v1110, %v1164
        %v1173 = vadd.f32 %v1111, %v1165
        %v1174 = vadd.f32 %v1112, %v1166
        %v1175 = vadd.f32 %v1113, %v1167
        %v1176 = vadd.f32 %v1114, %v1168
        %1177 = vrot.lane.b32.xlu0 %v463, 62
        %v1178 = vpop.permute.xlu0 %1177
        %1179 = vrot.lane.b32.xlu0 %v464, 62
        %v1180 = vpop.permute.xlu0 %1179
        %1181 = vrot.lane.b32.xlu0 %v465, 62
        %v1182 = vpop.permute.xlu0 %1181
        %1183 = vrot.lane.b32.xlu0 %v466, 62
        %v1184 = vpop.permute.xlu0 %1183
        %1185 = vrot.lane.b32.xlu0 %v467, 62
        %v1186 = vpop.permute.xlu0 %1185
        %1187 = vrot.lane.b32.xlu0 %v468, 62
        %v1188 = vpop.permute.xlu0 %1187
        %1189 = vrot.lane.b32.xlu0 %v469, 62
        %v1190 = vpop.permute.xlu0 %1189
        %1191 = vrot.lane.b32.xlu0 %v470, 62
        %v1192 = vpop.permute.xlu0 %1191
        %vm1193 = vcmask 506880
        %v1194 = vsel %vm1193, %v1178, %v1180
        %v1195 = vsel %vm1193, %v1180, %v1182
        %v1196 = vsel %vm1193, %v1182, %v1184
        %v1197 = vsel %vm1193, %v1184, %v1186
        %v1198 = vsel %vm1193, %v1186, %v1188
        %v1199 = vsel %vm1193, %v1188, %v1190
        %v1200 = vsel %vm1193, %v1190, %v1192
        %v1210 = vsel %vm1193, %v1192, %v1178
        %1211 = vset.pattern.permute.xlu0 12
        %1212 = vperm.xlu0 %1211, %v456
        %v1213 = vpop.permute.xlu0 %1212
        %v1215 = vperm.slane %v1194, 0
        %v1216 = vperm.slane %v1195, 0
        %v1217 = vperm.slane %v1196, 0
        %v1218 = vperm.slane %v1197, 0
        %v1219 = vperm.slane %v1198, 0
        %v1220 = vperm.slane %v1199, 0
        %v1221 = vperm.slane %v1200, 0
        %v1222 = vperm.slane %v1210, 0
        %v1223 = vmul.f32 %v1213, %v1215
        %v1224 = vmul.f32 %v1213, %v1216
        %v1225 = vmul.f32 %v1213, %v1217
        %v1226 = vmul.f32 %v1213, %v1218
        %v1227 = vmul.f32 %v1213, %v1219
        %v1228 = vmul.f32 %v1213, %v1220
        %v1229 = vmul.f32 %v1213, %v1221
        %v1230 = vmul.f32 %v1213, %v1222
        %v1231 = vadd.f32 %v1169, %v1223
        %v1232 = vadd.f32 %v1170, %v1224
        %v1233 = vadd.f32 %v1171, %v1225
        %v1234 = vadd.f32 %v1172, %v1226
        %v1235 = vadd.f32 %v1173, %v1227
        %v1236 = vadd.f32 %v1174, %v1228
        %v1237 = vadd.f32 %v1175, %v1229
        %v1238 = vadd.f32 %v1176, %v1230
        %1239 = vrot.lane.b32.xlu0 %v463, 61
        %v1240 = vpop.permute.xlu0 %1239
        %1241 = vrot.lane.b32.xlu0 %v464, 61
        %v1242 = vpop.permute.xlu0 %1241
        %1243 = vrot.lane.b32.xlu0 %v465, 61
        %v1244 = vpop.permute.xlu0 %1243
        %1245 = vrot.lane.b32.xlu0 %v466, 61
        %v1246 = vpop.permute.xlu0 %1245
        %1247 = vrot.lane.b32.xlu0 %v467, 61
        %v1248 = vpop.permute.xlu0 %1247
        %1249 = vrot.lane.b32.xlu0 %v468, 61
        %v1250 = vpop.permute.xlu0 %1249
        %1251 = vrot.lane.b32.xlu0 %v469, 61
        %v1252 = vpop.permute.xlu0 %1251
        %1253 = vrot.lane.b32.xlu0 %v470, 61
        %v1254 = vpop.permute.xlu0 %1253
        %vm1255 = vcmask 498688
        %v1256 = vsel %vm1255, %v1240, %v1242
        %v1257 = vsel %vm1255, %v1242, %v1244
        %v1258 = vsel %vm1255, %v1244, %v1246
        %v1259 = vsel %vm1255, %v1246, %v1248
        %v1260 = vsel %vm1255, %v1248, %v1250
        %v1261 = vsel %vm1255, %v1250, %v1252
        %v1262 = vsel %vm1255, %v1252, %v1254
        %v1272 = vsel %vm1255, %v1254, %v1240
        %1273 = vset.pattern.permute.xlu0 13
        %1274 = vperm.xlu0 %1273, %v456
        %v1275 = vpop.permute.xlu0 %1274
        %v1277 = vperm.slane %v1256, 0
        %v1278 = vperm.slane %v1257, 0
        %v1279 = vperm.slane %v1258, 0
        %v1280 = vperm.slane %v1259, 0
        %v1281 = vperm.slane %v1260, 0
        %v1282 = vperm.slane %v1261, 0
        %v1283 = vperm.slane %v1262, 0
        %v1284 = vperm.slane %v1272, 0
        %v1285 = vmul.f32 %v1275, %v1277
        %v1286 = vmul.f32 %v1275, %v1278
        %v1287 = vmul.f32 %v1275, %v1279
        %v1288 = vmul.f32 %v1275, %v1280
        %v1289 = vmul.f32 %v1275, %v1281
        %v1290 = vmul.f32 %v1275, %v1282
        %v1291 = vmul.f32 %v1275, %v1283
        %v1292 = vmul.f32 %v1275, %v1284
        %v1293 = vadd.f32 %v1231, %v1285
        %v1294 = vadd.f32 %v1232, %v1286
        %v1295 = vadd.f32 %v1233, %v1287
        %v1296 = vadd.f32 %v1234, %v1288
        %v1297 = vadd.f32 %v1235, %v1289
        %v1298 = vadd.f32 %v1236, %v1290
        %v1299 = vadd.f32 %v1237, %v1291
        %v1300 = vadd.f32 %v1238, %v1292
        %1301 = vrot.lane.b32.xlu0 %v463, 60
        %v1302 = vpop.permute.xlu0 %1301
        %1303 = vrot.lane.b32.xlu0 %v464, 60
        %v1304 = vpop.permute.xlu0 %1303
        %1305 = vrot.lane.b32.xlu0 %v465, 60
        %v1306 = vpop.permute.xlu0 %1305
        %1307 = vrot.lane.b32.xlu0 %v466, 60
        %v1308 = vpop.permute.xlu0 %1307
        %1309 = vrot.lane.b32.xlu0 %v467, 60
        %v1310 = vpop.permute.xlu0 %1309
        %1311 = vrot.lane.b32.xlu0 %v468, 60
        %v1312 = vpop.permute.xlu0 %1311
        %1313 = vrot.lane.b32.xlu0 %v469, 60
        %v1314 = vpop.permute.xlu0 %1313
        %1315 = vrot.lane.b32.xlu0 %v470, 60
        %v1316 = vpop.permute.xlu0 %1315
        %vm1317 = vcmask 490496
        %v1318 = vsel %vm1317, %v1302, %v1304
        %v1319 = vsel %vm1317, %v1304, %v1306
        %v1320 = vsel %vm1317, %v1306, %v1308
        %v1321 = vsel %vm1317, %v1308, %v1310
        %v1322 = vsel %vm1317, %v1310, %v1312
        %v1323 = vsel %vm1317, %v1312, %v1314
        %v1324 = vsel %vm1317, %v1314, %v1316
        %v1334 = vsel %vm1317, %v1316, %v1302
        %1335 = vset.pattern.permute.xlu0 14
        %1336 = vperm.xlu0 %1335, %v456
        %v1337 = vpop.permute.xlu0 %1336
        %v1339 = vperm.slane %v1318, 0
        %v1340 = vperm.slane %v1319, 0
        %v1341 = vperm.slane %v1320, 0
        %v1342 = vperm.slane %v1321, 0
        %v1343 = vperm.slane %v1322, 0
        %v1344 = vperm.slane %v1323, 0
        %v1345 = vperm.slane %v1324, 0
        %v1346 = vperm.slane %v1334, 0
        %v1347 = vmul.f32 %v1337, %v1339
        %v1348 = vmul.f32 %v1337, %v1340
        %v1349 = vmul.f32 %v1337, %v1341
        %v1350 = vmul.f32 %v1337, %v1342
        %v1351 = vmul.f32 %v1337, %v1343
        %v1352 = vmul.f32 %v1337, %v1344
        %v1353 = vmul.f32 %v1337, %v1345
        %v1354 = vmul.f32 %v1337, %v1346
        %v1355 = vadd.f32 %v1293, %v1347
        %v1356 = vadd.f32 %v1294, %v1348
        %v1357 = vadd.f32 %v1295, %v1349
        %v1358 = vadd.f32 %v1296, %v1350
        %v1359 = vadd.f32 %v1297, %v1351
        %v1360 = vadd.f32 %v1298, %v1352
        %v1361 = vadd.f32 %v1299, %v1353
        %v1362 = vadd.f32 %v1300, %v1354
        %1363 = vrot.lane.b32.xlu0 %v463, 32
        %v1364 = vpop.permute.xlu0 %1363
        %1365 = vrot.lane.b32.xlu0 %v464, 32
        %v1366 = vpop.permute.xlu0 %1365
        %1367 = vrot.lane.b32.xlu0 %v465, 32
        %v1368 = vpop.permute.xlu0 %1367
        %1369 = vrot.lane.b32.xlu0 %v466, 32
        %v1370 = vpop.permute.xlu0 %1369
        %1371 = vrot.lane.b32.xlu0 %v467, 32
        %v1372 = vpop.permute.xlu0 %1371
        %1373 = vrot.lane.b32.xlu0 %v468, 32
        %v1374 = vpop.permute.xlu0 %1373
        %1375 = vrot.lane.b32.xlu0 %v469, 32
        %v1376 = vpop.permute.xlu0 %1375
        %1377 = vrot.lane.b32.xlu0 %v470, 32
        %v1378 = vpop.permute.xlu0 %1377
        %vm1379 = vcmask 261120
        %v1380 = vsel %vm1379, %v1364, %v1366
        %v1381 = vsel %vm1379, %v1366, %v1368
        %v1382 = vsel %vm1379, %v1368, %v1370
        %v1383 = vsel %vm1379, %v1370, %v1372
        %v1384 = vsel %vm1379, %v1372, %v1374
        %v1385 = vsel %vm1379, %v1374, %v1376
        %v1386 = vsel %vm1379, %v1376, %v1378
        %v1396 = vsel %vm1379, %v1378, %v1364
        %1397 = vset.pattern.permute.xlu0 15
        %1398 = vperm.xlu0 %1397, %v456
        %v1399 = vpop.permute.xlu0 %1398
        %v1401 = vperm.slane %v1380, 0
        %v1402 = vperm.slane %v1381, 0
        %v1403 = vperm.slane %v1382, 0
        %v1404 = vperm.slane %v1383, 0
        %v1405 = vperm.slane %v1384, 0
        %v1406 = vperm.slane %v1385, 0
        %v1407 = vperm.slane %v1386, 0
        %v1408 = vperm.slane %v1396, 0
        %v1409 = vmul.f32 %v1399, %v1401
        %v1410 = vmul.f32 %v1399, %v1402
        %v1411 = vmul.f32 %v1399, %v1403
        %v1412 = vmul.f32 %v1399, %v1404
        %v1413 = vmul.f32 %v1399, %v1405
        %v1414 = vmul.f32 %v1399, %v1406
        %v1415 = vmul.f32 %v1399, %v1407
        %v1416 = vmul.f32 %v1399, %v1408
        %v1417 = vadd.f32 %v1355, %v1409
        %v1418 = vadd.f32 %v1356, %v1410
        %v1419 = vadd.f32 %v1357, %v1411
        %v1420 = vadd.f32 %v1358, %v1412
        %v1421 = vadd.f32 %v1359, %v1413
        %v1422 = vadd.f32 %v1360, %v1414
        %v1423 = vadd.f32 %v1361, %v1415
        %v1424 = vadd.f32 %v1362, %v1416
        %1425 = vrot.lane.b32.xlu0 %v463, 31
        %v1426 = vpop.permute.xlu0 %1425
        %1427 = vrot.lane.b32.xlu0 %v464, 31
        %v1428 = vpop.permute.xlu0 %1427
        %1429 = vrot.lane.b32.xlu0 %v465, 31
        %v1430 = vpop.permute.xlu0 %1429
        %1431 = vrot.lane.b32.xlu0 %v466, 31
        %v1432 = vpop.permute.xlu0 %1431
        %1433 = vrot.lane.b32.xlu0 %v467, 31
        %v1434 = vpop.permute.xlu0 %1433
        %1435 = vrot.lane.b32.xlu0 %v468, 31
        %v1436 = vpop.permute.xlu0 %1435
        %1437 = vrot.lane.b32.xlu0 %v469, 31
        %v1438 = vpop.permute.xlu0 %1437
        %1439 = vrot.lane.b32.xlu0 %v470, 31
        %v1440 = vpop.permute.xlu0 %1439
        %vm1441 = vcmask 252928
        %v1442 = vsel %vm1441, %v1426, %v1428
        %v1443 = vsel %vm1441, %v1428, %v1430
        %v1444 = vsel %vm1441, %v1430, %v1432
        %v1445 = vsel %vm1441, %v1432, %v1434
        %v1446 = vsel %vm1441, %v1434, %v1436
        %v1447 = vsel %vm1441, %v1436, %v1438
        %v1448 = vsel %vm1441, %v1438, %v1440
        %v1458 = vsel %vm1441, %v1440, %v1426
        %1459 = vset.pattern.permute.xlu0 16
        %1460 = vperm.xlu0 %1459, %v456
        %v1461 = vpop.permute.xlu0 %1460
        %v1463 = vperm.slane %v1442, 0
        %v1464 = vperm.slane %v1443, 0
        %v1465 = vperm.slane %v1444, 0
        %v1466 = vperm.slane %v1445, 0
        %v1467 = vperm.slane %v1446, 0
        %v1468 = vperm.slane %v1447, 0
        %v1469 = vperm.slane %v1448, 0
        %v1470 = vperm.slane %v1458, 0
        %v1471 = vmul.f32 %v1461, %v1463
        %v1472 = vmul.f32 %v1461, %v1464
        %v1473 = vmul.f32 %v1461, %v1465
        %v1474 = vmul.f32 %v1461, %v1466
        %v1475 = vmul.f32 %v1461, %v1467
        %v1476 = vmul.f32 %v1461, %v1468
        %v1477 = vmul.f32 %v1461, %v1469
        %v1478 = vmul.f32 %v1461, %v1470
        %v1479 = vadd.f32 %v1417, %v1471
        %v1480 = vadd.f32 %v1418, %v1472
        %v1481 = vadd.f32 %v1419, %v1473
        %v1482 = vadd.f32 %v1420, %v1474
        %v1483 = vadd.f32 %v1421, %v1475
        %v1484 = vadd.f32 %v1422, %v1476
        %v1485 = vadd.f32 %v1423, %v1477
        %v1486 = vadd.f32 %v1424, %v1478
        %1487 = vrot.lane.b32.xlu0 %v463, 30
        %v1488 = vpop.permute.xlu0 %1487
        %1489 = vrot.lane.b32.xlu0 %v464, 30
        %v1490 = vpop.permute.xlu0 %1489
        %1491 = vrot.lane.b32.xlu0 %v465, 30
        %v1492 = vpop.permute.xlu0 %1491
        %1493 = vrot.lane.b32.xlu0 %v466, 30
        %v1494 = vpop.permute.xlu0 %1493
        %1495 = vrot.lane.b32.xlu0 %v467, 30
        %v1496 = vpop.permute.xlu0 %1495
        %1497 = vrot.lane.b32.xlu0 %v468, 30
        %v1498 = vpop.permute.xlu0 %1497
        %1499 = vrot.lane.b32.xlu0 %v469, 30
        %v1500 = vpop.permute.xlu0 %1499
        %1501 = vrot.lane.b32.xlu0 %v470, 30
        %v1502 = vpop.permute.xlu0 %1501
        %vm1503 = vcmask 244736
        %v1504 = vsel %vm1503, %v1488, %v1490
        %v1505 = vsel %vm1503, %v1490, %v1492
        %v1506 = vsel %vm1503, %v1492, %v1494
        %v1507 = vsel %vm1503, %v1494, %v1496
        %v1508 = vsel %vm1503, %v1496, %v1498
        %v1509 = vsel %vm1503, %v1498, %v1500
        %v1510 = vsel %vm1503, %v1500, %v1502
        %v1520 = vsel %vm1503, %v1502, %v1488
        %1521 = vset.pattern.permute.xlu0 17
        %1522 = vperm.xlu0 %1521, %v456
        %v1523 = vpop.permute.xlu0 %1522
        %v1525 = vperm.slane %v1504, 0
        %v1526 = vperm.slane %v1505, 0
        %v1527 = vperm.slane %v1506, 0
        %v1528 = vperm.slane %v1507, 0
        %v1529 = vperm.slane %v1508, 0
        %v1530 = vperm.slane %v1509, 0
        %v1531 = vperm.slane %v1510, 0
        %v1532 = vperm.slane %v1520, 0
        %v1533 = vmul.f32 %v1523, %v1525
        %v1534 = vmul.f32 %v1523, %v1526
        %v1535 = vmul.f32 %v1523, %v1527
        %v1536 = vmul.f32 %v1523, %v1528
        %v1537 = vmul.f32 %v1523, %v1529
        %v1538 = vmul.f32 %v1523, %v1530
        %v1539 = vmul.f32 %v1523, %v1531
        %v1540 = vmul.f32 %v1523, %v1532
        %v1541 = vadd.f32 %v1479, %v1533
        %v1542 = vadd.f32 %v1480, %v1534
        %v1543 = vadd.f32 %v1481, %v1535
        %v1544 = vadd.f32 %v1482, %v1536
        %v1545 = vadd.f32 %v1483, %v1537
        %v1546 = vadd.f32 %v1484, %v1538
        %v1547 = vadd.f32 %v1485, %v1539
        %v1548 = vadd.f32 %v1486, %v1540
        %1549 = vrot.lane.b32.xlu0 %v463, 29
        %v1550 = vpop.permute.xlu0 %1549
        %1551 = vrot.lane.b32.xlu0 %v464, 29
        %v1552 = vpop.permute.xlu0 %1551
        %1553 = vrot.lane.b32.xlu0 %v465, 29
        %v1554 = vpop.permute.xlu0 %1553
        %1555 = vrot.lane.b32.xlu0 %v466, 29
        %v1556 = vpop.permute.xlu0 %1555
        %1557 = vrot.lane.b32.xlu0 %v467, 29
        %v1558 = vpop.permute.xlu0 %1557
        %1559 = vrot.lane.b32.xlu0 %v468, 29
        %v1560 = vpop.permute.xlu0 %1559
        %1561 = vrot.lane.b32.xlu0 %v469, 29
        %v1562 = vpop.permute.xlu0 %1561
        %1563 = vrot.lane.b32.xlu0 %v470, 29
        %v1564 = vpop.permute.xlu0 %1563
        %vm1565 = vcmask 236544
        %v1566 = vsel %vm1565, %v1550, %v1552
        %v1567 = vsel %vm1565, %v1552, %v1554
        %v1568 = vsel %vm1565, %v1554, %v1556
        %v1569 = vsel %vm1565, %v1556, %v1558
        %v1570 = vsel %vm1565, %v1558, %v1560
        %v1571 = vsel %vm1565, %v1560, %v1562
        %v1572 = vsel %vm1565, %v1562, %v1564
        %v1582 = vsel %vm1565, %v1564, %v1550
        %1583 = vset.pattern.permute.xlu0 18
        %1584 = vperm.xlu0 %1583, %v456
        %v1585 = vpop.permute.xlu0 %1584
        %v1587 = vperm.slane %v1566, 0
        %v1588 = vperm.slane %v1567, 0
        %v1589 = vperm.slane %v1568, 0
        %v1590 = vperm.slane %v1569, 0
        %v1591 = vperm.slane %v1570, 0
        %v1592 = vperm.slane %v1571, 0
        %v1593 = vperm.slane %v1572, 0
        %v1594 = vperm.slane %v1582, 0
        %v1595 = vmul.f32 %v1585, %v1587
        %v1596 = vmul.f32 %v1585, %v1588
        %v1597 = vmul.f32 %v1585, %v1589
        %v1598 = vmul.f32 %v1585, %v1590
        %v1599 = vmul.f32 %v1585, %v1591
        %v1600 = vmul.f32 %v1585, %v1592
        %v1601 = vmul.f32 %v1585, %v1593
        %v1602 = vmul.f32 %v1585, %v1594
        %v1603 = vadd.f32 %v1541, %v1595
        %v1604 = vadd.f32 %v1542, %v1596
        %v1605 = vadd.f32 %v1543, %v1597
        %v1606 = vadd.f32 %v1544, %v1598
        %v1607 = vadd.f32 %v1545, %v1599
        %v1608 = vadd.f32 %v1546, %v1600
        %v1609 = vadd.f32 %v1547, %v1601
        %v1610 = vadd.f32 %v1548, %v1602
        %1611 = vrot.lane.b32.xlu0 %v463, 28
        %v1612 = vpop.permute.xlu0 %1611
        %1613 = vrot.lane.b32.xlu0 %v464, 28
        %v1614 = vpop.permute.xlu0 %1613
        %1615 = vrot.lane.b32.xlu0 %v465, 28
        %v1616 = vpop.permute.xlu0 %1615
        %1617 = vrot.lane.b32.xlu0 %v466, 28
        %v1618 = vpop.permute.xlu0 %1617
        %1619 = vrot.lane.b32.xlu0 %v467, 28
        %v1620 = vpop.permute.xlu0 %1619
        %1621 = vrot.lane.b32.xlu0 %v468, 28
        %v1622 = vpop.permute.xlu0 %1621
        %1623 = vrot.lane.b32.xlu0 %v469, 28
        %v1624 = vpop.permute.xlu0 %1623
        %1625 = vrot.lane.b32.xlu0 %v470, 28
        %v1626 = vpop.permute.xlu0 %1625
        %vm1627 = vcmask 228352
        %v1628 = vsel %vm1627, %v1612, %v1614
        %v1629 = vsel %vm1627, %v1614, %v1616
        %v1630 = vsel %vm1627, %v1616, %v1618
        %v1631 = vsel %vm1627, %v1618, %v1620
        %v1632 = vsel %vm1627, %v1620, %v1622
        %v1633 = vsel %vm1627, %v1622, %v1624
        %v1634 = vsel %vm1627, %v1624, %v1626
        %v1644 = vsel %vm1627, %v1626, %v1612
        %1645 = vset.pattern.permute.xlu0 19
        %1646 = vperm.xlu0 %1645, %v456
        %v1647 = vpop.permute.xlu0 %1646
        %v1649 = vperm.slane %v1628, 0
        %v1650 = vperm.slane %v1629, 0
        %v1651 = vperm.slane %v1630, 0
        %v1652 = vperm.slane %v1631, 0
        %v1653 = vperm.slane %v1632, 0
        %v1654 = vperm.slane %v1633, 0
        %v1655 = vperm.slane %v1634, 0
        %v1656 = vperm.slane %v1644, 0
        %v1657 = vmul.f32 %v1647, %v1649
        %v1658 = vmul.f32 %v1647, %v1650
        %v1659 = vmul.f32 %v1647, %v1651
        %v1660 = vmul.f32 %v1647, %v1652
        %v1661 = vmul.f32 %v1647, %v1653
        %v1662 = vmul.f32 %v1647, %v1654
        %v1663 = vmul.f32 %v1647, %v1655
        %v1664 = vmul.f32 %v1647, %v1656
        %v1665 = vadd.f32 %v1603, %v1657
        %v1666 = vadd.f32 %v1604, %v1658
        %v1667 = vadd.f32 %v1605, %v1659
        %v1668 = vadd.f32 %v1606, %v1660
        %v1669 = vadd.f32 %v1607, %v1661
        %v1670 = vadd.f32 %v1608, %v1662
        %v1671 = vadd.f32 %v1609, %v1663
        %v1672 = vadd.f32 %v1610, %v1664
        %1673 = vset.pattern.permute.xlu0 20
        %1674 = vperm.xlu0 %1673, %v456
        %v1675 = vpop.permute.xlu0 %1674
        %v1677 = vperm.slane %v464, 0
        %v1678 = vperm.slane %v465, 0
        %v1679 = vperm.slane %v466, 0
        %v1680 = vperm.slane %v467, 0
        %v1681 = vperm.slane %v468, 0
        %v1682 = vperm.slane %v469, 0
        %v1683 = vperm.slane %v470, 0
        %v1684 = vperm.slane %v455, 0
        %v1685 = vmul.f32 %v1675, %v1677
        %v1686 = vmul.f32 %v1675, %v1678
        %v1687 = vmul.f32 %v1675, %v1679
        %v1688 = vmul.f32 %v1675, %v1680
        %v1689 = vmul.f32 %v1675, %v1681
        %v1690 = vmul.f32 %v1675, %v1682
        %v1691 = vmul.f32 %v1675, %v1683
        %v1692 = vmul.f32 %v1675, %v1684
        %v1693 = vadd.f32 %v1665, %v1685
        %v1694 = vadd.f32 %v1666, %v1686
        %v1695 = vadd.f32 %v1667, %v1687
        %v1696 = vadd.f32 %v1668, %v1688
        %v1697 = vadd.f32 %v1669, %v1689
        %v1698 = vadd.f32 %v1670, %v1690
        %v1699 = vadd.f32 %v1671, %v1691
        %v1700 = vadd.f32 %v1672, %v1692
        %1701 = vset.pattern.permute.xlu0 21
        %1702 = vperm.xlu0 %1701, %v456
        %v1703 = vpop.permute.xlu0 %1702
        %v1705 = vmul.f32 %v1703, %v534
        %v1706 = vmul.f32 %v1703, %v535
        %v1707 = vmul.f32 %v1703, %v536
        %v1708 = vmul.f32 %v1703, %v537
        %v1709 = vmul.f32 %v1703, %v538
        %v1710 = vmul.f32 %v1703, %v539
        %v1711 = vmul.f32 %v1703, %v540
        %v1712 = vmul.f32 %v1703, %v533
        %v1713 = vadd.f32 %v1693, %v1705
        %v1714 = vadd.f32 %v1694, %v1706
        %v1715 = vadd.f32 %v1695, %v1707
        %v1716 = vadd.f32 %v1696, %v1708
        %v1717 = vadd.f32 %v1697, %v1709
        %v1718 = vadd.f32 %v1698, %v1710
        %v1719 = vadd.f32 %v1699, %v1711
        %v1720 = vadd.f32 %v1700, %v1712
        %1721 = vset.pattern.permute.xlu0 22
        %1722 = vperm.xlu0 %1721, %v456
        %v1723 = vpop.permute.xlu0 %1722
        %v1725 = vmul.f32 %v1723, %v596
        %v1726 = vmul.f32 %v1723, %v597
        %v1727 = vmul.f32 %v1723, %v598
        %v1728 = vmul.f32 %v1723, %v599
        %v1729 = vmul.f32 %v1723, %v600
        %v1730 = vmul.f32 %v1723, %v601
        %v1731 = vmul.f32 %v1723, %v602
        %v1732 = vmul.f32 %v1723, %v595
        %v1733 = vadd.f32 %v1713, %v1725
        %v1734 = vadd.f32 %v1714, %v1726
        %v1735 = vadd.f32 %v1715, %v1727
        %v1736 = vadd.f32 %v1716, %v1728
        %v1737 = vadd.f32 %v1717, %v1729
        %v1738 = vadd.f32 %v1718, %v1730
        %v1739 = vadd.f32 %v1719, %v1731
        %v1740 = vadd.f32 %v1720, %v1732
        %1741 = vset.pattern.permute.xlu0 23
        %1742 = vperm.xlu0 %1741, %v456
        %v1743 = vpop.permute.xlu0 %1742
        %v1745 = vmul.f32 %v1743, %v658
        %v1746 = vmul.f32 %v1743, %v659
        %v1747 = vmul.f32 %v1743, %v660
        %v1748 = vmul.f32 %v1743, %v661
        %v1749 = vmul.f32 %v1743, %v662
        %v1750 = vmul.f32 %v1743, %v663
        %v1751 = vmul.f32 %v1743, %v664
        %v1752 = vmul.f32 %v1743, %v657
        %v1753 = vadd.f32 %v1733, %v1745
        %v1754 = vadd.f32 %v1734, %v1746
        %v1755 = vadd.f32 %v1735, %v1747
        %v1756 = vadd.f32 %v1736, %v1748
        %v1757 = vadd.f32 %v1737, %v1749
        %v1758 = vadd.f32 %v1738, %v1750
        %v1759 = vadd.f32 %v1739, %v1751
        %v1760 = vadd.f32 %v1740, %v1752
        %1761 = vset.pattern.permute.xlu0 24
        %1762 = vperm.xlu0 %1761, %v456
        %v1763 = vpop.permute.xlu0 %1762
        %v1765 = vmul.f32 %v1763, %v720
        %v1766 = vmul.f32 %v1763, %v721
        %v1767 = vmul.f32 %v1763, %v722
        %v1768 = vmul.f32 %v1763, %v723
        %v1769 = vmul.f32 %v1763, %v724
        %v1770 = vmul.f32 %v1763, %v725
        %v1771 = vmul.f32 %v1763, %v726
        %v1772 = vmul.f32 %v1763, %v719
        %v1773 = vadd.f32 %v1753, %v1765
        %v1774 = vadd.f32 %v1754, %v1766
        %v1775 = vadd.f32 %v1755, %v1767
        %v1776 = vadd.f32 %v1756, %v1768
        %v1777 = vadd.f32 %v1757, %v1769
        %v1778 = vadd.f32 %v1758, %v1770
        %v1779 = vadd.f32 %v1759, %v1771
        %v1780 = vadd.f32 %v1760, %v1772
        %v1781 = vld [vmem:[%s2] sm:$0xff]
        %1783 = vset.pattern.permute.xlu0 0
        %1784 = vperm.xlu0 %1783, %v1781
        %v1785 = vpop.permute.xlu0 %1784
        %v1787 = vadd.f32 %v1773, %v1785
        %v1788 = vadd.f32 %v1774, %v1785
        %v1789 = vadd.f32 %v1775, %v1785
        %v1790 = vadd.f32 %v1776, %v1785
        %v1791 = vadd.f32 %v1777, %v1785
        %v1792 = vadd.f32 %v1778, %v1785
        %v1793 = vadd.f32 %v1779, %v1785
        %v1794 = vadd.f32 %v1780, %v1785
        %v1795 = vtanh.pop %v1787
        %v1796 = vtanh.pop %v1788
        %v1797 = vtanh.pop %v1789
        %v1798 = vtanh.pop %v1790
        %v1799 = vtanh.pop %v1791
        %v1800 = vtanh.pop %v1792
        %v1801 = vtanh.pop %v1793
        %v1802 = vtanh.pop %v1794
        %v1803 = vld [vmem:[#allocation2] sm:$0xff]
        %v1804 = vld [vmem:[#allocation2 + $0x8] sm:$0xff]
        %v1805 = vld [vmem:[#allocation2 + $0x10] sm:$0xff]
        %v1806 = vld [vmem:[#allocation2 + $0x18] sm:$0xff]
        %v1807 = vld [vmem:[#allocation2 + $0x20] sm:$0xff]
        %v1808 = vld [vmem:[#allocation2 + $0x28] sm:$0xff]
        %v1809 = vld [vmem:[#allocation2 + $0x30] sm:$0xff]
        %v1810 = vld [vmem:[#allocation2 + $0x38] sm:$0xff]
        %v1811 = vld [vmem:[#allocation2 + $0x40] sm:$0xff]
        %v1812 = vld [vmem:[#allocation2 + $0x48] sm:$0xff]
        %v1813 = vld [vmem:[#allocation2 + $0x50] sm:$0xff]
        %v1814 = vld [vmem:[#allocation2 + $0x58] sm:$0xff]
        %v1815 = vld [vmem:[#allocation2 + $0x60] sm:$0xff]
        %v1816 = vld [vmem:[#allocation2 + $0x68] sm:$0xff]
        %v1817 = vld [vmem:[#allocation2 + $0x70] sm:$0xff]
        %v1818 = vld [vmem:[#allocation2 + $0x78] sm:$0xff]
        %v1819 = vld [vmem:[#allocation2 + $0x80] sm:$0xff]
        %v1820 = vld [vmem:[#allocation2 + $0x88] sm:$0xff]
        %v1821 = vld [vmem:[#allocation2 + $0x90] sm:$0xff]
        %v1822 = vld [vmem:[#allocation2 + $0x98] sm:$0xff]
        %v1823 = vld [vmem:[#allocation2 + $0xa0] sm:$0xff]
        %v1824 = vld [vmem:[#allocation2 + $0xa8] sm:$0xff]
        %v1825 = vld [vmem:[#allocation2 + $0xb0] sm:$0xff]
        %v1826 = vld [vmem:[#allocation2 + $0xb8] sm:$0xff]
        %v1827 = vld [vmem:[#allocation2 + $0xc0] sm:$0xff]
        %v1828 = vld [vmem:[#allocation2 + $0xc8] sm:$0xff]
        %v1829 = vld [vmem:[#allocation2 + $0xd0] sm:$0xff]
        %v1830 = vld [vmem:[#allocation2 + $0xd8] sm:$0xff]
        %v1831 = vld [vmem:[#allocation2 + $0xe0] sm:$0xff]
        %v1832 = vld [vmem:[#allocation2 + $0xe8] sm:$0xff]
        %v1833 = vld [vmem:[#allocation2 + $0xf0] sm:$0xff]
        %v1834 = vld [vmem:[#allocation2 + $0xf8] sm:$0xff]
        %v1835 = vld [vmem:[#allocation2 + $0x100] sm:$0xff]
        %v1836 = vld [vmem:[#allocation2 + $0x108] sm:$0xff]
        %v1837 = vld [vmem:[#allocation2 + $0x110] sm:$0xff]
        %v1838 = vld [vmem:[#allocation2 + $0x118] sm:$0xff]
        %v1839 = vld [vmem:[#allocation2 + $0x120] sm:$0xff]
        %v1840 = vld [vmem:[#allocation2 + $0x128] sm:$0xff]
        %v1841 = vld [vmem:[#allocation2 + $0x130] sm:$0xff]
        %v1842 = vld [vmem:[#allocation2 + $0x138] sm:$0xff]
        %v1843 = vld [vmem:[#allocation2 + $0x140] sm:$0xff]
        %v1844 = vld [vmem:[#allocation2 + $0x148] sm:$0xff]
        %v1845 = vld [vmem:[#allocation2 + $0x150] sm:$0xff]
        %v1846 = vld [vmem:[#allocation2 + $0x158] sm:$0xff]
        %v1847 = vld [vmem:[#allocation2 + $0x160] sm:$0xff]
        %v1848 = vld [vmem:[#allocation2 + $0x168] sm:$0xff]
        %v1849 = vld [vmem:[#allocation2 + $0x170] sm:$0xff]
        %v1850 = vld [vmem:[#allocation2 + $0x178] sm:$0xff]
        %v1851 = vld [vmem:[#allocation2 + $0x180] sm:$0xff]
        %v1852 = vld [vmem:[#allocation2 + $0x188] sm:$0xff]
        %v1853 = vld [vmem:[#allocation2 + $0x190] sm:$0xff]
        %v1854 = vld [vmem:[#allocation2 + $0x198] sm:$0xff]
        %v1855 = vld [vmem:[#allocation2 + $0x1a0] sm:$0xff]
        %v1856 = vld [vmem:[#allocation2 + $0x1a8] sm:$0xff]
        %v1857 = vld [vmem:[#allocation2 + $0x1b0] sm:$0xff]
        %v1858 = vld [vmem:[#allocation2 + $0x1b8] sm:$0xff]
        %v1859 = vld [vmem:[#allocation2 + $0x1c0] sm:$0xff]
        %v1860 = vld [vmem:[#allocation2 + $0x1c8] sm:$0xff]
        %v1861 = vld [vmem:[#allocation2 + $0x1d0] sm:$0xff]
        %v1862 = vld [vmem:[#allocation2 + $0x1d8] sm:$0xff]
        %v1863 = vld [vmem:[#allocation2 + $0x1e0] sm:$0xff]
        %v1864 = vld [vmem:[#allocation2 + $0x1e8] sm:$0xff]
        %v1865 = vld [vmem:[#allocation2 + $0x1f0] sm:$0xff]
        %v1866 = vld [vmem:[#allocation2 + $0x1f8] sm:$0xff]
        %v1867 = vld [vmem:[#allocation2 + $0x200] sm:$0xff]
        %v1868 = vld [vmem:[#allocation2 + $0x208] sm:$0xff]
        %v1869 = vld [vmem:[#allocation2 + $0x210] sm:$0xff]
        %v1870 = vld [vmem:[#allocation2 + $0x218] sm:$0xff]
        %v1871 = vld [vmem:[#allocation2 + $0x220] sm:$0xff]
        %v1872 = vld [vmem:[#allocation2 + $0x228] sm:$0xff]
        %v1873 = vld [vmem:[#allocation2 + $0x230] sm:$0xff]
        %v1874 = vld [vmem:[#allocation2 + $0x238] sm:$0xff]
        %v1875 = vld [vmem:[#allocation2 + $0x240] sm:$0xff]
        %v1876 = vld [vmem:[#allocation2 + $0x248] sm:$0xff]
        %v1877 = vld [vmem:[#allocation2 + $0x250] sm:$0xff]
        %v1878 = vld [vmem:[#allocation2 + $0x258] sm:$0xff]
        %v1879 = vld [vmem:[#allocation2 + $0x260] sm:$0xff]
        %v1880 = vld [vmem:[#allocation2 + $0x268] sm:$0xff]
        %v1881 = vld [vmem:[#allocation2 + $0x270] sm:$0xff]
        %v1882 = vld [vmem:[#allocation2 + $0x278] sm:$0xff]
        %v1883 = vld [vmem:[#allocation2 + $0x280] sm:$0xff]
        %v1884 = vld [vmem:[#allocation2 + $0x288] sm:$0xff]
        %v1885 = vld [vmem:[#allocation2 + $0x290] sm:$0xff]
        %v1886 = vld [vmem:[#allocation2 + $0x298] sm:$0xff]
        %v1887 = vld [vmem:[#allocation2 + $0x2a0] sm:$0xff]
        %v1888 = vld [vmem:[#allocation2 + $0x2a8] sm:$0xff]
        %v1889 = vld [vmem:[#allocation2 + $0x2b0] sm:$0xff]
        %v1890 = vld [vmem:[#allocation2 + $0x2b8] sm:$0xff]
        %v1891 = vld [vmem:[#allocation2 + $0x2c0] sm:$0xff]
        %v1892 = vld [vmem:[#allocation2 + $0x2c8] sm:$0xff]
        %v1893 = vld [vmem:[#allocation2 + $0x2d0] sm:$0xff]
        %v1894 = vld [vmem:[#allocation2 + $0x2d8] sm:$0xff]
        %v1895 = vld [vmem:[#allocation2 + $0x2e0] sm:$0xff]
        %v1896 = vld [vmem:[#allocation2 + $0x2e8] sm:$0xff]
        %v1897 = vld [vmem:[#allocation2 + $0x2f0] sm:$0xff]
        %v1898 = vld [vmem:[#allocation2 + $0x2f8] sm:$0xff]
        %v1899 = vld [vmem:[#allocation2 + $0x300] sm:$0xff]
        %v1900 = vld [vmem:[#allocation2 + $0x308] sm:$0xff]
        %v1901 = vld [vmem:[#allocation2 + $0x310] sm:$0xff]
        %v1902 = vld [vmem:[#allocation2 + $0x318] sm:$0xff]
        %v1903 = vld [vmem:[#allocation2 + $0x320] sm:$0xff]
        %v1904 = vld [vmem:[#allocation2 + $0x328] sm:$0xff]
        %v1905 = vld [vmem:[#allocation2 + $0x330] sm:$0xff]
        %v1906 = vld [vmem:[#allocation2 + $0x338] sm:$0xff]
        %v1907 = vld [vmem:[#allocation2 + $0x340] sm:$0xff]
        %v1908 = vld [vmem:[#allocation2 + $0x348] sm:$0xff]
        %v1909 = vld [vmem:[#allocation2 + $0x350] sm:$0xff]
        %v1910 = vld [vmem:[#allocation2 + $0x358] sm:$0xff]
        %v1911 = vld [vmem:[#allocation2 + $0x360] sm:$0xff]
        %v1912 = vld [vmem:[#allocation2 + $0x368] sm:$0xff]
        %v1913 = vld [vmem:[#allocation2 + $0x370] sm:$0xff]
        %v1914 = vld [vmem:[#allocation2 + $0x378] sm:$0xff]
        %v1915 = vld [vmem:[#allocation2 + $0x380] sm:$0xff]
        %v1916 = vld [vmem:[#allocation2 + $0x388] sm:$0xff]
        %v1917 = vld [vmem:[#allocation2 + $0x390] sm:$0xff]
        %v1918 = vld [vmem:[#allocation2 + $0x398] sm:$0xff]
        %v1919 = vld [vmem:[#allocation2 + $0x3a0] sm:$0xff]
        %v1920 = vld [vmem:[#allocation2 + $0x3a8] sm:$0xff]
        %v1921 = vld [vmem:[#allocation2 + $0x3b0] sm:$0xff]
        %v1922 = vld [vmem:[#allocation2 + $0x3b8] sm:$0xff]
        %v1923 = vld [vmem:[#allocation2 + $0x3c0] sm:$0xff]
        %v1924 = vld [vmem:[#allocation2 + $0x3c8] sm:$0xff]
        %v1925 = vld [vmem:[#allocation2 + $0x3d0] sm:$0xff]
        %v1926 = vld [vmem:[#allocation2 + $0x3d8] sm:$0xff]
        %v1927 = vld [vmem:[#allocation2 + $0x3e0] sm:$0xff]
        %v1928 = vld [vmem:[#allocation2 + $0x3e8] sm:$0xff]
        %v1929 = vld [vmem:[#allocation2 + $0x3f0] sm:$0xff]
        %v1930 = vld [vmem:[#allocation2 + $0x3f8] sm:$0xff]
        %v1931 = vld [vmem:[#allocation2 + $0x400] sm:$0xff]
        %v1932 = vld [vmem:[#allocation2 + $0x408] sm:$0xff]
        %v1933 = vld [vmem:[#allocation2 + $0x410] sm:$0xff]
        %v1934 = vld [vmem:[#allocation2 + $0x418] sm:$0xff]
        %v1935 = vld [vmem:[#allocation2 + $0x420] sm:$0xff]
        %v1936 = vld [vmem:[#allocation2 + $0x428] sm:$0xff]
        %v1937 = vld [vmem:[#allocation2 + $0x430] sm:$0xff]
        %v1938 = vld [vmem:[#allocation2 + $0x438] sm:$0xff]
        %v1939 = vld [vmem:[#allocation2 + $0x440] sm:$0xff]
        %v1940 = vld [vmem:[#allocation2 + $0x448] sm:$0xff]
        %v1941 = vld [vmem:[#allocation2 + $0x450] sm:$0xff]
        %v1942 = vld [vmem:[#allocation2 + $0x458] sm:$0xff]
        %v1943 = vld [vmem:[#allocation2 + $0x460] sm:$0xff]
        %v1944 = vld [vmem:[#allocation2 + $0x468] sm:$0xff]
        %v1945 = vld [vmem:[#allocation2 + $0x470] sm:$0xff]
        %v1946 = vld [vmem:[#allocation2 + $0x478] sm:$0xff]
        %v1947 = vld [vmem:[#allocation2 + $0x480] sm:$0xff]
        %v1948 = vld [vmem:[#allocation2 + $0x488] sm:$0xff]
        %v1949 = vld [vmem:[#allocation2 + $0x490] sm:$0xff]
        %v1950 = vld [vmem:[#allocation2 + $0x498] sm:$0xff]
        %v1951 = vld [vmem:[#allocation2 + $0x4a0] sm:$0xff]
        %v1952 = vld [vmem:[#allocation2 + $0x4a8] sm:$0xff]
        %v1953 = vld [vmem:[#allocation2 + $0x4b0] sm:$0xff]
        %v1954 = vld [vmem:[#allocation2 + $0x4b8] sm:$0xff]
        %v1955 = vld [vmem:[#allocation2 + $0x4c0] sm:$0xff]
        %v1956 = vld [vmem:[#allocation2 + $0x4c8] sm:$0xff]
        %v1957 = vld [vmem:[#allocation2 + $0x4d0] sm:$0xff]
        %v1958 = vld [vmem:[#allocation2 + $0x4d8] sm:$0xff]
        %v1959 = vld [vmem:[#allocation2 + $0x4e0] sm:$0xff]
        %v1960 = vld [vmem:[#allocation2 + $0x4e8] sm:$0xff]
        %v1961 = vld [vmem:[#allocation2 + $0x4f0] sm:$0xff]
        %v1962 = vld [vmem:[#allocation2 + $0x4f8] sm:$0xff]
        %v1963 = vld [vmem:[#allocation2 + $0x500] sm:$0xff]
        %v1964 = vld [vmem:[#allocation2 + $0x508] sm:$0xff]
        %v1965 = vld [vmem:[#allocation2 + $0x510] sm:$0xff]
        %v1966 = vld [vmem:[#allocation2 + $0x518] sm:$0xff]
        %v1967 = vld [vmem:[#allocation2 + $0x520] sm:$0xff]
        %v1968 = vld [vmem:[#allocation2 + $0x528] sm:$0xff]
        %v1969 = vld [vmem:[#allocation2 + $0x530] sm:$0xff]
        %v1970 = vld [vmem:[#allocation2 + $0x538] sm:$0xff]
        %v1971 = vld [vmem:[#allocation2 + $0x540] sm:$0xff]
        %v1972 = vld [vmem:[#allocation2 + $0x548] sm:$0xff]
        %v1973 = vld [vmem:[#allocation2 + $0x550] sm:$0xff]
        %v1974 = vld [vmem:[#allocation2 + $0x558] sm:$0xff]
        %v1975 = vld [vmem:[#allocation2 + $0x560] sm:$0xff]
        %v1976 = vld [vmem:[#allocation2 + $0x568] sm:$0xff]
        %v1977 = vld [vmem:[#allocation2 + $0x570] sm:$0xff]
        %v1978 = vld [vmem:[#allocation2 + $0x578] sm:$0xff]
        %v1979 = vld [vmem:[#allocation2 + $0x580] sm:$0xff]
        %v1980 = vld [vmem:[#allocation2 + $0x588] sm:$0xff]
        %v1981 = vld [vmem:[#allocation2 + $0x590] sm:$0xff]
        %v1982 = vld [vmem:[#allocation2 + $0x598] sm:$0xff]
        %v1983 = vld [vmem:[#allocation2 + $0x5a0] sm:$0xff]
        %v1984 = vld [vmem:[#allocation2 + $0x5a8] sm:$0xff]
        %v1985 = vld [vmem:[#allocation2 + $0x5b0] sm:$0xff]
        %v1986 = vld [vmem:[#allocation2 + $0x5b8] sm:$0xff]
        %v1987 = vld [vmem:[#allocation2 + $0x5c0] sm:$0xff]
        %v1988 = vld [vmem:[#allocation2 + $0x5c8] sm:$0xff]
        %v1989 = vld [vmem:[#allocation2 + $0x5d0] sm:$0xff]
        %v1990 = vld [vmem:[#allocation2 + $0x5d8] sm:$0xff]
        %v1991 = vld [vmem:[#allocation2 + $0x5e0] sm:$0xff]
        %v1992 = vld [vmem:[#allocation2 + $0x5e8] sm:$0xff]
        %v1993 = vld [vmem:[#allocation2 + $0x5f0] sm:$0xff]
        %v1994 = vld [vmem:[#allocation2 + $0x5f8] sm:$0xff]
        %v1995 = vld [vmem:[#allocation2 + $0x600] sm:$0xff]
        %v1996 = vld [vmem:[#allocation2 + $0x608] sm:$0xff]
        %v1997 = vld [vmem:[#allocation2 + $0x610] sm:$0xff]
        %v1998 = vld [vmem:[#allocation2 + $0x618] sm:$0xff]
        %v1999 = vld [vmem:[#allocation2 + $0x620] sm:$0xff]
        %v2000 = vld [vmem:[#allocation2 + $0x628] sm:$0xff]
        %v2001 = vld [vmem:[#allocation2 + $0x630] sm:$0xff]
        %v2002 = vld [vmem:[#allocation2 + $0x638] sm:$0xff]
        %v2003 = vld [vmem:[#allocation2 + $0x640] sm:$0xff]
        %v2004 = vld [vmem:[#allocation2 + $0x648] sm:$0xff]
        %v2005 = vld [vmem:[#allocation2 + $0x650] sm:$0xff]
        %v2006 = vld [vmem:[#allocation2 + $0x658] sm:$0xff]
        %v2007 = vld [vmem:[#allocation2 + $0x660] sm:$0xff]
        %v2008 = vld [vmem:[#allocation2 + $0x668] sm:$0xff]
        %v2009 = vld [vmem:[#allocation2 + $0x670] sm:$0xff]
        %v2010 = vld [vmem:[#allocation2 + $0x678] sm:$0xff]
        %v2011 = vld [vmem:[#allocation2 + $0x680] sm:$0xff]
        %v2012 = vld [vmem:[#allocation2 + $0x688] sm:$0xff]
        %v2013 = vld [vmem:[#allocation2 + $0x690] sm:$0xff]
        %v2014 = vld [vmem:[#allocation2 + $0x698] sm:$0xff]
        %v2015 = vld [vmem:[#allocation2 + $0x6a0] sm:$0xff]
        %v2016 = vld [vmem:[#allocation2 + $0x6a8] sm:$0xff]
        %v2017 = vld [vmem:[#allocation2 + $0x6b0] sm:$0xff]
        %v2018 = vld [vmem:[#allocation2 + $0x6b8] sm:$0xff]
        %v2019 = vld [vmem:[#allocation2 + $0x6c0] sm:$0xff]
        %v2020 = vld [vmem:[#allocation2 + $0x6c8] sm:$0xff]
        %v2021 = vld [vmem:[#allocation2 + $0x6d0] sm:$0xff]
        %v2022 = vld [vmem:[#allocation2 + $0x6d8] sm:$0xff]
        %v2023 = vld [vmem:[#allocation2 + $0x6e0] sm:$0xff]
        %v2024 = vld [vmem:[#allocation2 + $0x6e8] sm:$0xff]
        %v2025 = vld [vmem:[#allocation2 + $0x6f0] sm:$0xff]
        %v2026 = vld [vmem:[#allocation2 + $0x6f8] sm:$0xff]
        %v2027 = vld [vmem:[#allocation2 + $0x700] sm:$0xff]
        %v2028 = vld [vmem:[#allocation2 + $0x708] sm:$0xff]
        %v2029 = vld [vmem:[#allocation2 + $0x710] sm:$0xff]
        %v2030 = vld [vmem:[#allocation2 + $0x718] sm:$0xff]
        %v2031 = vld [vmem:[#allocation2 + $0x720] sm:$0xff]
        %v2032 = vld [vmem:[#allocation2 + $0x728] sm:$0xff]
        %v2033 = vld [vmem:[#allocation2 + $0x730] sm:$0xff]
        %v2034 = vld [vmem:[#allocation2 + $0x738] sm:$0xff]
        %v2035 = vld [vmem:[#allocation2 + $0x740] sm:$0xff]
        %v2036 = vld [vmem:[#allocation2 + $0x748] sm:$0xff]
        %v2037 = vld [vmem:[#allocation2 + $0x750] sm:$0xff]
        %v2038 = vld [vmem:[#allocation2 + $0x758] sm:$0xff]
        %v2039 = vld [vmem:[#allocation2 + $0x760] sm:$0xff]
        %v2040 = vld [vmem:[#allocation2 + $0x768] sm:$0xff]
        %v2041 = vld [vmem:[#allocation2 + $0x770] sm:$0xff]
        %v2042 = vld [vmem:[#allocation2 + $0x778] sm:$0xff]
        %v2043 = vld [vmem:[#allocation2 + $0x780] sm:$0xff]
        %v2044 = vld [vmem:[#allocation2 + $0x788] sm:$0xff]
        %v2045 = vld [vmem:[#allocation2 + $0x790] sm:$0xff]
        %v2046 = vld [vmem:[#allocation2 + $0x798] sm:$0xff]
        %v2047 = vld [vmem:[#allocation2 + $0x7a0] sm:$0xff]
        %v2048 = vld [vmem:[#allocation2 + $0x7a8] sm:$0xff]
        %v2049 = vld [vmem:[#allocation2 + $0x7b0] sm:$0xff]
        %v2050 = vld [vmem:[#allocation2 + $0x7b8] sm:$0xff]
        %v2051 = vld [vmem:[#allocation2 + $0x7c0] sm:$0xff]
        %v2052 = vld [vmem:[#allocation2 + $0x7c8] sm:$0xff]
        %v2053 = vld [vmem:[#allocation2 + $0x7d0] sm:$0xff]
        %v2054 = vld [vmem:[#allocation2 + $0x7d8] sm:$0xff]
        %v2055 = vld [vmem:[#allocation2 + $0x7e0] sm:$0xff]
        %v2056 = vld [vmem:[#allocation2 + $0x7e8] sm:$0xff]
        %v2057 = vld [vmem:[#allocation2 + $0x7f0] sm:$0xff]
        %v2058 = vld [vmem:[#allocation2 + $0x7f8] sm:$0xff]
        %2059 = vmatpush.msra.mxu0 %v1833
        %2060 = vmatpush.msra.mxu0 %v1831
        %2061 = vmatpush.msra.mxu0 %v1829
        %2062 = vmatpush.msra.mxu0 %v1827
        %2063 = vmatpush.msra.mxu0 %v1825
        %2064 = vmatpush.msra.mxu0 %v1823
        %2065 = vmatpush.msra.mxu0 %v1821
        %2066 = vmatpush.msra.mxu0 %v1819
        %2067 = vmatpush.msra.mxu0 %v1817
        %2068 = vmatpush.msra.mxu0 %v1815
        %2069 = vmatpush.msra.mxu0 %v1813
        %2070 = vmatpush.msra.mxu0 %v1811
        %2071 = vmatpush.msra.mxu0 %v1809
        %2072 = vmatpush.msra.mxu0 %v1807
        %2073 = vmatpush.msra.mxu0 %v1805
        %2074 = vmatpush.msra.mxu0 %v1803
        %2075 = vmatmul.f32.gmra.mxu0 %v1795
        %v2076 = vpop.f32.mrf.mxu0
        %v2077 = vadd.f32 0.0, %v2076
        %2078 = vdwg.mxu0
        %2079 = vmatpush.msra.mxu0 %v1865
        %2080 = vmatpush.msra.mxu0 %v1863
        %2081 = vmatpush.msra.mxu0 %v1861
        %2082 = vmatpush.msra.mxu0 %v1859
        %2083 = vmatpush.msra.mxu0 %v1857
        %2084 = vmatpush.msra.mxu0 %v1855
        %2085 = vmatpush.msra.mxu0 %v1853
        %2086 = vmatpush.msra.mxu0 %v1851
        %2087 = vmatpush.msra.mxu0 %v1849
        %2088 = vmatpush.msra.mxu0 %v1847
        %2089 = vmatpush.msra.mxu0 %v1845
        %2090 = vmatpush.msra.mxu0 %v1843
        %2091 = vmatpush.msra.mxu0 %v1841
        %2092 = vmatpush.msra.mxu0 %v1839
        %2093 = vmatpush.msra.mxu0 %v1837
        %2094 = vmatpush.msra.mxu0 %v1835
        %2095 = vmatmul.f32.gmra.mxu0 %v1796
        %v2096 = vpop.f32.mrf.mxu0
        %v2097 = vadd.f32 %v2077, %v2096
        %2098 = vdwg.mxu0
        %2099 = vmatpush.msra.mxu0 %v1897
        %2100 = vmatpush.msra.mxu0 %v1895
        %2101 = vmatpush.msra.mxu0 %v1893
        %2102 = vmatpush.msra.mxu0 %v1891
        %2103 = vmatpush.msra.mxu0 %v1889
        %2104 = vmatpush.msra.mxu0 %v1887
        %2105 = vmatpush.msra.mxu0 %v1885
        %2106 = vmatpush.msra.mxu0 %v1883
        %2107 = vmatpush.msra.mxu0 %v1881
        %2108 = vmatpush.msra.mxu0 %v1879
        %2109 = vmatpush.msra.mxu0 %v1877
        %2110 = vmatpush.msra.mxu0 %v1875
        %2111 = vmatpush.msra.mxu0 %v1873
        %2112 = vmatpush.msra.mxu0 %v1871
        %2113 = vmatpush.msra.mxu0 %v1869
        %2114 = vmatpush.msra.mxu0 %v1867
        %2115 = vmatmul.f32.gmra.mxu0 %v1797
        %v2116 = vpop.f32.mrf.mxu0
        %v2117 = vadd.f32 %v2097, %v2116
        %2118 = vdwg.mxu0
        %2119 = vmatpush.msra.mxu0 %v1929
        %2120 = vmatpush.msra.mxu0 %v1927
        %2121 = vmatpush.msra.mxu0 %v1925
        %2122 = vmatpush.msra.mxu0 %v1923
        %2123 = vmatpush.msra.mxu0 %v1921
        %2124 = vmatpush.msra.mxu0 %v1919
        %2125 = vmatpush.msra.mxu0 %v1917
        %2126 = vmatpush.msra.mxu0 %v1915
        %2127 = vmatpush.msra.mxu0 %v1913
        %2128 = vmatpush.msra.mxu0 %v1911
        %2129 = vmatpush.msra.mxu0 %v1909
        %2130 = vmatpush.msra.mxu0 %v1907
        %2131 = vmatpush.msra.mxu0 %v1905
        %2132 = vmatpush.msra.mxu0 %v1903
        %2133 = vmatpush.msra.mxu0 %v1901
        %2134 = vmatpush.msra.mxu0 %v1899
        %2135 = vmatmul.f32.gmra.mxu0 %v1798
        %v2136 = vpop.f32.mrf.mxu0
        %v2137 = vadd.f32 %v2117, %v2136
        %2138 = vdwg.mxu0
        %2139 = vmatpush.msra.mxu0 %v1961
        %2140 = vmatpush.msra.mxu0 %v1959
        %2141 = vmatpush.msra.mxu0 %v1957
        %2142 = vmatpush.msra.mxu0 %v1955
        %2143 = vmatpush.msra.mxu0 %v1953
        %2144 = vmatpush.msra.mxu0 %v1951
        %2145 = vmatpush.msra.mxu0 %v1949
        %2146 = vmatpush.msra.mxu0 %v1947
        %2147 = vmatpush.msra.mxu0 %v1945
        %2148 = vmatpush.msra.mxu0 %v1943
        %2149 = vmatpush.msra.mxu0 %v1941
        %2150 = vmatpush.msra.mxu0 %v1939
        %2151 = vmatpush.msra.mxu0 %v1937
        %2152 = vmatpush.msra.mxu0 %v1935
        %2153 = vmatpush.msra.mxu0 %v1933
        %2154 = vmatpush.msra.mxu0 %v1931
        %2155 = vmatmul.f32.gmra.mxu0 %v1799
        %v2156 = vpop.f32.mrf.mxu0
        %v2157 = vadd.f32 %v2137, %v2156
        %2158 = vdwg.mxu0
        %2159 = vmatpush.msra.mxu0 %v1993
        %2160 = vmatpush.msra.mxu0 %v1991
        %2161 = vmatpush.msra.mxu0 %v1989
        %2162 = vmatpush.msra.mxu0 %v1987
        %2163 = vmatpush.msra.mxu0 %v1985
        %2164 = vmatpush.msra.mxu0 %v1983
        %2165 = vmatpush.msra.mxu0 %v1981
        %2166 = vmatpush.msra.mxu0 %v1979
        %2167 = vmatpush.msra.mxu0 %v1977
        %2168 = vmatpush.msra.mxu0 %v1975
        %2169 = vmatpush.msra.mxu0 %v1973
        %2170 = vmatpush.msra.mxu0 %v1971
        %2171 = vmatpush.msra.mxu0 %v1969
        %2172 = vmatpush.msra.mxu0 %v1967
        %2173 = vmatpush.msra.mxu0 %v1965
        %2174 = vmatpush.msra.mxu0 %v1963
        %2175 = vmatmul.f32.gmra.mxu0 %v1800
        %v2176 = vpop.f32.mrf.mxu0
        %v2177 = vadd.f32 %v2157, %v2176
        %2178 = vdwg.mxu0
        %2179 = vmatpush.msra.mxu0 %v2025
        %2180 = vmatpush.msra.mxu0 %v2023
        %2181 = vmatpush.msra.mxu0 %v2021
        %2182 = vmatpush.msra.mxu0 %v2019
        %2183 = vmatpush.msra.mxu0 %v2017
        %2184 = vmatpush.msra.mxu0 %v2015
        %2185 = vmatpush.msra.mxu0 %v2013
        %2186 = vmatpush.msra.mxu0 %v2011
        %2187 = vmatpush.msra.mxu0 %v2009
        %2188 = vmatpush.msra.mxu0 %v2007
        %2189 = vmatpush.msra.mxu0 %v2005
        %2190 = vmatpush.msra.mxu0 %v2003
        %2191 = vmatpush.msra.mxu0 %v2001
        %2192 = vmatpush.msra.mxu0 %v1999
        %2193 = vmatpush.msra.mxu0 %v1997
        %2194 = vmatpush.msra.mxu0 %v1995
        %2195 = vmatmul.f32.gmra.mxu0 %v1801
        %v2196 = vpop.f32.mrf.mxu0
        %v2197 = vadd.f32 %v2177, %v2196
        %2198 = vdwg.mxu0
        %2199 = vmatpush.msra.mxu0 %v2057
        %2200 = vmatpush.msra.mxu0 %v2055
        %2201 = vmatpush.msra.mxu0 %v2053
        %2202 = vmatpush.msra.mxu0 %v2051
        %2203 = vmatpush.msra.mxu0 %v2049
        %2204 = vmatpush.msra.mxu0 %v2047
        %2205 = vmatpush.msra.mxu0 %v2045
        %2206 = vmatpush.msra.mxu0 %v2043
        %2207 = vmatpush.msra.mxu0 %v2041
        %2208 = vmatpush.msra.mxu0 %v2039
        %2209 = vmatpush.msra.mxu0 %v2037
        %2210 = vmatpush.msra.mxu0 %v2035
        %2211 = vmatpush.msra.mxu0 %v2033
        %2212 = vmatpush.msra.mxu0 %v2031
        %2213 = vmatpush.msra.mxu0 %v2029
        %2214 = vmatpush.msra.mxu0 %v2027
        %2215 = vmatmul.f32.gmra.mxu0 %v1802
        %v2216 = vpop.f32.mrf.mxu0
        %v2217 = vadd.f32 %v2197, %v2216
        %2218 = vdwg.mxu0
        %2219 = vmatpush.msra.mxu0 %v1834
        %2220 = vmatpush.msra.mxu0 %v1832
        %2221 = vmatpush.msra.mxu0 %v1830
        %2222 = vmatpush.msra.mxu0 %v1828
        %2223 = vmatpush.msra.mxu0 %v1826
        %2224 = vmatpush.msra.mxu0 %v1824
        %2225 = vmatpush.msra.mxu0 %v1822
        %2226 = vmatpush.msra.mxu0 %v1820
        %2227 = vmatpush.msra.mxu0 %v1818
        %2228 = vmatpush.msra.mxu0 %v1816
        %2229 = vmatpush.msra.mxu0 %v1814
        %2230 = vmatpush.msra.mxu0 %v1812
        %2231 = vmatpush.msra.mxu0 %v1810
        %2232 = vmatpush.msra.mxu0 %v1808
        %2233 = vmatpush.msra.mxu0 %v1806
        %2234 = vmatpush.msra.mxu0 %v1804
        %2235 = vmatmul.f32.gmra.mxu0 %v1795
        %v2236 = vpop.f32.mrf.mxu0
        %v2237 = vadd.f32 0.0, %v2236
        %2238 = vdwg.mxu0
        %2239 = vmatpush.msra.mxu0 %v1866
        %2240 = vmatpush.msra.mxu0 %v1864
        %2241 = vmatpush.msra.mxu0 %v1862
        %2242 = vmatpush.msra.mxu0 %v1860
        %2243 = vmatpush.msra.mxu0 %v1858
        %2244 = vmatpush.msra.mxu0 %v1856
        %2245 = vmatpush.msra.mxu0 %v1854
        %2246 = vmatpush.msra.mxu0 %v1852
        %2247 = vmatpush.msra.mxu0 %v1850
        %2248 = vmatpush.msra.mxu0 %v1848
        %2249 = vmatpush.msra.mxu0 %v1846
        %2250 = vmatpush.msra.mxu0 %v1844
        %2251 = vmatpush.msra.mxu0 %v1842
        %2252 = vmatpush.msra.mxu0 %v1840
        %2253 = vmatpush.msra.mxu0 %v1838
        %2254 = vmatpush.msra.mxu0 %v1836
        %2255 = vmatmul.f32.gmra.mxu0 %v1796
        %v2256 = vpop.f32.mrf.mxu0
        %v2257 = vadd.f32 %v2237, %v2256
        %2258 = vdwg.mxu0
        %2259 = vmatpush.msra.mxu0 %v1898
        %2260 = vmatpush.msra.mxu0 %v1896
        %2261 = vmatpush.msra.mxu0 %v1894
        %2262 = vmatpush.msra.mxu0 %v1892
        %2263 = vmatpush.msra.mxu0 %v1890
        %2264 = vmatpush.msra.mxu0 %v1888
        %2265 = vmatpush.msra.mxu0 %v1886
        %2266 = vmatpush.msra.mxu0 %v1884
        %2267 = vmatpush.msra.mxu0 %v1882
        %2268 = vmatpush.msra.mxu0 %v1880
        %2269 = vmatpush.msra.mxu0 %v1878
        %2270 = vmatpush.msra.mxu0 %v1876
        %2271 = vmatpush.msra.mxu0 %v1874
        %2272 = vmatpush.msra.mxu0 %v1872
        %2273 = vmatpush.msra.mxu0 %v1870
        %2274 = vmatpush.msra.mxu0 %v1868
        %2275 = vmatmul.f32.gmra.mxu0 %v1797
        %v2276 = vpop.f32.mrf.mxu0
        %v2277 = vadd.f32 %v2257, %v2276
        %2278 = vdwg.mxu0
        %2279 = vmatpush.msra.mxu0 %v1930
        %2280 = vmatpush.msra.mxu0 %v1928
        %2281 = vmatpush.msra.mxu0 %v1926
        %2282 = vmatpush.msra.mxu0 %v1924
        %2283 = vmatpush.msra.mxu0 %v1922
        %2284 = vmatpush.msra.mxu0 %v1920
        %2285 = vmatpush.msra.mxu0 %v1918
        %2286 = vmatpush.msra.mxu0 %v1916
        %2287 = vmatpush.msra.mxu0 %v1914
        %2288 = vmatpush.msra.mxu0 %v1912
        %2289 = vmatpush.msra.mxu0 %v1910
        %2290 = vmatpush.msra.mxu0 %v1908
        %2291 = vmatpush.msra.mxu0 %v1906
        %2292 = vmatpush.msra.mxu0 %v1904
        %2293 = vmatpush.msra.mxu0 %v1902
        %2294 = vmatpush.msra.mxu0 %v1900
        %2295 = vmatmul.f32.gmra.mxu0 %v1798
        %v2296 = vpop.f32.mrf.mxu0
        %v2297 = vadd.f32 %v2277, %v2296
        %2298 = vdwg.mxu0
        %2299 = vmatpush.msra.mxu0 %v1962
        %2300 = vmatpush.msra.mxu0 %v1960
        %2301 = vmatpush.msra.mxu0 %v1958
        %2302 = vmatpush.msra.mxu0 %v1956
        %2303 = vmatpush.msra.mxu0 %v1954
        %2304 = vmatpush.msra.mxu0 %v1952
        %2305 = vmatpush.msra.mxu0 %v1950
        %2306 = vmatpush.msra.mxu0 %v1948
        %2307 = vmatpush.msra.mxu0 %v1946
        %2308 = vmatpush.msra.mxu0 %v1944
        %2309 = vmatpush.msra.mxu0 %v1942
        %2310 = vmatpush.msra.mxu0 %v1940
        %2311 = vmatpush.msra.mxu0 %v1938
        %2312 = vmatpush.msra.mxu0 %v1936
        %2313 = vmatpush.msra.mxu0 %v1934
        %2314 = vmatpush.msra.mxu0 %v1932
        %2315 = vmatmul.f32.gmra.mxu0 %v1799
        %v2316 = vpop.f32.mrf.mxu0
        %v2317 = vadd.f32 %v2297, %v2316
        %2318 = vdwg.mxu0
        %2319 = vmatpush.msra.mxu0 %v1994
        %2320 = vmatpush.msra.mxu0 %v1992
        %2321 = vmatpush.msra.mxu0 %v1990
        %2322 = vmatpush.msra.mxu0 %v1988
        %2323 = vmatpush.msra.mxu0 %v1986
        %2324 = vmatpush.msra.mxu0 %v1984
        %2325 = vmatpush.msra.mxu0 %v1982
        %2326 = vmatpush.msra.mxu0 %v1980
        %2327 = vmatpush.msra.mxu0 %v1978
        %2328 = vmatpush.msra.mxu0 %v1976
        %2329 = vmatpush.msra.mxu0 %v1974
        %2330 = vmatpush.msra.mxu0 %v1972
        %2331 = vmatpush.msra.mxu0 %v1970
        %2332 = vmatpush.msra.mxu0 %v1968
        %2333 = vmatpush.msra.mxu0 %v1966
        %2334 = vmatpush.msra.mxu0 %v1964
        %2335 = vmatmul.f32.gmra.mxu0 %v1800
        %v2336 = vpop.f32.mrf.mxu0
        %v2337 = vadd.f32 %v2317, %v2336
        %2338 = vdwg.mxu0
        %2339 = vmatpush.msra.mxu0 %v2026
        %2340 = vmatpush.msra.mxu0 %v2024
        %2341 = vmatpush.msra.mxu0 %v2022
        %2342 = vmatpush.msra.mxu0 %v2020
        %2343 = vmatpush.msra.mxu0 %v2018
        %2344 = vmatpush.msra.mxu0 %v2016
        %2345 = vmatpush.msra.mxu0 %v2014
        %2346 = vmatpush.msra.mxu0 %v2012
        %2347 = vmatpush.msra.mxu0 %v2010
        %2348 = vmatpush.msra.mxu0 %v2008
        %2349 = vmatpush.msra.mxu0 %v2006
        %2350 = vmatpush.msra.mxu0 %v2004
        %2351 = vmatpush.msra.mxu0 %v2002
        %2352 = vmatpush.msra.mxu0 %v2000
        %2353 = vmatpush.msra.mxu0 %v1998
        %2354 = vmatpush.msra.mxu0 %v1996
        %2355 = vmatmul.f32.gmra.mxu0 %v1801
        %v2356 = vpop.f32.mrf.mxu0
        %v2357 = vadd.f32 %v2337, %v2356
        %2358 = vdwg.mxu0
        %2359 = vmatpush.msra.mxu0 %v2058
        %2360 = vmatpush.msra.mxu0 %v2056
        %2361 = vmatpush.msra.mxu0 %v2054
        %2362 = vmatpush.msra.mxu0 %v2052
        %2363 = vmatpush.msra.mxu0 %v2050
        %2364 = vmatpush.msra.mxu0 %v2048
        %2365 = vmatpush.msra.mxu0 %v2046
        %2366 = vmatpush.msra.mxu0 %v2044
        %2367 = vmatpush.msra.mxu0 %v2042
        %2368 = vmatpush.msra.mxu0 %v2040
        %2369 = vmatpush.msra.mxu0 %v2038
        %2370 = vmatpush.msra.mxu0 %v2036
        %2371 = vmatpush.msra.mxu0 %v2034
        %2372 = vmatpush.msra.mxu0 %v2032
        %2373 = vmatpush.msra.mxu0 %v2030
        %2374 = vmatpush.msra.mxu0 %v2028
        %2375 = vmatmul.f32.gmra.mxu0 %v1802
        %v2376 = vpop.f32.mrf.mxu0
        %v2377 = vadd.f32 %v2357, %v2376
        %2378 = vdwg.mxu0
        %2381 = vrot.lane.b32.xlu0 %v2217, 127
        %v2382 = vpop.permute.xlu0 %2381
        %2383 = vrot.lane.b32.xlu0 %v2377, 127
        %v2384 = vpop.permute.xlu0 %2383
        %v2385 = vsel %vm511, %v2382, %v2384
        %v2389 = vsel %vm511, %v2384, %v2382
        %2390 = vrot.lane.b32.xlu0 %v2217, 126
        %v2391 = vpop.permute.xlu0 %2390
        %2392 = vrot.lane.b32.xlu0 %v2377, 126
        %v2393 = vpop.permute.xlu0 %2392
        %v2394 = vsel %vm573, %v2391, %v2393
        %v2398 = vsel %vm573, %v2393, %v2391
        %2399 = vrot.lane.b32.xlu0 %v2217, 125
        %v2400 = vpop.permute.xlu0 %2399
        %2401 = vrot.lane.b32.xlu0 %v2377, 125
        %v2402 = vpop.permute.xlu0 %2401
        %v2403 = vsel %vm635, %v2400, %v2402
        %v2407 = vsel %vm635, %v2402, %v2400
        %2408 = vrot.lane.b32.xlu0 %v2217, 124
        %v2409 = vpop.permute.xlu0 %2408
        %2410 = vrot.lane.b32.xlu0 %v2377, 124
        %v2411 = vpop.permute.xlu0 %2410
        %v2412 = vsel %vm697, %v2409, %v2411
        %v2416 = vsel %vm697, %v2411, %v2409
        %2417 = vrot.lane.b32.xlu0 %v2217, 112
        %v2418 = vpop.permute.xlu0 %2417
        %2419 = vrot.lane.b32.xlu0 %v2377, 112
        %v2420 = vpop.permute.xlu0 %2419
        %vm2421 = vcmask 916480
        %v2422 = vsel %vm2421, %v2418, %v2420
        %v2426 = vsel %vm2421, %v2420, %v2418
        %2427 = vrot.lane.b32.xlu0 %v2217, 111
        %v2428 = vpop.permute.xlu0 %2427
        %2429 = vrot.lane.b32.xlu0 %v2377, 111
        %v2430 = vpop.permute.xlu0 %2429
        %vm2431 = vcmask 908288
        %v2432 = vsel %vm2431, %v2428, %v2430
        %v2436 = vsel %vm2431, %v2430, %v2428
        %2437 = vrot.lane.b32.xlu0 %v2217, 110
        %v2438 = vpop.permute.xlu0 %2437
        %2439 = vrot.lane.b32.xlu0 %v2377, 110
        %v2440 = vpop.permute.xlu0 %2439
        %vm2441 = vcmask 900096
        %v2442 = vsel %vm2441, %v2438, %v2440
        %v2446 = vsel %vm2441, %v2440, %v2438
        %2447 = vrot.lane.b32.xlu0 %v2217, 109
        %v2448 = vpop.permute.xlu0 %2447
        %2449 = vrot.lane.b32.xlu0 %v2377, 109
        %v2450 = vpop.permute.xlu0 %2449
        %vm2451 = vcmask 891904
        %v2452 = vsel %vm2451, %v2448, %v2450
        %v2456 = vsel %vm2451, %v2450, %v2448
        %2457 = vrot.lane.b32.xlu0 %v2217, 108
        %v2458 = vpop.permute.xlu0 %2457
        %2459 = vrot.lane.b32.xlu0 %v2377, 108
        %v2460 = vpop.permute.xlu0 %2459
        %vm2461 = vcmask 883712
        %v2462 = vsel %vm2461, %v2458, %v2460
        %v2466 = vsel %vm2461, %v2460, %v2458
        %2467 = vrot.lane.b32.xlu0 %v2217, 96
        %v2468 = vpop.permute.xlu0 %2467
        %2469 = vrot.lane.b32.xlu0 %v2377, 96
        %v2470 = vpop.permute.xlu0 %2469
        %v2471 = vsel %vm759, %v2468, %v2470
        %v2475 = vsel %vm759, %v2470, %v2468
        %2476 = vrot.lane.b32.xlu0 %v2217, 95
        %v2477 = vpop.permute.xlu0 %2476
        %2478 = vrot.lane.b32.xlu0 %v2377, 95
        %v2479 = vpop.permute.xlu0 %2478
        %v2480 = vsel %vm821, %v2477, %v2479
        %v2484 = vsel %vm821, %v2479, %v2477
        %2485 = vrot.lane.b32.xlu0 %v2217, 94
        %v2486 = vpop.permute.xlu0 %2485
        %2487 = vrot.lane.b32.xlu0 %v2377, 94
        %v2488 = vpop.permute.xlu0 %2487
        %v2489 = vsel %vm883, %v2486, %v2488
        %v2493 = vsel %vm883, %v2488, %v2486
        %2494 = vrot.lane.b32.xlu0 %v2217, 93
        %v2495 = vpop.permute.xlu0 %2494
        %2496 = vrot.lane.b32.xlu0 %v2377, 93
        %v2497 = vpop.permute.xlu0 %2496
        %v2498 = vsel %vm945, %v2495, %v2497
        %v2502 = vsel %vm945, %v2497, %v2495
        %2503 = vrot.lane.b32.xlu0 %v2217, 92
        %v2504 = vpop.permute.xlu0 %2503
        %2505 = vrot.lane.b32.xlu0 %v2377, 92
        %v2506 = vpop.permute.xlu0 %2505
        %v2507 = vsel %vm1007, %v2504, %v2506
        %v2511 = vsel %vm1007, %v2506, %v2504
        %2512 = vrot.lane.b32.xlu0 %v2217, 80
        %v2513 = vpop.permute.xlu0 %2512
        %2514 = vrot.lane.b32.xlu0 %v2377, 80
        %v2515 = vpop.permute.xlu0 %2514
        %vm2516 = vcmask 654336
        %v2517 = vsel %vm2516, %v2513, %v2515
        %v2521 = vsel %vm2516, %v2515, %v2513
        %2522 = vrot.lane.b32.xlu0 %v2217, 79
        %v2523 = vpop.permute.xlu0 %2522
        %2524 = vrot.lane.b32.xlu0 %v2377, 79
        %v2525 = vpop.permute.xlu0 %2524
        %vm2526 = vcmask 646144
        %v2527 = vsel %vm2526, %v2523, %v2525
        %v2531 = vsel %vm2526, %v2525, %v2523
        %2532 = vrot.lane.b32.xlu0 %v2217, 78
        %v2533 = vpop.permute.xlu0 %2532
        %2534 = vrot.lane.b32.xlu0 %v2377, 78
        %v2535 = vpop.permute.xlu0 %2534
        %vm2536 = vcmask 637952
        %v2537 = vsel %vm2536, %v2533, %v2535
        %v2541 = vsel %vm2536, %v2535, %v2533
        %2542 = vrot.lane.b32.xlu0 %v2217, 77
        %v2543 = vpop.permute.xlu0 %2542
        %2544 = vrot.lane.b32.xlu0 %v2377, 77
        %v2545 = vpop.permute.xlu0 %2544
        %vm2546 = vcmask 629760
        %v2547 = vsel %vm2546, %v2543, %v2545
        %v2551 = vsel %vm2546, %v2545, %v2543
        %2552 = vrot.lane.b32.xlu0 %v2217, 76
        %v2553 = vpop.permute.xlu0 %2552
        %2554 = vrot.lane.b32.xlu0 %v2377, 76
        %v2555 = vpop.permute.xlu0 %2554
        %vm2556 = vcmask 621568
        %v2557 = vsel %vm2556, %v2553, %v2555
        %v2561 = vsel %vm2556, %v2555, %v2553
        %2562 = vrot.lane.b32.xlu0 %v2217, 64
        %v2563 = vpop.permute.xlu0 %2562
        %2564 = vrot.lane.b32.xlu0 %v2377, 64
        %v2565 = vpop.permute.xlu0 %2564
        %v2566 = vsel %vm1069, %v2563, %v2565
        %v2570 = vsel %vm1069, %v2565, %v2563
        %2571 = vrot.lane.b32.xlu0 %v2217, 63
        %v2572 = vpop.permute.xlu0 %2571
        %2573 = vrot.lane.b32.xlu0 %v2377, 63
        %v2574 = vpop.permute.xlu0 %2573
        %v2575 = vsel %vm1131, %v2572, %v2574
        %v2579 = vsel %vm1131, %v2574, %v2572
        %2580 = vrot.lane.b32.xlu0 %v2217, 62
        %v2581 = vpop.permute.xlu0 %2580
        %2582 = vrot.lane.b32.xlu0 %v2377, 62
        %v2583 = vpop.permute.xlu0 %2582
        %v2584 = vsel %vm1193, %v2581, %v2583
        %v2588 = vsel %vm1193, %v2583, %v2581
        %2589 = vrot.lane.b32.xlu0 %v2217, 61
        %v2590 = vpop.permute.xlu0 %2589
        %2591 = vrot.lane.b32.xlu0 %v2377, 61
        %v2592 = vpop.permute.xlu0 %2591
        %v2593 = vsel %vm1255, %v2590, %v2592
        %v2597 = vsel %vm1255, %v2592, %v2590
        %2598 = vrot.lane.b32.xlu0 %v2217, 60
        %v2599 = vpop.permute.xlu0 %2598
        %2600 = vrot.lane.b32.xlu0 %v2377, 60
        %v2601 = vpop.permute.xlu0 %2600
        %v2602 = vsel %vm1317, %v2599, %v2601
        %v2606 = vsel %vm1317, %v2601, %v2599
        %v2607 = vld [vmem:[%s4] sm:$0xff]
        %v2608 = vld [vmem:[%s4 + $0x8] sm:$0xff]
        %v2609 = vld [vmem:[%s4 + $0x10] sm:$0xff]
        %v2610 = vld [vmem:[%s4 + $0x18] sm:$0xff]
        %v2611 = vld [vmem:[%s5] sm:$0xff]
        %v2612 = vld [vmem:[%s5 + $0x8] sm:$0xff]
        %2614 = vset.pattern.permute.xlu0 0
        %2615 = vperm.xlu0 %2614, %v2611
        %v2616 = vpop.permute.xlu0 %2615
        %2619 = vset.pattern.permute.xlu0 0
        %2620 = vperm.xlu0 %2619, %v2612
        %v2621 = vpop.permute.xlu0 %2620
        %vm2623 = vcmask 588800
        %v2625 = vsel %vm2623, %v2608, 0
        %v2628 = vsel %vm2623, %v2610, 0
        %2630 = vmatpush.msra.mxu0 %v2517
        %2631 = vmatpush.msra.mxu0 %v2507
        %2632 = vmatpush.msra.mxu0 %v2498
        %2633 = vmatpush.msra.mxu0 %v2489
        %2634 = vmatpush.msra.mxu0 %v2480
        %2635 = vmatpush.msra.mxu0 %v2471
        %2636 = vmatpush.msra.mxu0 %v2462
        %2637 = vmatpush.msra.mxu0 %v2452
        %2638 = vmatpush.msra.mxu0 %v2442
        %2639 = vmatpush.msra.mxu0 %v2432
        %2640 = vmatpush.msra.mxu0 %v2422
        %2641 = vmatpush.msra.mxu0 %v2412
        %2642 = vmatpush.msra.mxu0 %v2403
        %2643 = vmatpush.msra.mxu0 %v2394
        %2644 = vmatpush.msra.mxu0 %v2385
        %2645 = vmatpush.msra.mxu0 %v2217
        %2646 = vmatmul.f32.gmra.mxu0 %v2607
        %v2647 = vpop.f32.mrf.mxu0
        %v2648 = vadd.f32 %v2616, %v2647
        %2649 = vmatmul.f32.gmra.mxu0 %v2609
        %v2650 = vpop.f32.mrf.mxu0
        %v2651 = vadd.f32 %v2621, %v2650
        %2652 = vdwg.mxu0
        %2653 = vmatpush.msra.mxu0 0.0
        %2654 = vmatpush.msra.mxu0 0.0
        %2655 = vmatpush.msra.mxu0 0.0
        %2656 = vmatpush.msra.mxu0 0.0
        %2657 = vmatpush.msra.mxu0 0.0
        %2658 = vmatpush.msra.mxu0 0.0
        %2659 = vmatpush.msra.mxu0 0.0
        %2660 = vmatpush.msra.mxu0 %v2602
        %2661 = vmatpush.msra.mxu0 %v2593
        %2662 = vmatpush.msra.mxu0 %v2584
        %2663 = vmatpush.msra.mxu0 %v2575
        %2664 = vmatpush.msra.mxu0 %v2566
        %2665 = vmatpush.msra.mxu0 %v2557
        %2666 = vmatpush.msra.mxu0 %v2547
        %2667 = vmatpush.msra.mxu0 %v2537
        %2668 = vmatpush.msra.mxu0 %v2527
        %2669 = vmatmul.f32.gmra.mxu0 %v2625
        %v2670 = vpop.f32.mrf.mxu0
        %v2671 = vadd.f32 %v2648, %v2670
        %2672 = vmatmul.f32.gmra.mxu0 %v2628
        %v2673 = vpop.f32.mrf.mxu0
        %v2674 = vadd.f32 %v2651, %v2673
        %2675 = vdwg.mxu0
        %2676 = vmatpush.msra.mxu0 %v2521
        %2677 = vmatpush.msra.mxu0 %v2511
        %2678 = vmatpush.msra.mxu0 %v2502
        %2679 = vmatpush.msra.mxu0 %v2493
        %2680 = vmatpush.msra.mxu0 %v2484
        %2681 = vmatpush.msra.mxu0 %v2475
        %2682 = vmatpush.msra.mxu0 %v2466
        %2683 = vmatpush.msra.mxu0 %v2456
        %2684 = vmatpush.msra.mxu0 %v2446
        %2685 = vmatpush.msra.mxu0 %v2436
        %2686 = vmatpush.msra.mxu0 %v2426
        %2687 = vmatpush.msra.mxu0 %v2416
        %2688 = vmatpush.msra.mxu0 %v2407
        %2689 = vmatpush.msra.mxu0 %v2398
        %2690 = vmatpush.msra.mxu0 %v2389
        %2691 = vmatpush.msra.mxu0 %v2377
        %2692 = vmatmul.f32.gmra.mxu0 %v2607
        %v2693 = vpop.f32.mrf.mxu0
        %v2694 = vadd.f32 %v2616, %v2693
        %2695 = vmatmul.f32.gmra.mxu0 %v2609
        %v2696 = vpop.f32.mrf.mxu0
        %v2697 = vadd.f32 %v2621, %v2696
        %2698 = vdwg.mxu0
        %2699 = vmatpush.msra.mxu0 0.0
        %2700 = vmatpush.msra.mxu0 0.0
        %2701 = vmatpush.msra.mxu0 0.0
        %2702 = vmatpush.msra.mxu0 0.0
        %2703 = vmatpush.msra.mxu0 0.0
        %2704 = vmatpush.msra.mxu0 0.0
        %2705 = vmatpush.msra.mxu0 0.0
        %2706 = vmatpush.msra.mxu0 %v2606
        %2707 = vmatpush.msra.mxu0 %v2597
        %2708 = vmatpush.msra.mxu0 %v2588
        %2709 = vmatpush.msra.mxu0 %v2579
        %2710 = vmatpush.msra.mxu0 %v2570
        %2711 = vmatpush.msra.mxu0 %v2561
        %2712 = vmatpush.msra.mxu0 %v2551
        %2713 = vmatpush.msra.mxu0 %v2541
        %2714 = vmatpush.msra.mxu0 %v2531
        %2715 = vmatmul.f32.gmra.mxu0 %v2625
        %v2716 = vpop.f32.mrf.mxu0
        %v2717 = vadd.f32 %v2694, %v2716
        %2718 = vmatmul.f32.gmra.mxu0 %v2628
        %v2719 = vpop.f32.mrf.mxu0
        %v2720 = vadd.f32 %v2697, %v2719
        %2721 = vdwg.mxu0
        %v2722 = vtanh.pop %v2671
        %v2723 = vtanh.pop %v2717
        %v2724 = vtanh.pop %v2674
        %v2725 = vtanh.pop %v2720
        %v2726 = vld [vmem:[%s6] sm:$0xff]
        %v2727 = vld [vmem:[%s6 + $0x8] sm:$0xff]
        %v2728 = vld [vmem:[%s6 + $0x10] sm:$0xff]
        %v2729 = vld [vmem:[%s6 + $0x18] sm:$0xff]
        %v2730 = vld [vmem:[%s6 + $0x20] sm:$0xff]
        %v2731 = vld [vmem:[%s6 + $0x28] sm:$0xff]
        %v2732 = vld [vmem:[%s6 + $0x30] sm:$0xff]
        %v2733 = vld [vmem:[%s6 + $0x38] sm:$0xff]
        %v2734 = vld [vmem:[%s6 + $0x40] sm:$0xff]
        %v2735 = vld [vmem:[%s6 + $0x48] sm:$0xff]
        %v2736 = vld [vmem:[%s6 + $0x50] sm:$0xff]
        %v2737 = vld [vmem:[%s6 + $0x58] sm:$0xff]
        %v2738 = vld [vmem:[%s6 + $0x60] sm:$0xff]
        %v2739 = vld [vmem:[%s6 + $0x68] sm:$0xff]
        %v2740 = vld [vmem:[%s6 + $0x70] sm:$0xff]
        %v2741 = vld [vmem:[%s6 + $0x78] sm:$0xff]
        %v2742 = vld [vmem:[%s6 + $0x80] sm:$0xff]
        %v2743 = vld [vmem:[%s6 + $0x88] sm:$0xff]
        %v2744 = vld [vmem:[%s6 + $0x90] sm:$0xff]
        %v2745 = vld [vmem:[%s6 + $0x98] sm:$0xff]
        %v2746 = vld [vmem:[%s6 + $0xa0] sm:$0xff]
        %v2747 = vld [vmem:[%s6 + $0xa8] sm:$0xff]
        %v2748 = vld [vmem:[%s6 + $0xb0] sm:$0xff]
        %v2749 = vld [vmem:[%s6 + $0xb8] sm:$0xff]
        %v2750 = vld [vmem:[%s6 + $0xc0] sm:$0xff]
        %v2751 = vld [vmem:[%s6 + $0xc8] sm:$0xff]
        %v2752 = vld [vmem:[%s6 + $0xd0] sm:$0xff]
        %v2753 = vld [vmem:[%s6 + $0xd8] sm:$0xff]
        %v2754 = vld [vmem:[%s6 + $0xe0] sm:$0xff]
        %v2755 = vld [vmem:[%s6 + $0xe8] sm:$0xff]
        %v2756 = vld [vmem:[%s6 + $0xf0] sm:$0xff]
        %v2757 = vld [vmem:[%s6 + $0xf8] sm:$0xff]
        %2758 = vmatpush.msra.mxu0 %v2741
        %2759 = vmatpush.msra.mxu0 %v2740
        %2760 = vmatpush.msra.mxu0 %v2739
        %2761 = vmatpush.msra.mxu0 %v2738
        %2762 = vmatpush.msra.mxu0 %v2737
        %2763 = vmatpush.msra.mxu0 %v2736
        %2764 = vmatpush.msra.mxu0 %v2735
        %2765 = vmatpush.msra.mxu0 %v2734
        %2766 = vmatpush.msra.mxu0 %v2733
        %2767 = vmatpush.msra.mxu0 %v2732
        %2768 = vmatpush.msra.mxu0 %v2731
        %2769 = vmatpush.msra.mxu0 %v2730
        %2770 = vmatpush.msra.mxu0 %v2729
        %2771 = vmatpush.msra.mxu0 %v2728
        %2772 = vmatpush.msra.mxu0 %v2727
        %2773 = vmatpush.msra.mxu0 %v2726
        %2774 = vmatmul.f32.gmra.mxu0 %v2722
        %v2775 = vpop.f32.mrf.mxu0
        %v2776 = vadd.f32 0.0, %v2775
        %2777 = vmatmul.f32.gmra.mxu0 %v2724
        %v2778 = vpop.f32.mrf.mxu0
        %v2779 = vadd.f32 0.0, %v2778
        %2780 = vdwg.mxu0
        %2781 = vmatpush.msra.mxu0 %v2757
        %2782 = vmatpush.msra.mxu0 %v2756
        %2783 = vmatpush.msra.mxu0 %v2755
        %2784 = vmatpush.msra.mxu0 %v2754
        %2785 = vmatpush.msra.mxu0 %v2753
        %2786 = vmatpush.msra.mxu0 %v2752
        %2787 = vmatpush.msra.mxu0 %v2751
        %2788 = vmatpush.msra.mxu0 %v2750
        %2789 = vmatpush.msra.mxu0 %v2749
        %2790 = vmatpush.msra.mxu0 %v2748
        %2791 = vmatpush.msra.mxu0 %v2747
        %2792 = vmatpush.msra.mxu0 %v2746
        %2793 = vmatpush.msra.mxu0 %v2745
        %2794 = vmatpush.msra.mxu0 %v2744
        %2795 = vmatpush.msra.mxu0 %v2743
        %2796 = vmatpush.msra.mxu0 %v2742
        %2797 = vmatmul.f32.gmra.mxu0 %v2723
        %v2798 = vpop.f32.mrf.mxu0
        %v2799 = vadd.f32 %v2776, %v2798
        %2800 = vmatmul.f32.gmra.mxu0 %v2725
        %v2801 = vpop.f32.mrf.mxu0
        %v2802 = vadd.f32 %v2779, %v2801
        %2803 = vdwg.mxu0
        %2806 = vrot.lane.b32.xlu0 %v2799, 127
        %v2807 = vpop.permute.xlu0 %2806
        %2808 = vrot.lane.b32.xlu0 %v2802, 127
        %v2809 = vpop.permute.xlu0 %2808
        %2812 = vrot.lane.b32.xlu0 %v2799, 126
        %v2813 = vpop.permute.xlu0 %2812
        %2814 = vrot.lane.b32.xlu0 %v2802, 126
        %v2815 = vpop.permute.xlu0 %2814
        %2818 = vrot.lane.b32.xlu0 %v2799, 125
        %v2819 = vpop.permute.xlu0 %2818
        %2820 = vrot.lane.b32.xlu0 %v2802, 125
        %v2821 = vpop.permute.xlu0 %2820
        %2824 = vrot.lane.b32.xlu0 %v2799, 124
        %v2825 = vpop.permute.xlu0 %2824
        %2826 = vrot.lane.b32.xlu0 %v2802, 124
        %v2827 = vpop.permute.xlu0 %2826
        %2830 = vrot.lane.b32.xlu0 %v2799, 120
        %v2831 = vpop.permute.xlu0 %2830
        %2832 = vrot.lane.b32.xlu0 %v2802, 120
        %v2833 = vpop.permute.xlu0 %2832
        %2836 = vrot.lane.b32.xlu0 %v2799, 119
        %v2837 = vpop.permute.xlu0 %2836
        %2838 = vrot.lane.b32.xlu0 %v2802, 119
        %v2839 = vpop.permute.xlu0 %2838
        %2842 = vrot.lane.b32.xlu0 %v2799, 118
        %v2843 = vpop.permute.xlu0 %2842
        %2844 = vrot.lane.b32.xlu0 %v2802, 118
        %v2845 = vpop.permute.xlu0 %2844
        %2848 = vrot.lane.b32.xlu0 %v2799, 117
        %v2849 = vpop.permute.xlu0 %2848
        %2850 = vrot.lane.b32.xlu0 %v2802, 117
        %v2851 = vpop.permute.xlu0 %2850
        %2854 = vrot.lane.b32.xlu0 %v2799, 116
        %v2855 = vpop.permute.xlu0 %2854
        %2856 = vrot.lane.b32.xlu0 %v2802, 116
        %v2857 = vpop.permute.xlu0 %2856
        %2860 = vrot.lane.b32.xlu0 %v2799, 112
        %v2861 = vpop.permute.xlu0 %2860
        %2862 = vrot.lane.b32.xlu0 %v2802, 112
        %v2863 = vpop.permute.xlu0 %2862
        %2866 = vrot.lane.b32.xlu0 %v2799, 111
        %v2867 = vpop.permute.xlu0 %2866
        %2868 = vrot.lane.b32.xlu0 %v2802, 111
        %v2869 = vpop.permute.xlu0 %2868
        %2872 = vrot.lane.b32.xlu0 %v2799, 110
        %v2873 = vpop.permute.xlu0 %2872
        %2874 = vrot.lane.b32.xlu0 %v2802, 110
        %v2875 = vpop.permute.xlu0 %2874
        %2878 = vrot.lane.b32.xlu0 %v2799, 109
        %v2879 = vpop.permute.xlu0 %2878
        %2880 = vrot.lane.b32.xlu0 %v2802, 109
        %v2881 = vpop.permute.xlu0 %2880
        %2884 = vrot.lane.b32.xlu0 %v2799, 108
        %v2885 = vpop.permute.xlu0 %2884
        %2886 = vrot.lane.b32.xlu0 %v2802, 108
        %v2887 = vpop.permute.xlu0 %2886
        %2890 = vrot.lane.b32.xlu0 %v2799, 104
        %v2891 = vpop.permute.xlu0 %2890
        %2892 = vrot.lane.b32.xlu0 %v2802, 104
        %v2893 = vpop.permute.xlu0 %2892
        %2896 = vrot.lane.b32.xlu0 %v2799, 121
        %v2897 = vpop.permute.xlu0 %2896
        %2898 = vrot.lane.b32.xlu0 %v2802, 121
        %v2899 = vpop.permute.xlu0 %2898
        %2900 = vrot.lane.b32.xlu0 %v2799, 103
        %v2901 = vpop.permute.xlu0 %2900
        %2902 = vrot.lane.b32.xlu0 %v2802, 103
        %v2903 = vpop.permute.xlu0 %2902
        %2904 = vrot.lane.b32.xlu0 %v2807, 103
        %v2905 = vpop.permute.xlu0 %2904
        %2906 = vrot.lane.b32.xlu0 %v2809, 103
        %v2907 = vpop.permute.xlu0 %2906
        %2908 = vrot.lane.b32.xlu0 %v2813, 103
        %v2909 = vpop.permute.xlu0 %2908
        %2910 = vrot.lane.b32.xlu0 %v2815, 103
        %v2911 = vpop.permute.xlu0 %2910
        %2912 = vrot.lane.b32.xlu0 %v2819, 103
        %v2913 = vpop.permute.xlu0 %2912
        %2914 = vrot.lane.b32.xlu0 %v2821, 103
        %v2915 = vpop.permute.xlu0 %2914
        %2916 = vrot.lane.b32.xlu0 %v2897, 103
        %v2917 = vpop.permute.xlu0 %2916
        %2918 = vrot.lane.b32.xlu0 %v2899, 103
        %v2919 = vpop.permute.xlu0 %2918
        %2920 = vrot.lane.b32.xlu0 %v2831, 103
        %v2921 = vpop.permute.xlu0 %2920
        %2922 = vrot.lane.b32.xlu0 %v2833, 103
        %v2923 = vpop.permute.xlu0 %2922
        %2924 = vrot.lane.b32.xlu0 %v2837, 103
        %v2925 = vpop.permute.xlu0 %2924
        %2926 = vrot.lane.b32.xlu0 %v2839, 103
        %v2927 = vpop.permute.xlu0 %2926
        %2928 = vrot.lane.b32.xlu0 %v2843, 103
        %v2929 = vpop.permute.xlu0 %2928
        %2930 = vrot.lane.b32.xlu0 %v2845, 103
        %v2931 = vpop.permute.xlu0 %2930
        %2932 = vrot.lane.b32.xlu0 %v2849, 103
        %v2933 = vpop.permute.xlu0 %2932
        %2934 = vrot.lane.b32.xlu0 %v2851, 103
        %v2935 = vpop.permute.xlu0 %2934
        %v2954 = vld [vmem:[%s7] sm:$0xff]
        %v2955 = vld [vmem:[%s7 + $0x8] sm:$0xff]
        %v2956 = vld [vmem:[%s7 + $0x10] sm:$0xff]
        %v2957 = vld [vmem:[%s7 + $0x18] sm:$0xff]
        %v2958 = vld [vmem:[%s7 + $0x20] sm:$0xff]
        %v2959 = vld [vmem:[%s7 + $0x28] sm:$0xff]
        %v2960 = vld [vmem:[%s7 + $0x30] sm:$0xff]
        %v2961 = vld [vmem:[%s7 + $0x38] sm:$0xff]
        %v2962 = vld [vmem:[%s7 + $0x40] sm:$0xff]
        %v2963 = vld [vmem:[%s7 + $0x48] sm:$0xff]
        %v2964 = vld [vmem:[%s7 + $0x50] sm:$0xff]
        %v2965 = vld [vmem:[%s7 + $0x58] sm:$0xff]
        %v2966 = vld [vmem:[%s7 + $0x60] sm:$0xff]
        %v2967 = vld [vmem:[%s7 + $0x68] sm:$0xff]
        %v2968 = vld [vmem:[%s7 + $0x70] sm:$0xff]
        %v2969 = vld [vmem:[%s7 + $0x78] sm:$0xff]
        %v2970 = vld [vmem:[%s7 + $0x80] sm:$0xff]
        %v2971 = vld [vmem:[%s7 + $0x88] sm:$0xff]
        %v2972 = vld [vmem:[%s7 + $0x90] sm:$0xff]
        %v2973 = vld [vmem:[%s7 + $0x98] sm:$0xff]
        %v2974 = vld [vmem:[%s7 + $0xa0] sm:$0xff]
        %v2975 = vld [vmem:[%s7 + $0xa8] sm:$0xff]
        %v2976 = vld [vmem:[%s7 + $0xb0] sm:$0xff]
        %v2977 = vld [vmem:[%s7 + $0xb8] sm:$0xff]
        %v2978 = vld [vmem:[%s7 + $0xc0] sm:$0xff]
        %v2979 = vld [vmem:[%s7 + $0xc8] sm:$0xff]
        %v2980 = vld [vmem:[%s7 + $0xd0] sm:$0xff]
        %v2981 = vld [vmem:[%s7 + $0xd8] sm:$0xff]
        %v2982 = vld [vmem:[%s7 + $0xe0] sm:$0xff]
        %v2983 = vld [vmem:[%s7 + $0xe8] sm:$0xff]
        %v2984 = vld [vmem:[%s7 + $0xf0] sm:$0xff]
        %v2985 = vld [vmem:[%s7 + $0xf8] sm:$0xff]
        %v2986 = vld [vmem:[%s7 + $0x100] sm:$0xff]
        %v2987 = vld [vmem:[%s7 + $0x108] sm:$0xff]
        %v2988 = vld [vmem:[%s7 + $0x110] sm:$0xff]
        %v2989 = vld [vmem:[%s7 + $0x118] sm:$0xff]
        %v2990 = vld [vmem:[%s7 + $0x120] sm:$0xff]
        %v2991 = vld [vmem:[%s7 + $0x128] sm:$0xff]
        %v2992 = vld [vmem:[%s7 + $0x130] sm:$0xff]
        %v2993 = vld [vmem:[%s7 + $0x138] sm:$0xff]
        %v2994 = vld [vmem:[%s7 + $0x140] sm:$0xff]
        %v2995 = vld [vmem:[%s7 + $0x148] sm:$0xff]
        %v2996 = vld [vmem:[%s7 + $0x150] sm:$0xff]
        %v2997 = vld [vmem:[%s7 + $0x158] sm:$0xff]
        %v2998 = vld [vmem:[%s7 + $0x160] sm:$0xff]
        %v2999 = vld [vmem:[%s7 + $0x168] sm:$0xff]
        %v3000 = vld [vmem:[%s7 + $0x170] sm:$0xff]
        %v3001 = vld [vmem:[%s7 + $0x178] sm:$0xff]
        %v3002 = vld [vmem:[%s7 + $0x180] sm:$0xff]
        %v3003 = vld [vmem:[%s7 + $0x188] sm:$0xff]
        %v3004 = vld [vmem:[%s7 + $0x190] sm:$0xff]
        %v3005 = vld [vmem:[%s7 + $0x198] sm:$0xff]
        %v3006 = vld [vmem:[%s7 + $0x1a0] sm:$0xff]
        %v3007 = vld [vmem:[%s7 + $0x1a8] sm:$0xff]
        %v3008 = vld [vmem:[%s7 + $0x1b0] sm:$0xff]
        %v3009 = vld [vmem:[%s7 + $0x1b8] sm:$0xff]
        %v3010 = vld [vmem:[%s7 + $0x1c0] sm:$0xff]
        %v3011 = vld [vmem:[%s7 + $0x1c8] sm:$0xff]
        %v3012 = vld [vmem:[%s7 + $0x1d0] sm:$0xff]
        %v3013 = vld [vmem:[%s7 + $0x1d8] sm:$0xff]
        %v3014 = vld [vmem:[%s8] sm:$0xff]
        %v3015 = vld [vmem:[%s8 + $0x8] sm:$0xff]
        %v3016 = vld [vmem:[%s8 + $0x10] sm:$0xff]
        %v3017 = vld [vmem:[%s8 + $0x18] sm:$0xff]
        %v3018 = vld [vmem:[%s8 + $0x20] sm:$0xff]
        %v3019 = vld [vmem:[%s8 + $0x28] sm:$0xff]
        %v3020 = vld [vmem:[%s8 + $0x30] sm:$0xff]
        %v3021 = vld [vmem:[%s8 + $0x38] sm:$0xff]
        %v3022 = vld [vmem:[%s8 + $0x40] sm:$0xff]
        %v3023 = vld [vmem:[%s8 + $0x48] sm:$0xff]
        %v3024 = vld [vmem:[%s8 + $0x50] sm:$0xff]
        %v3025 = vld [vmem:[%s8 + $0x58] sm:$0xff]
        %v3026 = vld [vmem:[%s8 + $0x60] sm:$0xff]
        %v3027 = vld [vmem:[%s8 + $0x68] sm:$0xff]
        %v3028 = vld [vmem:[%s8 + $0x70] sm:$0xff]
        %vm3029 = vcmask 130048
        %v3031 = vsel %vm3029, %v2957, 0
        %v3034 = vsel %vm3029, %v2961, 0
        %v3037 = vsel %vm3029, %v2965, 0
        %v3040 = vsel %vm3029, %v2969, 0
        %v3043 = vsel %vm3029, %v2973, 0
        %v3046 = vsel %vm3029, %v2977, 0
        %v3049 = vsel %vm3029, %v2981, 0
        %v3052 = vsel %vm3029, %v2985, 0
        %v3055 = vsel %vm3029, %v2989, 0
        %v3058 = vsel %vm3029, %v2993, 0
        %v3061 = vsel %vm3029, %v2997, 0
        %v3064 = vsel %vm3029, %v3001, 0
        %v3067 = vsel %vm3029, %v3005, 0
        %v3070 = vsel %vm3029, %v3009, 0
        %v3073 = vsel %vm3029, %v3013, 0
        %3075 = vmatpush.msra.mxu0 %v2845
        %3076 = vmatpush.msra.mxu0 %v2843
        %3077 = vmatpush.msra.mxu0 %v2839
        %3078 = vmatpush.msra.mxu0 %v2837
        %3079 = vmatpush.msra.mxu0 %v2833
        %3080 = vmatpush.msra.mxu0 %v2831
        %3081 = vmatpush.msra.mxu0 %v2827
        %3082 = vmatpush.msra.mxu0 %v2825
        %3083 = vmatpush.msra.mxu0 %v2821
        %3084 = vmatpush.msra.mxu0 %v2819
        %3085 = vmatpush.msra.mxu0 %v2815
        %3086 = vmatpush.msra.mxu0 %v2813
        %3087 = vmatpush.msra.mxu0 %v2809
        %3088 = vmatpush.msra.mxu0 %v2807
        %3089 = vmatpush.msra.mxu0 %v2802
        %3090 = vmatpush.msra.mxu0 %v2799
        %3091 = vmatmul.f32.gmra.mxu0 %v2954
        %v3092 = vpop.f32.mrf.mxu0
        %v3093 = vadd.f32 %v3014, %v3092
        %3094 = vmatmul.f32.gmra.mxu0 %v2958
        %v3095 = vpop.f32.mrf.mxu0
        %v3096 = vadd.f32 %v3015, %v3095
        %3097 = vmatmul.f32.gmra.mxu0 %v2962
        %v3098 = vpop.f32.mrf.mxu0
        %v3099 = vadd.f32 %v3016, %v3098
        %3100 = vmatmul.f32.gmra.mxu0 %v2966
        %v3101 = vpop.f32.mrf.mxu0
        %v3102 = vadd.f32 %v3017, %v3101
        %3103 = vmatmul.f32.gmra.mxu0 %v2970
        %v3104 = vpop.f32.mrf.mxu0
        %v3105 = vadd.f32 %v3018, %v3104
        %3106 = vmatmul.f32.gmra.mxu0 %v2974
        %v3107 = vpop.f32.mrf.mxu0
        %v3108 = vadd.f32 %v3019, %v3107
        %3109 = vmatmul.f32.gmra.mxu0 %v2978
        %v3110 = vpop.f32.mrf.mxu0
        %v3111 = vadd.f32 %v3020, %v3110
        %3112 = vmatmul.f32.gmra.mxu0 %v2982
        %v3113 = vpop.f32.mrf.mxu0
        %v3114 = vadd.f32 %v3021, %v3113
        %3115 = vmatmul.f32.gmra.mxu0 %v2986
        %v3116 = vpop.f32.mrf.mxu0
        %v3117 = vadd.f32 %v3022, %v3116
        %3118 = vmatmul.f32.gmra.mxu0 %v2990
        %v3119 = vpop.f32.mrf.mxu0
        %v3120 = vadd.f32 %v3023, %v3119
        %3121 = vmatmul.f32.gmra.mxu0 %v2994
        %v3122 = vpop.f32.mrf.mxu0
        %v3123 = vadd.f32 %v3024, %v3122
        %3124 = vmatmul.f32.gmra.mxu0 %v2998
        %v3125 = vpop.f32.mrf.mxu0
        %v3126 = vadd.f32 %v3025, %v3125
        %3127 = vmatmul.f32.gmra.mxu0 %v3002
        %v3128 = vpop.f32.mrf.mxu0
        %v3129 = vadd.f32 %v3026, %v3128
        %3130 = vmatmul.f32.gmra.mxu0 %v3006
        %v3131 = vpop.f32.mrf.mxu0
        %v3132 = vadd.f32 %v3027, %v3131
        %3133 = vmatmul.f32.gmra.mxu0 %v3010
        %v3134 = vpop.f32.mrf.mxu0
        %v3135 = vadd.f32 %v3028, %v3134
        %3136 = vdwg.mxu0
        %3137 = vmatpush.msra.mxu0 %v2893
        %3138 = vmatpush.msra.mxu0 %v2891
        %3139 = vmatpush.msra.mxu0 %v2887
        %3140 = vmatpush.msra.mxu0 %v2885
        %3141 = vmatpush.msra.mxu0 %v2881
        %3142 = vmatpush.msra.mxu0 %v2879
        %3143 = vmatpush.msra.mxu0 %v2875
        %3144 = vmatpush.msra.mxu0 %v2873
        %3145 = vmatpush.msra.mxu0 %v2869
        %3146 = vmatpush.msra.mxu0 %v2867
        %3147 = vmatpush.msra.mxu0 %v2863
        %3148 = vmatpush.msra.mxu0 %v2861
        %3149 = vmatpush.msra.mxu0 %v2857
        %3150 = vmatpush.msra.mxu0 %v2855
        %3151 = vmatpush.msra.mxu0 %v2851
        %3152 = vmatpush.msra.mxu0 %v2849
        %3153 = vmatmul.f32.gmra.mxu0 %v2955
        %v3154 = vpop.f32.mrf.mxu0
        %v3155 = vadd.f32 %v3093, %v3154
        %3156 = vmatmul.f32.gmra.mxu0 %v2959
        %v3157 = vpop.f32.mrf.mxu0
        %v3158 = vadd.f32 %v3096, %v3157
        %3159 = vmatmul.f32.gmra.mxu0 %v2963
        %v3160 = vpop.f32.mrf.mxu0
        %v3161 = vadd.f32 %v3099, %v3160
        %3162 = vmatmul.f32.gmra.mxu0 %v2967
        %v3163 = vpop.f32.mrf.mxu0
        %v3164 = vadd.f32 %v3102, %v3163
        %3165 = vmatmul.f32.gmra.mxu0 %v2971
        %v3166 = vpop.f32.mrf.mxu0
        %v3167 = vadd.f32 %v3105, %v3166
        %3168 = vmatmul.f32.gmra.mxu0 %v2975
        %v3169 = vpop.f32.mrf.mxu0
        %v3170 = vadd.f32 %v3108, %v3169
        %3171 = vmatmul.f32.gmra.mxu0 %v2979
        %v3172 = vpop.f32.mrf.mxu0
        %v3173 = vadd.f32 %v3111, %v3172
        %3174 = vmatmul.f32.gmra.mxu0 %v2983
        %v3175 = vpop.f32.mrf.mxu0
        %v3176 = vadd.f32 %v3114, %v3175
        %3177 = vmatmul.f32.gmra.mxu0 %v2987
        %v3178 = vpop.f32.mrf.mxu0
        %v3179 = vadd.f32 %v3117, %v3178
        %3180 = vmatmul.f32.gmra.mxu0 %v2991
        %v3181 = vpop.f32.mrf.mxu0
        %v3182 = vadd.f32 %v3120, %v3181
        %3183 = vmatmul.f32.gmra.mxu0 %v2995
        %v3184 = vpop.f32.mrf.mxu0
        %v3185 = vadd.f32 %v3123, %v3184
        %3186 = vmatmul.f32.gmra.mxu0 %v2999
        %v3187 = vpop.f32.mrf.mxu0
        %v3188 = vadd.f32 %v3126, %v3187
        %3189 = vmatmul.f32.gmra.mxu0 %v3003
        %v3190 = vpop.f32.mrf.mxu0
        %v3191 = vadd.f32 %v3129, %v3190
        %3192 = vmatmul.f32.gmra.mxu0 %v3007
        %v3193 = vpop.f32.mrf.mxu0
        %v3194 = vadd.f32 %v3132, %v3193
        %3195 = vmatmul.f32.gmra.mxu0 %v3011
        %v3196 = vpop.f32.mrf.mxu0
        %v3197 = vadd.f32 %v3135, %v3196
        %3198 = vdwg.mxu0
        %3199 = vmatpush.msra.mxu0 %v2931
        %3200 = vmatpush.msra.mxu0 %v2929
        %3201 = vmatpush.msra.mxu0 %v2927
        %3202 = vmatpush.msra.mxu0 %v2925
        %3203 = vmatpush.msra.mxu0 %v2923
        %3204 = vmatpush.msra.mxu0 %v2921
        %3205 = vmatpush.msra.mxu0 %v2919
        %3206 = vmatpush.msra.mxu0 %v2917
        %3207 = vmatpush.msra.mxu0 %v2915
        %3208 = vmatpush.msra.mxu0 %v2913
        %3209 = vmatpush.msra.mxu0 %v2911
        %3210 = vmatpush.msra.mxu0 %v2909
        %3211 = vmatpush.msra.mxu0 %v2907
        %3212 = vmatpush.msra.mxu0 %v2905
        %3213 = vmatpush.msra.mxu0 %v2903
        %3214 = vmatpush.msra.mxu0 %v2901
        %3215 = vmatmul.f32.gmra.mxu0 %v2956
        %v3216 = vpop.f32.mrf.mxu0
        %v3217 = vadd.f32 %v3155, %v3216
        %3218 = vmatmul.f32.gmra.mxu0 %v2960
        %v3219 = vpop.f32.mrf.mxu0
        %v3220 = vadd.f32 %v3158, %v3219
        %3221 = vmatmul.f32.gmra.mxu0 %v2964
        %v3222 = vpop.f32.mrf.mxu0
        %v3223 = vadd.f32 %v3161, %v3222
        %3224 = vmatmul.f32.gmra.mxu0 %v2968
        %v3225 = vpop.f32.mrf.mxu0
        %v3226 = vadd.f32 %v3164, %v3225
        %3227 = vmatmul.f32.gmra.mxu0 %v2972
        %v3228 = vpop.f32.mrf.mxu0
        %v3229 = vadd.f32 %v3167, %v3228
        %3230 = vmatmul.f32.gmra.mxu0 %v2976
        %v3231 = vpop.f32.mrf.mxu0
        %v3232 = vadd.f32 %v3170, %v3231
        %3233 = vmatmul.f32.gmra.mxu0 %v2980
        %v3234 = vpop.f32.mrf.mxu0
        %v3235 = vadd.f32 %v3173, %v3234
        %3236 = vmatmul.f32.gmra.mxu0 %v2984
        %v3237 = vpop.f32.mrf.mxu0
        %v3238 = vadd.f32 %v3176, %v3237
        %3239 = vmatmul.f32.gmra.mxu0 %v2988
        %v3240 = vpop.f32.mrf.mxu0
        %v3241 = vadd.f32 %v3179, %v3240
        %3242 = vmatmul.f32.gmra.mxu0 %v2992
        %v3243 = vpop.f32.mrf.mxu0
        %v3244 = vadd.f32 %v3182, %v3243
        %3245 = vmatmul.f32.gmra.mxu0 %v2996
        %v3246 = vpop.f32.mrf.mxu0
        %v3247 = vadd.f32 %v3185, %v3246
        %3248 = vmatmul.f32.gmra.mxu0 %v3000
        %v3249 = vpop.f32.mrf.mxu0
        %v3250 = vadd.f32 %v3188, %v3249
        %3251 = vmatmul.f32.gmra.mxu0 %v3004
        %v3252 = vpop.f32.mrf.mxu0
        %v3253 = vadd.f32 %v3191, %v3252
        %3254 = vmatmul.f32.gmra.mxu0 %v3008
        %v3255 = vpop.f32.mrf.mxu0
        %v3256 = vadd.f32 %v3194, %v3255
        %3257 = vmatmul.f32.gmra.mxu0 %v3012
        %v3258 = vpop.f32.mrf.mxu0
        %v3259 = vadd.f32 %v3197, %v3258
        %3260 = vdwg.mxu0
        %3261 = vmatpush.msra.mxu0 0.0
        %3262 = vmatpush.msra.mxu0 0.0
        %3263 = vmatpush.msra.mxu0 0.0
        %3264 = vmatpush.msra.mxu0 0.0
        %3265 = vmatpush.msra.mxu0 0.0
        %3266 = vmatpush.msra.mxu0 0.0
        %3267 = vmatpush.msra.mxu0 0.0
        %3268 = vmatpush.msra.mxu0 0.0
        %3269 = vmatpush.msra.mxu0 0.0
        %3270 = vmatpush.msra.mxu0 0.0
        %3271 = vmatpush.msra.mxu0 0.0
        %3272 = vmatpush.msra.mxu0 0.0
        %3273 = vmatpush.msra.mxu0 0.0
        %3274 = vmatpush.msra.mxu0 0.0
        %3275 = vmatpush.msra.mxu0 %v2935
        %3276 = vmatpush.msra.mxu0 %v2933
        %3277 = vmatmul.f32.gmra.mxu0 %v3031
        %v3278 = vpop.f32.mrf.mxu0
        %v3279 = vadd.f32 %v3217, %v3278
        %3280 = vmatmul.f32.gmra.mxu0 %v3034
        %v3281 = vpop.f32.mrf.mxu0
        %v3282 = vadd.f32 %v3220, %v3281
        %3283 = vmatmul.f32.gmra.mxu0 %v3037
        %v3284 = vpop.f32.mrf.mxu0
        %v3285 = vadd.f32 %v3223, %v3284
        %3286 = vmatmul.f32.gmra.mxu0 %v3040
        %v3287 = vpop.f32.mrf.mxu0
        %v3288 = vadd.f32 %v3226, %v3287
        %3289 = vmatmul.f32.gmra.mxu0 %v3043
        %v3290 = vpop.f32.mrf.mxu0
        %v3291 = vadd.f32 %v3229, %v3290
        %3292 = vmatmul.f32.gmra.mxu0 %v3046
        %v3293 = vpop.f32.mrf.mxu0
        %v3294 = vadd.f32 %v3232, %v3293
        %3295 = vmatmul.f32.gmra.mxu0 %v3049
        %v3296 = vpop.f32.mrf.mxu0
        %v3297 = vadd.f32 %v3235, %v3296
        %3298 = vmatmul.f32.gmra.mxu0 %v3052
        %v3299 = vpop.f32.mrf.mxu0
        %v3300 = vadd.f32 %v3238, %v3299
        %3301 = vmatmul.f32.gmra.mxu0 %v3055
        %v3302 = vpop.f32.mrf.mxu0
        %v3303 = vadd.f32 %v3241, %v3302
        %3304 = vmatmul.f32.gmra.mxu0 %v3058
        %v3305 = vpop.f32.mrf.mxu0
        %v3306 = vadd.f32 %v3244, %v3305
        %3307 = vmatmul.f32.gmra.mxu0 %v3061
        %v3308 = vpop.f32.mrf.mxu0
        %v3309 = vadd.f32 %v3247, %v3308
        %3310 = vmatmul.f32.gmra.mxu0 %v3064
        %v3311 = vpop.f32.mrf.mxu0
        %v3312 = vadd.f32 %v3250, %v3311
        %3313 = vmatmul.f32.gmra.mxu0 %v3067
        %v3314 = vpop.f32.mrf.mxu0
        %v3315 = vadd.f32 %v3253, %v3314
        %3316 = vmatmul.f32.gmra.mxu0 %v3070
        %v3317 = vpop.f32.mrf.mxu0
        %v3318 = vadd.f32 %v3256, %v3317
        %3319 = vmatmul.f32.gmra.mxu0 %v3073
        %v3320 = vpop.f32.mrf.mxu0
        %v3321 = vadd.f32 %v3259, %v3320
        %3322 = vdwg.mxu0
        %v3323 = vtanh.pop %v3279
        %v3324 = vtanh.pop %v3282
        %v3325 = vtanh.pop %v3285
        %v3326 = vtanh.pop %v3288
        %v3327 = vtanh.pop %v3291
        %v3328 = vtanh.pop %v3294
        %v3329 = vtanh.pop %v3297
        %v3330 = vtanh.pop %v3300
        %v3331 = vtanh.pop %v3303
        %v3332 = vtanh.pop %v3306
        %v3333 = vtanh.pop %v3309
        %v3334 = vtanh.pop %v3312
        %v3335 = vtanh.pop %v3315
        %v3336 = vtanh.pop %v3318
        %v3337 = vtanh.pop %v3321
        %v3338 = vld [vmem:[%s9] sm:$0xff]
        %v3339 = vld [vmem:[%s9 + $0x8] sm:$0xff]
        %v3340 = vld [vmem:[%s9 + $0x10] sm:$0xff]
        %v3341 = vld [vmem:[%s9 + $0x18] sm:$0xff]
        %v3342 = vld [vmem:[%s9 + $0x20] sm:$0xff]
        %v3343 = vld [vmem:[%s9 + $0x28] sm:$0xff]
        %v3344 = vld [vmem:[%s9 + $0x30] sm:$0xff]
        %v3345 = vld [vmem:[%s9 + $0x38] sm:$0xff]
        %v3346 = vld [vmem:[%s9 + $0x40] sm:$0xff]
        %v3347 = vld [vmem:[%s9 + $0x48] sm:$0xff]
        %v3348 = vld [vmem:[%s9 + $0x50] sm:$0xf]
        %v3349 = vld [vmem:[%s10] sm:$0xff]
        %v3350 = vld [vmem:[%s10 + $0x8] sm:$0xff]
        %v3351 = vld [vmem:[%s10 + $0x10] sm:$0xff]
        %v3352 = vld [vmem:[%s10 + $0x18] sm:$0xff]
        %v3353 = vld [vmem:[%s10 + $0x20] sm:$0xff]
        %v3354 = vld [vmem:[%s10 + $0x28] sm:$0xff]
        %v3355 = vld [vmem:[%s10 + $0x30] sm:$0xff]
        %v3356 = vld [vmem:[%s10 + $0x38] sm:$0xff]
        %v3357 = vld [vmem:[%s10 + $0x40] sm:$0xff]
        %v3358 = vld [vmem:[%s10 + $0x48] sm:$0xff]
        %v3359 = vld [vmem:[%s10 + $0x50] sm:$0xf]
        %vm3360 = vcmask 982016
        %v3362 = vsel %vm3360, %v3338, 0
        %v3365 = vsel %vm3360, %v3339, 0
        %v3368 = vsel %vm3360, %v3340, 0
        %v3371 = vsel %vm3360, %v3341, 0
        %v3374 = vsel %vm3360, %v3342, 0
        %v3377 = vsel %vm3360, %v3343, 0
        %v3380 = vsel %vm3360, %v3344, 0
        %v3383 = vsel %vm3360, %v3345, 0
        %v3386 = vsel %vm3360, %v3346, 0
        %v3389 = vsel %vm3360, %v3347, 0
        %v3392 = vsel %vm3360, %v3348, 0
        %3394 = vmatpush.msra.mxu0 0.0
        %3395 = vmatpush.msra.mxu0 %v3337
        %3396 = vmatpush.msra.mxu0 %v3336
        %3397 = vmatpush.msra.mxu0 %v3335
        %3398 = vmatpush.msra.mxu0 %v3334
        %3399 = vmatpush.msra.mxu0 %v3333
        %3400 = vmatpush.msra.mxu0 %v3332
        %3401 = vmatpush.msra.mxu0 %v3331
        %3402 = vmatpush.msra.mxu0 %v3330
        %3403 = vmatpush.msra.mxu0 %v3329
        %3404 = vmatpush.msra.mxu0 %v3328
        %3405 = vmatpush.msra.mxu0 %v3327
        %3406 = vmatpush.msra.mxu0 %v3326
        %3407 = vmatpush.msra.mxu0 %v3325
        %3408 = vmatpush.msra.mxu0 %v3324
        %3409 = vmatpush.msra.mxu0 %v3323
        %3410 = vmatmul.f32.gmra.mxu0 %v3362
        %v3411 = vpop.f32.mrf.mxu0
        %v3412 = vadd.f32 %v3349, %v3411
        %3413 = vmatmul.f32.gmra.mxu0 %v3365
        %v3414 = vpop.f32.mrf.mxu0
        %v3415 = vadd.f32 %v3350, %v3414
        %3416 = vmatmul.f32.gmra.mxu0 %v3368
        %v3417 = vpop.f32.mrf.mxu0
        %v3418 = vadd.f32 %v3351, %v3417
        %3419 = vmatmul.f32.gmra.mxu0 %v3371
        %v3420 = vpop.f32.mrf.mxu0
        %v3421 = vadd.f32 %v3352, %v3420
        %3422 = vmatmul.f32.gmra.mxu0 %v3374
        %v3423 = vpop.f32.mrf.mxu0
        %v3424 = vadd.f32 %v3353, %v3423
        %3425 = vmatmul.f32.gmra.mxu0 %v3377
        %v3426 = vpop.f32.mrf.mxu0
        %v3427 = vadd.f32 %v3354, %v3426
        %3428 = vmatmul.f32.gmra.mxu0 %v3380
        %v3429 = vpop.f32.mrf.mxu0
        %v3430 = vadd.f32 %v3355, %v3429
        %3431 = vmatmul.f32.gmra.mxu0 %v3383
        %v3432 = vpop.f32.mrf.mxu0
        %v3433 = vadd.f32 %v3356, %v3432
        %3434 = vmatmul.f32.gmra.mxu0 %v3386
        %v3435 = vpop.f32.mrf.mxu0
        %v3436 = vadd.f32 %v3357, %v3435
        %3437 = vmatmul.f32.gmra.mxu0 %v3389
        %v3438 = vpop.f32.mrf.mxu0
        %v3439 = vadd.f32 %v3358, %v3438
        %3440 = vmatmul.f32.gmra.mxu0 %v3392
        %v3441 = vpop.f32.mrf.mxu0
        %v3442 = vadd.f32 %v3359, %v3441
        %3443 = vdwg.mxu0
        %v3444 = vtanh.pop %v3412
        %v3445 = vtanh.pop %v3415
        %v3446 = vtanh.pop %v3418
        %v3447 = vtanh.pop %v3421
        %v3448 = vtanh.pop %v3424
        %v3449 = vtanh.pop %v3427
        %v3450 = vtanh.pop %v3430
        %v3451 = vtanh.pop %v3433
        %v3452 = vtanh.pop %v3436
        %v3453 = vtanh.pop %v3439
        %v3454 = vtanh.pop %v3442
        %v3455 = vld [vmem:[%s11] sm:$0xff]
        %v3456 = vld [vmem:[%s11 + $0x8] sm:$0x3]
        %v3457 = vld [vmem:[%s12] sm:$0xff]
        %v3458 = vld [vmem:[%s12 + $0x8] sm:$0x3]
        %vm3459 = vcmask 687104
        %v3461 = vsel %vm3459, %v3455, 0
        %v3464 = vsel %vm3459, %v3456, 0
        %vm3466 = vcmask 1043456
        %v3468 = vsel %vm3466, %v3454, 0
        %3470 = vmatpush.msra.mxu0 0.0
        %3471 = vmatpush.msra.mxu0 0.0
        %3472 = vmatpush.msra.mxu0 0.0
        %3473 = vmatpush.msra.mxu0 0.0
        %3474 = vmatpush.msra.mxu0 0.0
        %3475 = vmatpush.msra.mxu0 %v3468
        %3476 = vmatpush.msra.mxu0 %v3453
        %3477 = vmatpush.msra.mxu0 %v3452
        %3478 = vmatpush.msra.mxu0 %v3451
        %3479 = vmatpush.msra.mxu0 %v3450
        %3480 = vmatpush.msra.mxu0 %v3449
        %3481 = vmatpush.msra.mxu0 %v3448
        %3482 = vmatpush.msra.mxu0 %v3447
        %3483 = vmatpush.msra.mxu0 %v3446
        %3484 = vmatpush.msra.mxu0 %v3445
        %3485 = vmatpush.msra.mxu0 %v3444
        %3486 = vmatmul.f32.gmra.mxu0 %v3461
        %v3487 = vpop.f32.mrf.mxu0
        %v3488 = vadd.f32 %v3457, %v3487
        %3489 = vmatmul.f32.gmra.mxu0 %v3464
        %v3490 = vpop.f32.mrf.mxu0
        %v3491 = vadd.f32 %v3458, %v3490
        %3492 = vdwg.mxu0
        %vm3493 = vcmask 7168
        %3494 = vst.msk [vmem:[%s454] sm:$0xff] %vm3493, %v3488
        %vm3495 = vcmask 1024
        %3496 = vst.msk [vmem:[%s454 + $0x8] sm:$0x3] %vm3495, %v3491
        %p3497 = scmp.lt.s32.totalorder %s25, 1
        %s3498 = scalar_select %p3497, %s25, 1
        %s3499 = smul.addr %s3498, 2
        %s3500 = smul.addr %s3499, 8
        %s3501 = scalar_lea.vmem %s13, %s3500
        // Predicated region
        $region77: #{lenet5_pallas.1} parent=71 // pred_check
          %p3502 = pneg %p321
        $region78: #{lenet5_pallas.1} parent=71 // pred_check_branch
          %3504 = sbr.rel (%p3502) target = $region80
        $region79: #{lenet5_pallas.1} parent=71 // pred_region
          _
        $region80: #{lenet5_pallas.1} parent=71 // pred_fallthru
          _
      $region72: #{lenet5_pallas.1} parent=5 // pred_fallthru
        _
      %p3505 = scmp.le.s32.totalorder 2, %s20
      // Predicated region
      $region81: #{lenet5_pallas.1} parent=5 // pred_check
        %p3506 = pneg %p3505
      $region82: #{lenet5_pallas.1} parent=5 // pred_check_branch
        %3508 = sbr.rel (%p3506) target = $region84
      $region83: #{lenet5_pallas.1} parent=5 // pred_region
        %s3509 = ssub.s32 %s20, 2
        // Predicated region
        $region85: #{lenet5_pallas.1} parent=83 // pred_check
          %p3510 = pneg %p327
        $region86: #{lenet5_pallas.1} parent=83 // pred_check_branch
          %3512 = sbr.rel (%p3510) target = $region88
        $region87: #{lenet5_pallas.1} parent=83 // pred_region
          %p3513 = scmp.lt.s32.totalorder %s26, 1
          %s3514 = scalar_select %p3513, %s26, 1
          %s3515 = smul.addr %s3514, 2
          %s3516 = smul.addr %s3515, 8
          %s3517 = scalar_lea.vmem %s13, %s3516
        $region88: #{lenet5_pallas.1} parent=83 // pred_fallthru
          _
      $region84: #{lenet5_pallas.1} parent=5 // pred_fallthru
        _
    $region6: #{lenet5_pallas.1} parent=1 // loop_footer
      %s24 = sadd.s32 1, %s20
    $region7: #{lenet5_pallas.1} parent=1 // loop_footer_branch
      %19 = sbr.rel target = $region3
    $region8: #{lenet5_pallas.1} parent=1 // loop_exit
      _
    %3518 = vsyncpa [#allocation3], 1
    %s3519 = scalar_lea.sflag [#allocation3], 1
    %3520 = vsyncpa %s3519, 1

</llo_original>
